<compile_context>
chip_gen: v7x
topology: tpu7x:2x2x1
jax: 0.10.0
libtpu: 0.0.40
codegen_flags: <defaults>
</compile_context>

<pallas_src>
import numpy as np
import jax
import jax.numpy as jnp
from jax import lax
from jax.experimental import pallas as pl
from jax.experimental.pallas import tpu as pltpu

C1 = 16    # conv1 out channels
C2 = 32    # conv2 out channels
HID = 128  # LSTM hidden size


# ------------------------------ Pallas kernels ------------------------------

def _cnn_inproj_kernel(x_ref, a1_ref, b1_ref, a2_ref, b2_ref, w3_ref, b3_ref,
                       o_ref):
    """conv1+ReLU+pool+conv2+ReLU+pool+flatten + LSTM layer-1 input GEMM.

    x_ref : (M, F)   bf16   rows are (t, b)-flattened samples
    a1_ref: (F, F*C1) bf16  conv1 banded-dense, columns in even/odd width halves
    b1_ref: (1, F*C1) f32
    a2_ref: (F2*C1, F2*C2) bf16  conv2 banded-dense, even/odd column halves
    b2_ref: (1, F2*C2) f32
    w3_ref: (D, 4H) bf16   W_ih_l0^T, rows in width-major order, cols [i,f,o|g]
    b3_ref: (1, 4H) f32    b_ih_l0 + b_hh_l0 (gate-permuted)
    o_ref : (M, 4H) f32    per-(t,b) layer-1 gate pre-activations
    """
    half1 = a1_ref.shape[1] // 2
    half2 = a2_ref.shape[1] // 2

    # conv1 + bias + ReLU (f32 accumulate)
    h1 = jnp.dot(x_ref[...], a1_ref[...], preferred_element_type=jnp.float32)
    h1 = jnp.maximum(h1 + b1_ref[...], 0.0)
    # MaxPool2d((1,2),(1,2)) == max of the even-width half vs the odd-width half
    p1 = jnp.maximum(h1[:, :half1], h1[:, half1:]).astype(a2_ref.dtype)

    # conv2 + bias + ReLU
    h2 = jnp.dot(p1, a2_ref[...], preferred_element_type=jnp.float32)
    h2 = jnp.maximum(h2 + b2_ref[...], 0.0)
    p2 = jnp.maximum(h2[:, :half2], h2[:, half2:]).astype(w3_ref.dtype)

    # LSTM layer-1 input projection, hoisted out of the recurrence
    o_ref[...] = (jnp.dot(p2, w3_ref[...], preferred_element_type=jnp.float32)
                  + b3_ref[...])


def _lstm_fc_kernel(xp_ref, whh1_ref, w2s_ref, b2_ref, wfc_ref, bfc_ref,
                    o_ref, h1_sc, c1_sc, h2_sc, c2_sc):
    """Streamed 2-layer LSTM recurrence (zero init) + final Linear on last step.

    Grid: (batch_chunks [parallel], time_chunks [arbitrary]).
    xp_ref : (TS, Bc, 4H) f32  precomputed x_t @ W_ih_l0^T + b_ih_l0 + b_hh_l0
    whh1_ref: (H, 4H) bf16     W_hh_l0^T            (gate cols [i,f,o|g])
    w2s_ref : (2H, 4H) bf16    [W_ih_l1^T ; W_hh_l1^T]
    b2_ref  : (1, 4H) f32      b_ih_l1 + b_hh_l1
    wfc_ref : (H, C) bf16, bfc_ref: (1, C) f32
    o_ref   : (Bc, C) f32
    h/c scratch: (Bc, H) f32 carried across time chunks
    """
    tchunk = pl.program_id(1)
    TS = xp_ref.shape[0]
    H = whh1_ref.shape[0]

    @pl.when(tchunk == 0)
    def _():
        h1_sc[...] = jnp.zeros_like(h1_sc)
        c1_sc[...] = jnp.zeros_like(c1_sc)
        h2_sc[...] = jnp.zeros_like(h2_sc)
        c2_sc[...] = jnp.zeros_like(c2_sc)

    whh1 = whh1_ref[...]
    w2s = w2s_ref[...]
    b2 = b2_ref[...]

    def gates(g, c_prev):
        # gate pre-activations are column-ordered [i, f, o | g]
        s = jax.nn.sigmoid(g[:, 0:3 * H])          # one EUP pass over 3H lanes
        gg = jnp.tanh(g[:, 3 * H:4 * H])
        i, f, o = s[:, 0:H], s[:, H:2 * H], s[:, 2 * H:3 * H]
        c_new = f * c_prev + i * gg
        return o * jnp.tanh(c_new), c_new

    def body(t, carry):
        h1, c1, h2, c2 = carry
        g1 = xp_ref[t] + jnp.dot(h1.astype(whh1.dtype), whh1,
                                 preferred_element_type=jnp.float32)
        h1, c1 = gates(g1, c1)
        x2 = jnp.concatenate([h1, h2], axis=1).astype(w2s.dtype)
        g2 = jnp.dot(x2, w2s, preferred_element_type=jnp.float32) + b2
        h2, c2 = gates(g2, c2)
        return (h1, c1, h2, c2)

    carry0 = (h1_sc[...], c1_sc[...], h2_sc[...], c2_sc[...])
    # TS is bounded (<= 8) by construction, so this is a bounded unroll: the
    # scheduler overlaps MXU pushes with EUP sigmoid/tanh across adjacent steps.
    h1, c1, h2, c2 = lax.fori_loop(0, TS, body, carry0, unroll=True)

    h1_sc[...] = h1
    c1_sc[...] = c1
    h2_sc[...] = h2
    c2_sc[...] = c2

    @pl.when(tchunk == pl.num_programs(1) - 1)
    def _():
        o_ref[...] = (jnp.dot(h2.astype(wfc_ref.dtype), wfc_ref[...],
                              preferred_element_type=jnp.float32)
                      + bfc_ref[...])


# -------------------------------- wrappers ----------------------------------

def _round_up(n, m):
    return ((n + m - 1) // m) * m


def cnn_inproj(x_rows, a1, b1t, a2, b2t, w3, b3, *, max_tile=1024):
    N, F = x_rows.shape
    H4 = w3.shape[1]
    # Pad N host-side to an aligned tile (never rely on unaligned fallback tiles)
    n_pad = _round_up(N, 8)
    if n_pad > max_tile:
        n_pad = _round_up(N, max_tile)
        tm = max_tile
    else:
        tm = n_pad
    if n_pad != N:
        x_rows = jnp.pad(x_rows, ((0, n_pad - N), (0, 0)))

    out = pl.pallas_call(
        _cnn_inproj_kernel,
        out_shape=jax.ShapeDtypeStruct((n_pad, H4), jnp.float32),
        grid_spec=pltpu.PrefetchScalarGridSpec(
            num_scalar_prefetch=0,
            grid=(n_pad // tm,),
            in_specs=[
                pl.BlockSpec((tm, F), lambda i: (i, 0)),
                pl.BlockSpec(a1.shape, lambda i: (0, 0)),
                pl.BlockSpec(b1t.shape, lambda i: (0, 0)),
                pl.BlockSpec(a2.shape, lambda i: (0, 0)),
                pl.BlockSpec(b2t.shape, lambda i: (0, 0)),
                pl.BlockSpec(w3.shape, lambda i: (0, 0)),
                pl.BlockSpec(b3.shape, lambda i: (0, 0)),
            ],
            out_specs=pl.BlockSpec((tm, H4), lambda i: (i, 0)),
        ),
        compiler_params=pltpu.CompilerParams(
            dimension_semantics=("parallel",)),
    )(x_rows, a1, b1t, a2, b2t, w3, b3)
    return out[:N] if n_pad != N else out


def _batch_chunks(B):
    # Batch chunks must be a multiple of 8 sublanes or equal the full batch.
    if B >= 16 and B % 16 == 0:
        return 2, B // 2
    return 1, B


def _time_chunk(T, max_ts=8):
    if T <= max_ts:
        return T
    for ts in range(max_ts, 0, -1):
        if T % ts == 0:
            return ts
    return 1


def lstm_fc(xp, whh1_t, w2s, b2l, wfc_t, bfc, num_classes):
    T, B, H4 = xp.shape
    H = HID
    NB, Bc = _batch_chunks(B)
    TS = _time_chunk(T)
    NT = T // TS
    return pl.pallas_call(
        _lstm_fc_kernel,
        out_shape=jax.ShapeDtypeStruct((B, num_classes), jnp.float32),
        grid_spec=pltpu.PrefetchScalarGridSpec(
            num_scalar_prefetch=0,
            grid=(NB, NT),
            in_specs=[
                pl.BlockSpec((TS, Bc, H4), lambda b, t: (t, b, 0)),
                pl.BlockSpec(whh1_t.shape, lambda b, t: (0, 0)),
                pl.BlockSpec(w2s.shape, lambda b, t: (0, 0)),
                pl.BlockSpec(b2l.shape, lambda b, t: (0, 0)),
                pl.BlockSpec(wfc_t.shape, lambda b, t: (0, 0)),
                pl.BlockSpec(bfc.shape, lambda b, t: (0, 0)),
            ],
            out_specs=pl.BlockSpec((Bc, num_classes), lambda b, t: (b, 0)),
            scratch_shapes=[pltpu.VMEM((Bc, H), jnp.float32)] * 4,
        ),
        compiler_params=pltpu.CompilerParams(
            dimension_semantics=("parallel", "arbitrary")),
    )(xp, whh1_t, w2s, b2l, wfc_t, bfc)


def forward(x, kp, num_classes, num_features):
    B, T, F = x.shape
    assert F == num_features and F % 4 == 0
    # (t, b) row order end-to-end; only the tiny raw input gets transposed.
    x_rows = jnp.transpose(x, (1, 0, 2)).reshape(T * B, F).astype(jnp.bfloat16)

    xp = cnn_inproj(x_rows, kp["a1"], kp["b1t"], kp["a2"], kp["b2t"],
                    kp["w3"], kp["b3"])                 # (T*B, 4H) f32
    xp = xp.reshape(T, B, 4 * HID)                      # contiguous, free

    return lstm_fc(xp, kp["whh1_t"], kp["w2s"], kp["b2l"],
                   kp["wfc_t"], kp["bfc"], num_classes)


# --------------------------- parameter preparation ---------------------------

def init_params(key, num_classes, num_features):
    """Parameters with the same shapes/layouts as the PyTorch module."""
    H = HID
    D = C2 * (num_features // 4)
    ks = jax.random.split(key, 14)

    def rnd(k, shape, scale=0.1):
        return (scale * jax.random.normal(k, shape)).astype(jnp.float32)

    return dict(
        conv1_w=rnd(ks[0], (C1, 1, 1, 3)), conv1_b=rnd(ks[1], (C1,)),
        conv2_w=rnd(ks[2], (C2, C1, 1, 3)), conv2_b=rnd(ks[3], (C2,)),
        w_ih_l0=rnd(ks[4], (4 * H, D)), w_hh_l0=rnd(ks[5], (4 * H, H)),
        b_ih_l0=rnd(ks[6], (4 * H,)), b_hh_l0=rnd(ks[7], (4 * H,)),
        w_ih_l1=rnd(ks[8], (4 * H, H)), w_hh_l1=rnd(ks[9], (4 * H, H)),
        b_ih_l1=rnd(ks[10], (4 * H,)), b_hh_l1=rnd(ks[11], (4 * H,)),
        fc_w=rnd(ks[12], (num_classes, H)), fc_b=rnd(ks[13], (num_classes,)),
    )


def prepare_kernel_params(p, num_features):
    """One-time host-side repack of PyTorch-layout weights into kernel layout."""
    F = num_features
    F2, F4 = F // 2, F // 4
    D = C2 * F4
    H = HID

    # conv1 banded-dense.  Output columns are permuted into even/odd width
    # halves so the pool is max(first half, second half):
    #   even w -> (w//2)*C1 + c ;  odd w -> F2*C1 + (w//2)*C1 + c
    w1 = np.asarray(p["conv1_w"], np.float32)             # (C1,1,1,3)
    a1 = np.zeros((F, F * C1), np.float32)
    for w in range(F):
        cbase = (w % 2) * (F2 * C1) + (w // 2) * C1
        for k in range(3):
            wp = w + k - 1
            if 0 <= wp < F:
                a1[wp, cbase:cbase + C1] = w1[:, 0, 0, k]
    b1t = np.tile(np.asarray(p["conv1_b"], np.float32), F).reshape(1, F * C1)

    # conv2 banded-dense; pooled-width-major rows (w2*C1 + c_in), even/odd cols.
    w2 = np.asarray(p["conv2_w"], np.float32)              # (C2,C1,1,3)
    a2 = np.zeros((F2 * C1, F2 * C2), np.float32)
    for w in range(F2):
        cbase = (w % 2) * (F4 * C2) + (w // 2) * C2
        for k in range(3):
            wp = w + k - 1
            if 0 <= wp < F2:
                a2[wp * C1:(wp + 1) * C1, cbase:cbase + C2] = w2[:, :, 0, k].T
    b2t = np.tile(np.asarray(p["conv2_b"], np.float32), F2).reshape(1, F2 * C2)

    # Flatten permutation: kernel p2 layout is width-major (col = w4*C2 + c2);
    # PyTorch flatten is channel-major (col = c2*F4 + w4).
    d = np.arange(D)
    fperm = (d % C2) * F4 + d // C2
    # Gate permutation: PyTorch [i, f, g, o]  ->  kernel [i, f, o | g]
    gperm = np.concatenate([np.arange(0, H), np.arange(H, 2 * H),
                            np.arange(3 * H, 4 * H), np.arange(2 * H, 3 * H)])

    w_ih_l0 = np.asarray(p["w_ih_l0"], np.float32)
    w_hh_l0 = np.asarray(p["w_hh_l0"], np.float32)
    w_ih_l1 = np.asarray(p["w_ih_l1"], np.float32)
    w_hh_l1 = np.asarray(p["w_hh_l1"], np.float32)

    w3 = w_ih_l0.T[fperm][:, gperm]                                   # (D,4H)
    b3 = (np.asarray(p["b_ih_l0"], np.float32)
          + np.asarray(p["b_hh_l0"], np.float32))[gperm].reshape(1, 4 * H)
    whh1_t = w_hh_l0.T[:, gperm]                                      # (H,4H)
    w2s = np.concatenate([w_ih_l1.T, w_hh_l1.T], axis=0)[:, gperm]    # (2H,4H)
    b2l = (np.asarray(p["b_ih_l1"], np.float32)
           + np.asarray(p["b_hh_l1"], np.float32))[gperm].reshape(1, 4 * H)
    wfc_t = np.asarray(p["fc_w"], np.float32).T                       # (H,C)
    bfc = np.asarray(p["fc_b"], np.float32).reshape(1, -1)

    return dict(
        a1=jnp.asarray(a1, jnp.bfloat16), b1t=jnp.asarray(b1t, jnp.float32),
        a2=jnp.asarray(a2, jnp.bfloat16), b2t=jnp.asarray(b2t, jnp.float32),
        w3=jnp.asarray(w3, jnp.bfloat16), b3=jnp.asarray(b3, jnp.float32),
        whh1_t=jnp.asarray(whh1_t, jnp.bfloat16),
        w2s=jnp.asarray(w2s, jnp.bfloat16),
        b2l=jnp.asarray(b2l, jnp.float32),
        wfc_t=jnp.asarray(wfc_t, jnp.bfloat16),
        bfc=jnp.asarray(bfc, jnp.float32),
    )


if __name__ == "__main__":
    key = jax.random.PRNGKey(0)
    kx, kparam = jax.random.split(key)

    B, T, num_features, num_classes = 2, 8, 16, 4
    x = jax.random.normal(kx, (B, T, num_features), dtype=jnp.float32)

    params = init_params(kparam, num_classes, num_features)
    kparams = prepare_kernel_params(params, num_features)

    fwd = jax.jit(lambda xx: forward(xx, kparams, num_classes, num_features))
    out = fwd(x)
    jax.block_until_ready(out)
    assert out.shape == (B, num_classes), out.shape
    assert bool(jnp.all(jnp.isfinite(out)))
    print("KERNEL_OK")
</pallas_src>

<mosaic_0001>
module attributes {stable_mosaic.version = 11 : i64} {
  func.func @_cnn_inproj_kernel(%arg0: i32, %arg1: memref<16x16xbf16, #tpu.memory_space<vmem>>, %arg2: memref<16x256xbf16, #tpu.memory_space<vmem>>, %arg3: memref<1x256xf32, #tpu.memory_space<vmem>>, %arg4: memref<128x256xbf16, #tpu.memory_space<vmem>>, %arg5: memref<1x256xf32, #tpu.memory_space<vmem>>, %arg6: memref<128x512xbf16, #tpu.memory_space<vmem>>, %arg7: memref<1x512xf32, #tpu.memory_space<vmem>>, %arg8: memref<16x512xf32, #tpu.memory_space<vmem>>) attributes {dimension_semantics = [#tpu.dimension_semantics<parallel>], iteration_bounds = array<i64: 1>, scalar_prefetch = 0 : i64, scratch_operands = 0 : i64, tpu.core_type = #tpu.core_type<tc>, window_params = [{transform_indices = @transform_0, window_bounds = array<i64: 16, 16>}, {pipeline_mode = #tpu.pipeline_mode<synchronous>, transform_indices = @transform_1, window_bounds = array<i64: 16, 256>}, {pipeline_mode = #tpu.pipeline_mode<synchronous>, transform_indices = @transform_2, window_bounds = array<i64: 1, 256>}, {pipeline_mode = #tpu.pipeline_mode<synchronous>, transform_indices = @transform_3, window_bounds = array<i64: 128, 256>}, {pipeline_mode = #tpu.pipeline_mode<synchronous>, transform_indices = @transform_4, window_bounds = array<i64: 1, 256>}, {pipeline_mode = #tpu.pipeline_mode<synchronous>, transform_indices = @transform_5, window_bounds = array<i64: 128, 512>}, {pipeline_mode = #tpu.pipeline_mode<synchronous>, transform_indices = @transform_6, window_bounds = array<i64: 1, 512>}, {transform_indices = @transform_7, window_bounds = array<i64: 16, 512>}]} {
    %c0 = arith.constant 0 : index
    %c0_0 = arith.constant 0 : index
    %0 = vector.load %arg1[%c0, %c0_0] : memref<16x16xbf16, #tpu.memory_space<vmem>>, vector<16x16xbf16>
    %c0_1 = arith.constant 0 : index
    %c0_2 = arith.constant 0 : index
    %1 = vector.load %arg2[%c0_1, %c0_2] : memref<16x256xbf16, #tpu.memory_space<vmem>>, vector<16x256xbf16>
    %cst = arith.constant dense<0.000000e+00> : vector<16x256xf32>
    %2 = tpu.matmul %0, %1, %cst {dimension_numbers = #tpu.dot_dimension_numbers<[1], [0], [0], [1], [0, 0, 1, 1], [], []>} : vector<16x16xbf16>, vector<16x256xbf16>, vector<16x256xf32> -> vector<16x256xf32>
    %c0_3 = arith.constant 0 : index
    %c0_4 = arith.constant 0 : index
    %3 = vector.load %arg3[%c0_3, %c0_4] : memref<1x256xf32, #tpu.memory_space<vmem>>, vector<1x256xf32>
    %4 = vector.broadcast %3 : vector<1x256xf32> to vector<16x256xf32>
    %5 = arith.addf %2, %4 : vector<16x256xf32>
    %cst_5 = arith.constant 0.000000e+00 : f32
    %6 = vector.broadcast %cst_5 : f32 to vector<16x256xf32>
    %7 = arith.maximumf %5, %6 : vector<16x256xf32>
    %8 = vector.extract_strided_slice %7 {offsets = [0, 0], sizes = [16, 128], strides = [1, 1]} : vector<16x256xf32> to vector<16x128xf32>
    %9 = vector.extract_strided_slice %7 {offsets = [0, 128], sizes = [16, 128], strides = [1, 1]} : vector<16x256xf32> to vector<16x128xf32>
    %10 = arith.maximumf %8, %9 : vector<16x128xf32>
    %11 = arith.truncf %10 : vector<16x128xf32> to vector<16x128xbf16>
    %c0_6 = arith.constant 0 : index
    %c0_7 = arith.constant 0 : index
    %12 = vector.load %arg4[%c0_6, %c0_7] : memref<128x256xbf16, #tpu.memory_space<vmem>>, vector<128x256xbf16>
    %cst_8 = arith.constant dense<0.000000e+00> : vector<16x256xf32>
    %13 = tpu.matmul %11, %12, %cst_8 {dimension_numbers = #tpu.dot_dimension_numbers<[1], [0], [0], [1], [0, 0, 1, 1], [], []>} : vector<16x128xbf16>, vector<128x256xbf16>, vector<16x256xf32> -> vector<16x256xf32>
    %c0_9 = arith.constant 0 : index
    %c0_10 = arith.constant 0 : index
    %14 = vector.load %arg5[%c0_9, %c0_10] : memref<1x256xf32, #tpu.memory_space<vmem>>, vector<1x256xf32>
    %15 = vector.broadcast %14 : vector<1x256xf32> to vector<16x256xf32>
    %16 = arith.addf %13, %15 : vector<16x256xf32>
    %cst_11 = arith.constant 0.000000e+00 : f32
    %17 = vector.broadcast %cst_11 : f32 to vector<16x256xf32>
    %18 = arith.maximumf %16, %17 : vector<16x256xf32>
    %19 = vector.extract_strided_slice %18 {offsets = [0, 0], sizes = [16, 128], strides = [1, 1]} : vector<16x256xf32> to vector<16x128xf32>
    %20 = vector.extract_strided_slice %18 {offsets = [0, 128], sizes = [16, 128], strides = [1, 1]} : vector<16x256xf32> to vector<16x128xf32>
    %21 = arith.maximumf %19, %20 : vector<16x128xf32>
    %22 = arith.truncf %21 : vector<16x128xf32> to vector<16x128xbf16>
    %c0_12 = arith.constant 0 : index
    %c0_13 = arith.constant 0 : index
    %23 = vector.load %arg6[%c0_12, %c0_13] : memref<128x512xbf16, #tpu.memory_space<vmem>>, vector<128x512xbf16>
    %cst_14 = arith.constant dense<0.000000e+00> : vector<16x512xf32>
    %24 = tpu.matmul %22, %23, %cst_14 {dimension_numbers = #tpu.dot_dimension_numbers<[1], [0], [0], [1], [0, 0, 1, 1], [], []>} : vector<16x128xbf16>, vector<128x512xbf16>, vector<16x512xf32> -> vector<16x512xf32>
    %c0_15 = arith.constant 0 : index
    %c0_16 = arith.constant 0 : index
    %25 = vector.load %arg7[%c0_15, %c0_16] : memref<1x512xf32, #tpu.memory_space<vmem>>, vector<1x512xf32>
    %26 = vector.broadcast %25 : vector<1x512xf32> to vector<16x512xf32>
    %27 = arith.addf %24, %26 : vector<16x512xf32>
    %c0_17 = arith.constant 0 : index
    %c0_18 = arith.constant 0 : index
    %28 = vector.load %arg8[%c0_17, %c0_18] : memref<16x512xf32, #tpu.memory_space<vmem>>, vector<16x512xf32>
    tpu.vector_store %arg8[%c0_17, %c0_18], %27 {strides = array<i32>} : memref<16x512xf32, #tpu.memory_space<vmem>>, vector<16x512xf32>,
    return
  }
  func.func @transform_0(%arg0: i32) -> (i32, i32) {
    %c0_i32 = arith.constant 0 : i32
    %c0_i32_0 = arith.constant 0 : i32
    return %arg0, %c0_i32 : i32, i32
  }
  func.func @transform_1(%arg0: i32) -> (i32, i32) {
    %c0_i32 = arith.constant 0 : i32
    %c0_i32_0 = arith.constant 0 : i32
    %c0_i32_1 = arith.constant 0 : i32
    return %c0_i32, %c0_i32_0 : i32, i32
  }
  func.func @transform_2(%arg0: i32) -> (i32, i32) {
    %c0_i32 = arith.constant 0 : i32
    %c0_i32_0 = arith.constant 0 : i32
    %c0_i32_1 = arith.constant 0 : i32
    return %c0_i32, %c0_i32_0 : i32, i32
  }
  func.func @transform_3(%arg0: i32) -> (i32, i32) {
    %c0_i32 = arith.constant 0 : i32
    %c0_i32_0 = arith.constant 0 : i32
    %c0_i32_1 = arith.constant 0 : i32
    return %c0_i32, %c0_i32_0 : i32, i32
  }
  func.func @transform_4(%arg0: i32) -> (i32, i32) {
    %c0_i32 = arith.constant 0 : i32
    %c0_i32_0 = arith.constant 0 : i32
    %c0_i32_1 = arith.constant 0 : i32
    return %c0_i32, %c0_i32_0 : i32, i32
  }
  func.func @transform_5(%arg0: i32) -> (i32, i32) {
    %c0_i32 = arith.constant 0 : i32
    %c0_i32_0 = arith.constant 0 : i32
    %c0_i32_1 = arith.constant 0 : i32
    return %c0_i32, %c0_i32_0 : i32, i32
  }
  func.func @transform_6(%arg0: i32) -> (i32, i32) {
    %c0_i32 = arith.constant 0 : i32
    %c0_i32_0 = arith.constant 0 : i32
    %c0_i32_1 = arith.constant 0 : i32
    return %c0_i32, %c0_i32_0 : i32, i32
  }
  func.func @transform_7(%arg0: i32) -> (i32, i32) {
    %c0_i32 = arith.constant 0 : i32
    %c0_i32_0 = arith.constant 0 : i32
    return %arg0, %c0_i32 : i32, i32
  }
}

module attributes {stable_mosaic.version = 11 : i64} {
  func.func @_lstm_fc_kernel(%arg0: i32, %arg1: i32, %arg2: memref<8x2x512xf32, #tpu.memory_space<vmem>>, %arg3: memref<128x512xbf16, #tpu.memory_space<vmem>>, %arg4: memref<256x512xbf16, #tpu.memory_space<vmem>>, %arg5: memref<1x512xf32, #tpu.memory_space<vmem>>, %arg6: memref<128x4xbf16, #tpu.memory_space<vmem>>, %arg7: memref<1x4xf32, #tpu.memory_space<vmem>>, %arg8: memref<2x4xf32, #tpu.memory_space<vmem>>, %arg9: memref<2x128xf32, #tpu.memory_space<vmem>>, %arg10: memref<2x128xf32, #tpu.memory_space<vmem>>, %arg11: memref<2x128xf32, #tpu.memory_space<vmem>>, %arg12: memref<2x128xf32, #tpu.memory_space<vmem>>) attributes {dimension_semantics = [#tpu.dimension_semantics<parallel>, #tpu.dimension_semantics<arbitrary>], iteration_bounds = array<i64: 1, 1>, scalar_prefetch = 0 : i64, scratch_operands = 4 : i64, tpu.core_type = #tpu.core_type<tc>, window_params = [{transform_indices = @transform_0, window_bounds = array<i64: 8, 2, 512>}, {pipeline_mode = #tpu.pipeline_mode<synchronous>, transform_indices = @transform_1, window_bounds = array<i64: 128, 512>}, {pipeline_mode = #tpu.pipeline_mode<synchronous>, transform_indices = @transform_2, window_bounds = array<i64: 256, 512>}, {pipeline_mode = #tpu.pipeline_mode<synchronous>, transform_indices = @transform_3, window_bounds = array<i64: 1, 512>}, {pipeline_mode = #tpu.pipeline_mode<synchronous>, transform_indices = @transform_4, window_bounds = array<i64: 128, 4>}, {pipeline_mode = #tpu.pipeline_mode<synchronous>, transform_indices = @transform_5, window_bounds = array<i64: 1, 4>}, {transform_indices = @transform_6, window_bounds = array<i64: 2, 4>}]} {
    %c0_i32 = arith.constant 0 : i32
    %0 = arith.cmpi eq, %arg1, %c0_i32 : i32
    %1 = arith.extui %0 : i1 to i32
    %c0_i32_0 = arith.constant 0 : i32
    %2 = arith.cmpi ne, %1, %c0_i32_0 : i32
    scf.if %2 {
      %cst_72 = arith.constant 0.000000e+00 : f32
      %361 = vector.broadcast %cst_72 : f32 to vector<2x128xf32>
      %c0_73 = arith.constant 0 : index
      %c0_74 = arith.constant 0 : index
      %362 = vector.load %arg9[%c0_73, %c0_74] : memref<2x128xf32, #tpu.memory_space<vmem>>, vector<2x128xf32>
      tpu.vector_store %arg9[%c0_73, %c0_74], %361 {strides = array<i32>} : memref<2x128xf32, #tpu.memory_space<vmem>>, vector<2x128xf32>,
      %cst_75 = arith.constant 0.000000e+00 : f32
      %363 = vector.broadcast %cst_75 : f32 to vector<2x128xf32>
      %c0_76 = arith.constant 0 : index
      %c0_77 = arith.constant 0 : index
      %364 = vector.load %arg10[%c0_76, %c0_77] : memref<2x128xf32, #tpu.memory_space<vmem>>, vector<2x128xf32>
      tpu.vector_store %arg10[%c0_76, %c0_77], %363 {strides = array<i32>} : memref<2x128xf32, #tpu.memory_space<vmem>>, vector<2x128xf32>,
      %cst_78 = arith.constant 0.000000e+00 : f32
      %365 = vector.broadcast %cst_78 : f32 to vector<2x128xf32>
      %c0_79 = arith.constant 0 : index
      %c0_80 = arith.constant 0 : index
      %366 = vector.load %arg11[%c0_79, %c0_80] : memref<2x128xf32, #tpu.memory_space<vmem>>, vector<2x128xf32>
      tpu.vector_store %arg11[%c0_79, %c0_80], %365 {strides = array<i32>} : memref<2x128xf32, #tpu.memory_space<vmem>>, vector<2x128xf32>,
      %cst_81 = arith.constant 0.000000e+00 : f32
      %367 = vector.broadcast %cst_81 : f32 to vector<2x128xf32>
      %c0_82 = arith.constant 0 : index
      %c0_83 = arith.constant 0 : index
      %368 = vector.load %arg12[%c0_82, %c0_83] : memref<2x128xf32, #tpu.memory_space<vmem>>, vector<2x128xf32>
      tpu.vector_store %arg12[%c0_82, %c0_83], %367 {strides = array<i32>} : memref<2x128xf32, #tpu.memory_space<vmem>>, vector<2x128xf32>,
    } else {
    }
    %c0 = arith.constant 0 : index
    %c0_1 = arith.constant 0 : index
    %3 = vector.load %arg3[%c0, %c0_1] : memref<128x512xbf16, #tpu.memory_space<vmem>>, vector<128x512xbf16>
    %c0_2 = arith.constant 0 : index
    %c0_3 = arith.constant 0 : index
    %4 = vector.load %arg4[%c0_2, %c0_3] : memref<256x512xbf16, #tpu.memory_space<vmem>>, vector<256x512xbf16>
    %c0_4 = arith.constant 0 : index
    %c0_5 = arith.constant 0 : index
    %5 = vector.load %arg5[%c0_4, %c0_5] : memref<1x512xf32, #tpu.memory_space<vmem>>, vector<1x512xf32>
    %c0_6 = arith.constant 0 : index
    %c0_7 = arith.constant 0 : index
    %6 = vector.load %arg9[%c0_6, %c0_7] : memref<2x128xf32, #tpu.memory_space<vmem>>, vector<2x128xf32>
    %c0_8 = arith.constant 0 : index
    %c0_9 = arith.constant 0 : index
    %7 = vector.load %arg10[%c0_8, %c0_9] : memref<2x128xf32, #tpu.memory_space<vmem>>, vector<2x128xf32>
    %c0_10 = arith.constant 0 : index
    %c0_11 = arith.constant 0 : index
    %8 = vector.load %arg11[%c0_10, %c0_11] : memref<2x128xf32, #tpu.memory_space<vmem>>, vector<2x128xf32>
    %c0_12 = arith.constant 0 : index
    %c0_13 = arith.constant 0 : index
    %9 = vector.load %arg12[%c0_12, %c0_13] : memref<2x128xf32, #tpu.memory_space<vmem>>, vector<2x128xf32>
    %c0_i32_14 = arith.constant 0 : i32
    %10 = arith.index_cast %c0_i32_14 : i32 to index
    %c0_15 = arith.constant 0 : index
    %c0_16 = arith.constant 0 : index
    %11 = vector.load %arg2[%10, %c0_15, %c0_16] : memref<8x2x512xf32, #tpu.memory_space<vmem>>, vector<1x2x512xf32>
    %12 = vector.shape_cast %11 : vector<1x2x512xf32> to vector<2x512xf32>
    %13 = arith.truncf %6 : vector<2x128xf32> to vector<2x128xbf16>
    %cst = arith.constant dense<0.000000e+00> : vector<2x512xf32>
    %14 = tpu.matmul %13, %3, %cst {dimension_numbers = #tpu.dot_dimension_numbers<[1], [0], [0], [1], [0, 0, 1, 1], [], []>} : vector<2x128xbf16>, vector<128x512xbf16>, vector<2x512xf32> -> vector<2x512xf32>
    %15 = arith.addf %12, %14 : vector<2x512xf32>
    %16 = vector.extract_strided_slice %15 {offsets = [0, 0], sizes = [2, 384], strides = [1, 1]} : vector<2x512xf32> to vector<2x384xf32>
    %17 = arith.negf %16 : vector<2x384xf32>
    %18 = math.exp %17 : vector<2x384xf32>
    %cst_17 = arith.constant 1.000000e+00 : f32
    %19 = vector.broadcast %cst_17 : f32 to vector<2x384xf32>
    %20 = arith.addf %19, %18 : vector<2x384xf32>
    %21 = arith.divf %19, %20 : vector<2x384xf32>
    %22 = vector.extract_strided_slice %15 {offsets = [0, 384], sizes = [2, 128], strides = [1, 1]} : vector<2x512xf32> to vector<2x128xf32>
    %23 = math.tanh %22 : vector<2x128xf32>
    %24 = vector.extract_strided_slice %21 {offsets = [0, 0], sizes = [2, 128], strides = [1, 1]} : vector<2x384xf32> to vector<2x128xf32>
    %25 = vector.extract_strided_slice %21 {offsets = [0, 128], sizes = [2, 128], strides = [1, 1]} : vector<2x384xf32> to vector<2x128xf32>
    %26 = vector.extract_strided_slice %21 {offsets = [0, 256], sizes = [2, 128], strides = [1, 1]} : vector<2x384xf32> to vector<2x128xf32>
    %27 = arith.mulf %25, %7 : vector<2x128xf32>
    %28 = arith.mulf %24, %23 : vector<2x128xf32>
    %29 = arith.addf %27, %28 : vector<2x128xf32>
    %30 = math.tanh %29 : vector<2x128xf32>
    %31 = arith.mulf %26, %30 : vector<2x128xf32>
    %32 = tpu.concatenate %31, %8 in 1 : vector<2x128xf32>, vector<2x128xf32> -> vector<2x256xf32>
    %33 = arith.truncf %32 : vector<2x256xf32> to vector<2x256xbf16>
    %cst_18 = arith.constant dense<0.000000e+00> : vector<2x512xf32>
    %34 = tpu.matmul %33, %4, %cst_18 {dimension_numbers = #tpu.dot_dimension_numbers<[1], [0], [0], [1], [0, 0, 1, 1], [], []>} : vector<2x256xbf16>, vector<256x512xbf16>, vector<2x512xf32> -> vector<2x512xf32>
    %35 = vector.broadcast %5 : vector<1x512xf32> to vector<2x512xf32>
    %36 = arith.addf %34, %35 : vector<2x512xf32>
    %37 = vector.extract_strided_slice %36 {offsets = [0, 0], sizes = [2, 384], strides = [1, 1]} : vector<2x512xf32> to vector<2x384xf32>
    %38 = arith.negf %37 : vector<2x384xf32>
    %39 = math.exp %38 : vector<2x384xf32>
    %cst_19 = arith.constant 1.000000e+00 : f32
    %40 = vector.broadcast %cst_19 : f32 to vector<2x384xf32>
    %41 = arith.addf %40, %39 : vector<2x384xf32>
    %42 = arith.divf %40, %41 : vector<2x384xf32>
    %43 = vector.extract_strided_slice %36 {offsets = [0, 384], sizes = [2, 128], strides = [1, 1]} : vector<2x512xf32> to vector<2x128xf32>
    %44 = math.tanh %43 : vector<2x128xf32>
    %45 = vector.extract_strided_slice %42 {offsets = [0, 0], sizes = [2, 128], strides = [1, 1]} : vector<2x384xf32> to vector<2x128xf32>
    %46 = vector.extract_strided_slice %42 {offsets = [0, 128], sizes = [2, 128], strides = [1, 1]} : vector<2x384xf32> to vector<2x128xf32>
    %47 = vector.extract_strided_slice %42 {offsets = [0, 256], sizes = [2, 128], strides = [1, 1]} : vector<2x384xf32> to vector<2x128xf32>
    %48 = arith.mulf %46, %9 : vector<2x128xf32>
    %49 = arith.mulf %45, %44 : vector<2x128xf32>
    %50 = arith.addf %48, %49 : vector<2x128xf32>
    %51 = math.tanh %50 : vector<2x128xf32>
    %52 = arith.mulf %47, %51 : vector<2x128xf32>
    %c1_i32 = arith.constant 1 : i32
    %53 = arith.index_cast %c1_i32 : i32 to index
    %c0_20 = arith.constant 0 : index
    %c0_21 = arith.constant 0 : index
    %54 = vector.load %arg2[%53, %c0_20, %c0_21] : memref<8x2x512xf32, #tpu.memory_space<vmem>>, vector<1x2x512xf32>
    %55 = vector.shape_cast %54 : vector<1x2x512xf32> to vector<2x512xf32>
    %56 = arith.truncf %31 : vector<2x128xf32> to vector<2x128xbf16>
    %cst_22 = arith.constant dense<0.000000e+00> : vector<2x512xf32>
    %57 = tpu.matmul %56, %3, %cst_22 {dimension_numbers = #tpu.dot_dimension_numbers<[1], [0], [0], [1], [0, 0, 1, 1], [], []>} : vector<2x128xbf16>, vector<128x512xbf16>, vector<2x512xf32> -> vector<2x512xf32>
    %58 = arith.addf %55, %57 : vector<2x512xf32>
    %59 = vector.extract_strided_slice %58 {offsets = [0, 0], sizes = [2, 384], strides = [1, 1]} : vector<2x512xf32> to vector<2x384xf32>
    %60 = arith.negf %59 : vector<2x384xf32>
    %61 = math.exp %60 : vector<2x384xf32>
    %cst_23 = arith.constant 1.000000e+00 : f32
    %62 = vector.broadcast %cst_23 : f32 to vector<2x384xf32>
    %63 = arith.addf %62, %61 : vector<2x384xf32>
    %64 = arith.divf %62, %63 : vector<2x384xf32>
    %65 = vector.extract_strided_slice %58 {offsets = [0, 384], sizes = [2, 128], strides = [1, 1]} : vector<2x512xf32> to vector<2x128xf32>
    %66 = math.tanh %65 : vector<2x128xf32>
    %67 = vector.extract_strided_slice %64 {offsets = [0, 0], sizes = [2, 128], strides = [1, 1]} : vector<2x384xf32> to vector<2x128xf32>
    %68 = vector.extract_strided_slice %64 {offsets = [0, 128], sizes = [2, 128], strides = [1, 1]} : vector<2x384xf32> to vector<2x128xf32>
    %69 = vector.extract_strided_slice %64 {offsets = [0, 256], sizes = [2, 128], strides = [1, 1]} : vector<2x384xf32> to vector<2x128xf32>
    %70 = arith.mulf %68, %29 : vector<2x128xf32>
    %71 = arith.mulf %67, %66 : vector<2x128xf32>
    %72 = arith.addf %70, %71 : vector<2x128xf32>
    %73 = math.tanh %72 : vector<2x128xf32>
    %74 = arith.mulf %69, %73 : vector<2x128xf32>
    %75 = tpu.concatenate %74, %52 in 1 : vector<2x128xf32>, vector<2x128xf32> -> vector<2x256xf32>
    %76 = arith.truncf %75 : vector<2x256xf32> to vector<2x256xbf16>
    %cst_24 = arith.constant dense<0.000000e+00> : vector<2x512xf32>
    %77 = tpu.matmul %76, %4, %cst_24 {dimension_numbers = #tpu.dot_dimension_numbers<[1], [0], [0], [1], [0, 0, 1, 1], [], []>} : vector<2x256xbf16>, vector<256x512xbf16>, vector<2x512xf32> -> vector<2x512xf32>
    %78 = vector.broadcast %5 : vector<1x512xf32> to vector<2x512xf32>
    %79 = arith.addf %77, %78 : vector<2x512xf32>
    %80 = vector.extract_strided_slice %79 {offsets = [0, 0], sizes = [2, 384], strides = [1, 1]} : vector<2x512xf32> to vector<2x384xf32>
    %81 = arith.negf %80 : vector<2x384xf32>
    %82 = math.exp %81 : vector<2x384xf32>
    %cst_25 = arith.constant 1.000000e+00 : f32
    %83 = vector.broadcast %cst_25 : f32 to vector<2x384xf32>
    %84 = arith.addf %83, %82 : vector<2x384xf32>
    %85 = arith.divf %83, %84 : vector<2x384xf32>
    %86 = vector.extract_strided_slice %79 {offsets = [0, 384], sizes = [2, 128], strides = [1, 1]} : vector<2x512xf32> to vector<2x128xf32>
    %87 = math.tanh %86 : vector<2x128xf32>
    %88 = vector.extract_strided_slice %85 {offsets = [0, 0], sizes = [2, 128], strides = [1, 1]} : vector<2x384xf32> to vector<2x128xf32>
    %89 = vector.extract_strided_slice %85 {offsets = [0, 128], sizes = [2, 128], strides = [1, 1]} : vector<2x384xf32> to vector<2x128xf32>
    %90 = vector.extract_strided_slice %85 {offsets = [0, 256], sizes = [2, 128], strides = [1, 1]} : vector<2x384xf32> to vector<2x128xf32>
    %91 = arith.mulf %89, %50 : vector<2x128xf32>
    %92 = arith.mulf %88, %87 : vector<2x128xf32>
    %93 = arith.addf %91, %92 : vector<2x128xf32>
    %94 = math.tanh %93 : vector<2x128xf32>
    %95 = arith.mulf %90, %94 : vector<2x128xf32>
    %c2_i32 = arith.constant 2 : i32
    %96 = arith.index_cast %c2_i32 : i32 to index
    %c0_26 = arith.constant 0 : index
    %c0_27 = arith.constant 0 : index
    %97 = vector.load %arg2[%96, %c0_26, %c0_27] : memref<8x2x512xf32, #tpu.memory_space<vmem>>, vector<1x2x512xf32>
    %98 = vector.shape_cast %97 : vector<1x2x512xf32> to vector<2x512xf32>
    %99 = arith.truncf %74 : vector<2x128xf32> to vector<2x128xbf16>
    %cst_28 = arith.constant dense<0.000000e+00> : vector<2x512xf32>
    %100 = tpu.matmul %99, %3, %cst_28 {dimension_numbers = #tpu.dot_dimension_numbers<[1], [0], [0], [1], [0, 0, 1, 1], [], []>} : vector<2x128xbf16>, vector<128x512xbf16>, vector<2x512xf32> -> vector<2x512xf32>
    %101 = arith.addf %98, %100 : vector<2x512xf32>
    %102 = vector.extract_strided_slice %101 {offsets = [0, 0], sizes = [2, 384], strides = [1, 1]} : vector<2x512xf32> to vector<2x384xf32>
    %103 = arith.negf %102 : vector<2x384xf32>
    %104 = math.exp %103 : vector<2x384xf32>
    %cst_29 = arith.constant 1.000000e+00 : f32
    %105 = vector.broadcast %cst_29 : f32 to vector<2x384xf32>
    %106 = arith.addf %105, %104 : vector<2x384xf32>
    %107 = arith.divf %105, %106 : vector<2x384xf32>
    %108 = vector.extract_strided_slice %101 {offsets = [0, 384], sizes = [2, 128], strides = [1, 1]} : vector<2x512xf32> to vector<2x128xf32>
    %109 = math.tanh %108 : vector<2x128xf32>
    %110 = vector.extract_strided_slice %107 {offsets = [0, 0], sizes = [2, 128], strides = [1, 1]} : vector<2x384xf32> to vector<2x128xf32>
    %111 = vector.extract_strided_slice %107 {offsets = [0, 128], sizes = [2, 128], strides = [1, 1]} : vector<2x384xf32> to vector<2x128xf32>
    %112 = vector.extract_strided_slice %107 {offsets = [0, 256], sizes = [2, 128], strides = [1, 1]} : vector<2x384xf32> to vector<2x128xf32>
    %113 = arith.mulf %111, %72 : vector<2x128xf32>
    %114 = arith.mulf %110, %109 : vector<2x128xf32>
    %115 = arith.addf %113, %114 : vector<2x128xf32>
    %116 = math.tanh %115 : vector<2x128xf32>
    %117 = arith.mulf %112, %116 : vector<2x128xf32>
    %118 = tpu.concatenate %117, %95 in 1 : vector<2x128xf32>, vector<2x128xf32> -> vector<2x256xf32>
    %119 = arith.truncf %118 : vector<2x256xf32> to vector<2x256xbf16>
    %cst_30 = arith.constant dense<0.000000e+00> : vector<2x512xf32>
    %120 = tpu.matmul %119, %4, %cst_30 {dimension_numbers = #tpu.dot_dimension_numbers<[1], [0], [0], [1], [0, 0, 1, 1], [], []>} : vector<2x256xbf16>, vector<256x512xbf16>, vector<2x512xf32> -> vector<2x512xf32>
    %121 = vector.broadcast %5 : vector<1x512xf32> to vector<2x512xf32>
    %122 = arith.addf %120, %121 : vector<2x512xf32>
    %123 = vector.extract_strided_slice %122 {offsets = [0, 0], sizes = [2, 384], strides = [1, 1]} : vector<2x512xf32> to vector<2x384xf32>
    %124 = arith.negf %123 : vector<2x384xf32>
    %125 = math.exp %124 : vector<2x384xf32>
    %cst_31 = arith.constant 1.000000e+00 : f32
    %126 = vector.broadcast %cst_31 : f32 to vector<2x384xf32>
    %127 = arith.addf %126, %125 : vector<2x384xf32>
    %128 = arith.divf %126, %127 : vector<2x384xf32>
    %129 = vector.extract_strided_slice %122 {offsets = [0, 384], sizes = [2, 128], strides = [1, 1]} : vector<2x512xf32> to vector<2x128xf32>
    %130 = math.tanh %129 : vector<2x128xf32>
    %131 = vector.extract_strided_slice %128 {offsets = [0, 0], sizes = [2, 128], strides = [1, 1]} : vector<2x384xf32> to vector<2x128xf32>
    %132 = vector.extract_strided_slice %128 {offsets = [0, 128], sizes = [2, 128], strides = [1, 1]} : vector<2x384xf32> to vector<2x128xf32>
    %133 = vector.extract_strided_slice %128 {offsets = [0, 256], sizes = [2, 128], strides = [1, 1]} : vector<2x384xf32> to vector<2x128xf32>
    %134 = arith.mulf %132, %93 : vector<2x128xf32>
    %135 = arith.mulf %131, %130 : vector<2x128xf32>
    %136 = arith.addf %134, %135 : vector<2x128xf32>
    %137 = math.tanh %136 : vector<2x128xf32>
    %138 = arith.mulf %133, %137 : vector<2x128xf32>
    %c3_i32 = arith.constant 3 : i32
    %139 = arith.index_cast %c3_i32 : i32 to index
    %c0_32 = arith.constant 0 : index
    %c0_33 = arith.constant 0 : index
    %140 = vector.load %arg2[%139, %c0_32, %c0_33] : memref<8x2x512xf32, #tpu.memory_space<vmem>>, vector<1x2x512xf32>
    %141 = vector.shape_cast %140 : vector<1x2x512xf32> to vector<2x512xf32>
    %142 = arith.truncf %117 : vector<2x128xf32> to vector<2x128xbf16>
    %cst_34 = arith.constant dense<0.000000e+00> : vector<2x512xf32>
    %143 = tpu.matmul %142, %3, %cst_34 {dimension_numbers = #tpu.dot_dimension_numbers<[1], [0], [0], [1], [0, 0, 1, 1], [], []>} : vector<2x128xbf16>, vector<128x512xbf16>, vector<2x512xf32> -> vector<2x512xf32>
    %144 = arith.addf %141, %143 : vector<2x512xf32>
    %145 = vector.extract_strided_slice %144 {offsets = [0, 0], sizes = [2, 384], strides = [1, 1]} : vector<2x512xf32> to vector<2x384xf32>
    %146 = arith.negf %145 : vector<2x384xf32>
    %147 = math.exp %146 : vector<2x384xf32>
    %cst_35 = arith.constant 1.000000e+00 : f32
    %148 = vector.broadcast %cst_35 : f32 to vector<2x384xf32>
    %149 = arith.addf %148, %147 : vector<2x384xf32>
    %150 = arith.divf %148, %149 : vector<2x384xf32>
    %151 = vector.extract_strided_slice %144 {offsets = [0, 384], sizes = [2, 128], strides = [1, 1]} : vector<2x512xf32> to vector<2x128xf32>
    %152 = math.tanh %151 : vector<2x128xf32>
    %153 = vector.extract_strided_slice %150 {offsets = [0, 0], sizes = [2, 128], strides = [1, 1]} : vector<2x384xf32> to vector<2x128xf32>
    %154 = vector.extract_strided_slice %150 {offsets = [0, 128], sizes = [2, 128], strides = [1, 1]} : vector<2x384xf32> to vector<2x128xf32>
    %155 = vector.extract_strided_slice %150 {offsets = [0, 256], sizes = [2, 128], strides = [1, 1]} : vector<2x384xf32> to vector<2x128xf32>
    %156 = arith.mulf %154, %115 : vector<2x128xf32>
    %157 = arith.mulf %153, %152 : vector<2x128xf32>
    %158 = arith.addf %156, %157 : vector<2x128xf32>
    %159 = math.tanh %158 : vector<2x128xf32>
    %160 = arith.mulf %155, %159 : vector<2x128xf32>
    %161 = tpu.concatenate %160, %138 in 1 : vector<2x128xf32>, vector<2x128xf32> -> vector<2x256xf32>
    %162 = arith.truncf %161 : vector<2x256xf32> to vector<2x256xbf16>
    %cst_36 = arith.constant dense<0.000000e+00> : vector<2x512xf32>
    %163 = tpu.matmul %162, %4, %cst_36 {dimension_numbers = #tpu.dot_dimension_numbers<[1], [0], [0], [1], [0, 0, 1, 1], [], []>} : vector<2x256xbf16>, vector<256x512xbf16>, vector<2x512xf32> -> vector<2x512xf32>
    %164 = vector.broadcast %5 : vector<1x512xf32> to vector<2x512xf32>
    %165 = arith.addf %163, %164 : vector<2x512xf32>
    %166 = vector.extract_strided_slice %165 {offsets = [0, 0], sizes = [2, 384], strides = [1, 1]} : vector<2x512xf32> to vector<2x384xf32>
    %167 = arith.negf %166 : vector<2x384xf32>
    %168 = math.exp %167 : vector<2x384xf32>
    %cst_37 = arith.constant 1.000000e+00 : f32
    %169 = vector.broadcast %cst_37 : f32 to vector<2x384xf32>
    %170 = arith.addf %169, %168 : vector<2x384xf32>
    %171 = arith.divf %169, %170 : vector<2x384xf32>
    %172 = vector.extract_strided_slice %165 {offsets = [0, 384], sizes = [2, 128], strides = [1, 1]} : vector<2x512xf32> to vector<2x128xf32>
    %173 = math.tanh %172 : vector<2x128xf32>
    %174 = vector.extract_strided_slice %171 {offsets = [0, 0], sizes = [2, 128], strides = [1, 1]} : vector<2x384xf32> to vector<2x128xf32>
    %175 = vector.extract_strided_slice %171 {offsets = [0, 128], sizes = [2, 128], strides = [1, 1]} : vector<2x384xf32> to vector<2x128xf32>
    %176 = vector.extract_strided_slice %171 {offsets = [0, 256], sizes = [2, 128], strides = [1, 1]} : vector<2x384xf32> to vector<2x128xf32>
    %177 = arith.mulf %175, %136 : vector<2x128xf32>
    %178 = arith.mulf %174, %173 : vector<2x128xf32>
    %179 = arith.addf %177, %178 : vector<2x128xf32>
    %180 = math.tanh %179 : vector<2x128xf32>
    %181 = arith.mulf %176, %180 : vector<2x128xf32>
    %c4_i32 = arith.constant 4 : i32
    %182 = arith.index_cast %c4_i32 : i32 to index
    %c0_38 = arith.constant 0 : index
    %c0_39 = arith.constant 0 : index
    %183 = vector.load %arg2[%182, %c0_38, %c0_39] : memref<8x2x512xf32, #tpu.memory_space<vmem>>, vector<1x2x512xf32>
    %184 = vector.shape_cast %183 : vector<1x2x512xf32> to vector<2x512xf32>
    %185 = arith.truncf %160 : vector<2x128xf32> to vector<2x128xbf16>
    %cst_40 = arith.constant dense<0.000000e+00> : vector<2x512xf32>
    %186 = tpu.matmul %185, %3, %cst_40 {dimension_numbers = #tpu.dot_dimension_numbers<[1], [0], [0], [1], [0, 0, 1, 1], [], []>} : vector<2x128xbf16>, vector<128x512xbf16>, vector<2x512xf32> -> vector<2x512xf32>
    %187 = arith.addf %184, %186 : vector<2x512xf32>
    %188 = vector.extract_strided_slice %187 {offsets = [0, 0], sizes = [2, 384], strides = [1, 1]} : vector<2x512xf32> to vector<2x384xf32>
    %189 = arith.negf %188 : vector<2x384xf32>
    %190 = math.exp %189 : vector<2x384xf32>
    %cst_41 = arith.constant 1.000000e+00 : f32
    %191 = vector.broadcast %cst_41 : f32 to vector<2x384xf32>
    %192 = arith.addf %191, %190 : vector<2x384xf32>
    %193 = arith.divf %191, %192 : vector<2x384xf32>
    %194 = vector.extract_strided_slice %187 {offsets = [0, 384], sizes = [2, 128], strides = [1, 1]} : vector<2x512xf32> to vector<2x128xf32>
    %195 = math.tanh %194 : vector<2x128xf32>
    %196 = vector.extract_strided_slice %193 {offsets = [0, 0], sizes = [2, 128], strides = [1, 1]} : vector<2x384xf32> to vector<2x128xf32>
    %197 = vector.extract_strided_slice %193 {offsets = [0, 128], sizes = [2, 128], strides = [1, 1]} : vector<2x384xf32> to vector<2x128xf32>
    %198 = vector.extract_strided_slice %193 {offsets = [0, 256], sizes = [2, 128], strides = [1, 1]} : vector<2x384xf32> to vector<2x128xf32>
    %199 = arith.mulf %197, %158 : vector<2x128xf32>
    %200 = arith.mulf %196, %195 : vector<2x128xf32>
    %201 = arith.addf %199, %200 : vector<2x128xf32>
    %202 = math.tanh %201 : vector<2x128xf32>
    %203 = arith.mulf %198, %202 : vector<2x128xf32>
    %204 = tpu.concatenate %203, %181 in 1 : vector<2x128xf32>, vector<2x128xf32> -> vector<2x256xf32>
    %205 = arith.truncf %204 : vector<2x256xf32> to vector<2x256xbf16>
    %cst_42 = arith.constant dense<0.000000e+00> : vector<2x512xf32>
    %206 = tpu.matmul %205, %4, %cst_42 {dimension_numbers = #tpu.dot_dimension_numbers<[1], [0], [0], [1], [0, 0, 1, 1], [], []>} : vector<2x256xbf16>, vector<256x512xbf16>, vector<2x512xf32> -> vector<2x512xf32>
    %207 = vector.broadcast %5 : vector<1x512xf32> to vector<2x512xf32>
    %208 = arith.addf %206, %207 : vector<2x512xf32>
    %209 = vector.extract_strided_slice %208 {offsets = [0, 0], sizes = [2, 384], strides = [1, 1]} : vector<2x512xf32> to vector<2x384xf32>
    %210 = arith.negf %209 : vector<2x384xf32>
    %211 = math.exp %210 : vector<2x384xf32>
    %cst_43 = arith.constant 1.000000e+00 : f32
    %212 = vector.broadcast %cst_43 : f32 to vector<2x384xf32>
    %213 = arith.addf %212, %211 : vector<2x384xf32>
    %214 = arith.divf %212, %213 : vector<2x384xf32>
    %215 = vector.extract_strided_slice %208 {offsets = [0, 384], sizes = [2, 128], strides = [1, 1]} : vector<2x512xf32> to vector<2x128xf32>
    %216 = math.tanh %215 : vector<2x128xf32>
    %217 = vector.extract_strided_slice %214 {offsets = [0, 0], sizes = [2, 128], strides = [1, 1]} : vector<2x384xf32> to vector<2x128xf32>
    %218 = vector.extract_strided_slice %214 {offsets = [0, 128], sizes = [2, 128], strides = [1, 1]} : vector<2x384xf32> to vector<2x128xf32>
    %219 = vector.extract_strided_slice %214 {offsets = [0, 256], sizes = [2, 128], strides = [1, 1]} : vector<2x384xf32> to vector<2x128xf32>
    %220 = arith.mulf %218, %179 : vector<2x128xf32>
    %221 = arith.mulf %217, %216 : vector<2x128xf32>
    %222 = arith.addf %220, %221 : vector<2x128xf32>
    %223 = math.tanh %222 : vector<2x128xf32>
    %224 = arith.mulf %219, %223 : vector<2x128xf32>
    %c5_i32 = arith.constant 5 : i32
    %225 = arith.index_cast %c5_i32 : i32 to index
    %c0_44 = arith.constant 0 : index
    %c0_45 = arith.constant 0 : index
    %226 = vector.load %arg2[%225, %c0_44, %c0_45] : memref<8x2x512xf32, #tpu.memory_space<vmem>>, vector<1x2x512xf32>
    %227 = vector.shape_cast %226 : vector<1x2x512xf32> to vector<2x512xf32>
    %228 = arith.truncf %203 : vector<2x128xf32> to vector<2x128xbf16>
    %cst_46 = arith.constant dense<0.000000e+00> : vector<2x512xf32>
    %229 = tpu.matmul %228, %3, %cst_46 {dimension_numbers = #tpu.dot_dimension_numbers<[1], [0], [0], [1], [0, 0, 1, 1], [], []>} : vector<2x128xbf16>, vector<128x512xbf16>, vector<2x512xf32> -> vector<2x512xf32>
    %230 = arith.addf %227, %229 : vector<2x512xf32>
    %231 = vector.extract_strided_slice %230 {offsets = [0, 0], sizes = [2, 384], strides = [1, 1]} : vector<2x512xf32> to vector<2x384xf32>
    %232 = arith.negf %231 : vector<2x384xf32>
    %233 = math.exp %232 : vector<2x384xf32>
    %cst_47 = arith.constant 1.000000e+00 : f32
    %234 = vector.broadcast %cst_47 : f32 to vector<2x384xf32>
    %235 = arith.addf %234, %233 : vector<2x384xf32>
    %236 = arith.divf %234, %235 : vector<2x384xf32>
    %237 = vector.extract_strided_slice %230 {offsets = [0, 384], sizes = [2, 128], strides = [1, 1]} : vector<2x512xf32> to vector<2x128xf32>
    %238 = math.tanh %237 : vector<2x128xf32>
    %239 = vector.extract_strided_slice %236 {offsets = [0, 0], sizes = [2, 128], strides = [1, 1]} : vector<2x384xf32> to vector<2x128xf32>
    %240 = vector.extract_strided_slice %236 {offsets = [0, 128], sizes = [2, 128], strides = [1, 1]} : vector<2x384xf32> to vector<2x128xf32>
    %241 = vector.extract_strided_slice %236 {offsets = [0, 256], sizes = [2, 128], strides = [1, 1]} : vector<2x384xf32> to vector<2x128xf32>
    %242 = arith.mulf %240, %201 : vector<2x128xf32>
    %243 = arith.mulf %239, %238 : vector<2x128xf32>
    %244 = arith.addf %242, %243 : vector<2x128xf32>
    %245 = math.tanh %244 : vector<2x128xf32>
    %246 = arith.mulf %241, %245 : vector<2x128xf32>
    %247 = tpu.concatenate %246, %224 in 1 : vector<2x128xf32>, vector<2x128xf32> -> vector<2x256xf32>
    %248 = arith.truncf %247 : vector<2x256xf32> to vector<2x256xbf16>
    %cst_48 = arith.constant dense<0.000000e+00> : vector<2x512xf32>
    %249 = tpu.matmul %248, %4, %cst_48 {dimension_numbers = #tpu.dot_dimension_numbers<[1], [0], [0], [1], [0, 0, 1, 1], [], []>} : vector<2x256xbf16>, vector<256x512xbf16>, vector<2x512xf32> -> vector<2x512xf32>
    %250 = vector.broadcast %5 : vector<1x512xf32> to vector<2x512xf32>
    %251 = arith.addf %249, %250 : vector<2x512xf32>
    %252 = vector.extract_strided_slice %251 {offsets = [0, 0], sizes = [2, 384], strides = [1, 1]} : vector<2x512xf32> to vector<2x384xf32>
    %253 = arith.negf %252 : vector<2x384xf32>
    %254 = math.exp %253 : vector<2x384xf32>
    %cst_49 = arith.constant 1.000000e+00 : f32
    %255 = vector.broadcast %cst_49 : f32 to vector<2x384xf32>
    %256 = arith.addf %255, %254 : vector<2x384xf32>
    %257 = arith.divf %255, %256 : vector<2x384xf32>
    %258 = vector.extract_strided_slice %251 {offsets = [0, 384], sizes = [2, 128], strides = [1, 1]} : vector<2x512xf32> to vector<2x128xf32>
    %259 = math.tanh %258 : vector<2x128xf32>
    %260 = vector.extract_strided_slice %257 {offsets = [0, 0], sizes = [2, 128], strides = [1, 1]} : vector<2x384xf32> to vector<2x128xf32>
    %261 = vector.extract_strided_slice %257 {offsets = [0, 128], sizes = [2, 128], strides = [1, 1]} : vector<2x384xf32> to vector<2x128xf32>
    %262 = vector.extract_strided_slice %257 {offsets = [0, 256], sizes = [2, 128], strides = [1, 1]} : vector<2x384xf32> to vector<2x128xf32>
    %263 = arith.mulf %261, %222 : vector<2x128xf32>
    %264 = arith.mulf %260, %259 : vector<2x128xf32>
    %265 = arith.addf %263, %264 : vector<2x128xf32>
    %266 = math.tanh %265 : vector<2x128xf32>
    %267 = arith.mulf %262, %266 : vector<2x128xf32>
    %c6_i32 = arith.constant 6 : i32
    %268 = arith.index_cast %c6_i32 : i32 to index
    %c0_50 = arith.constant 0 : index
    %c0_51 = arith.constant 0 : index
    %269 = vector.load %arg2[%268, %c0_50, %c0_51] : memref<8x2x512xf32, #tpu.memory_space<vmem>>, vector<1x2x512xf32>
    %270 = vector.shape_cast %269 : vector<1x2x512xf32> to vector<2x512xf32>
    %271 = arith.truncf %246 : vector<2x128xf32> to vector<2x128xbf16>
    %cst_52 = arith.constant dense<0.000000e+00> : vector<2x512xf32>
    %272 = tpu.matmul %271, %3, %cst_52 {dimension_numbers = #tpu.dot_dimension_numbers<[1], [0], [0], [1], [0, 0, 1, 1], [], []>} : vector<2x128xbf16>, vector<128x512xbf16>, vector<2x512xf32> -> vector<2x512xf32>
    %273 = arith.addf %270, %272 : vector<2x512xf32>
    %274 = vector.extract_strided_slice %273 {offsets = [0, 0], sizes = [2, 384], strides = [1, 1]} : vector<2x512xf32> to vector<2x384xf32>
    %275 = arith.negf %274 : vector<2x384xf32>
    %276 = math.exp %275 : vector<2x384xf32>
    %cst_53 = arith.constant 1.000000e+00 : f32
    %277 = vector.broadcast %cst_53 : f32 to vector<2x384xf32>
    %278 = arith.addf %277, %276 : vector<2x384xf32>
    %279 = arith.divf %277, %278 : vector<2x384xf32>
    %280 = vector.extract_strided_slice %273 {offsets = [0, 384], sizes = [2, 128], strides = [1, 1]} : vector<2x512xf32> to vector<2x128xf32>
    %281 = math.tanh %280 : vector<2x128xf32>
    %282 = vector.extract_strided_slice %279 {offsets = [0, 0], sizes = [2, 128], strides = [1, 1]} : vector<2x384xf32> to vector<2x128xf32>
    %283 = vector.extract_strided_slice %279 {offsets = [0, 128], sizes = [2, 128], strides = [1, 1]} : vector<2x384xf32> to vector<2x128xf32>
    %284 = vector.extract_strided_slice %279 {offsets = [0, 256], sizes = [2, 128], strides = [1, 1]} : vector<2x384xf32> to vector<2x128xf32>
    %285 = arith.mulf %283, %244 : vector<2x128xf32>
    %286 = arith.mulf %282, %281 : vector<2x128xf32>
    %287 = arith.addf %285, %286 : vector<2x128xf32>
    %288 = math.tanh %287 : vector<2x128xf32>
    %289 = arith.mulf %284, %288 : vector<2x128xf32>
    %290 = tpu.concatenate %289, %267 in 1 : vector<2x128xf32>, vector<2x128xf32> -> vector<2x256xf32>
    %291 = arith.truncf %290 : vector<2x256xf32> to vector<2x256xbf16>
    %cst_54 = arith.constant dense<0.000000e+00> : vector<2x512xf32>
    %292 = tpu.matmul %291, %4, %cst_54 {dimension_numbers = #tpu.dot_dimension_numbers<[1], [0], [0], [1], [0, 0, 1, 1], [], []>} : vector<2x256xbf16>, vector<256x512xbf16>, vector<2x512xf32> -> vector<2x512xf32>
    %293 = vector.broadcast %5 : vector<1x512xf32> to vector<2x512xf32>
    %294 = arith.addf %292, %293 : vector<2x512xf32>
    %295 = vector.extract_strided_slice %294 {offsets = [0, 0], sizes = [2, 384], strides = [1, 1]} : vector<2x512xf32> to vector<2x384xf32>
    %296 = arith.negf %295 : vector<2x384xf32>
    %297 = math.exp %296 : vector<2x384xf32>
    %cst_55 = arith.constant 1.000000e+00 : f32
    %298 = vector.broadcast %cst_55 : f32 to vector<2x384xf32>
    %299 = arith.addf %298, %297 : vector<2x384xf32>
    %300 = arith.divf %298, %299 : vector<2x384xf32>
    %301 = vector.extract_strided_slice %294 {offsets = [0, 384], sizes = [2, 128], strides = [1, 1]} : vector<2x512xf32> to vector<2x128xf32>
    %302 = math.tanh %301 : vector<2x128xf32>
    %303 = vector.extract_strided_slice %300 {offsets = [0, 0], sizes = [2, 128], strides = [1, 1]} : vector<2x384xf32> to vector<2x128xf32>
    %304 = vector.extract_strided_slice %300 {offsets = [0, 128], sizes = [2, 128], strides = [1, 1]} : vector<2x384xf32> to vector<2x128xf32>
    %305 = vector.extract_strided_slice %300 {offsets = [0, 256], sizes = [2, 128], strides = [1, 1]} : vector<2x384xf32> to vector<2x128xf32>
    %306 = arith.mulf %304, %265 : vector<2x128xf32>
    %307 = arith.mulf %303, %302 : vector<2x128xf32>
    %308 = arith.addf %306, %307 : vector<2x128xf32>
    %309 = math.tanh %308 : vector<2x128xf32>
    %310 = arith.mulf %305, %309 : vector<2x128xf32>
    %c7_i32 = arith.constant 7 : i32
    %311 = arith.index_cast %c7_i32 : i32 to index
    %c0_56 = arith.constant 0 : index
    %c0_57 = arith.constant 0 : index
    %312 = vector.load %arg2[%311, %c0_56, %c0_57] : memref<8x2x512xf32, #tpu.memory_space<vmem>>, vector<1x2x512xf32>
    %313 = vector.shape_cast %312 : vector<1x2x512xf32> to vector<2x512xf32>
    %314 = arith.truncf %289 : vector<2x128xf32> to vector<2x128xbf16>
    %cst_58 = arith.constant dense<0.000000e+00> : vector<2x512xf32>
    %315 = tpu.matmul %314, %3, %cst_58 {dimension_numbers = #tpu.dot_dimension_numbers<[1], [0], [0], [1], [0, 0, 1, 1], [], []>} : vector<2x128xbf16>, vector<128x512xbf16>, vector<2x512xf32> -> vector<2x512xf32>
    %316 = arith.addf %313, %315 : vector<2x512xf32>
    %317 = vector.extract_strided_slice %316 {offsets = [0, 0], sizes = [2, 384], strides = [1, 1]} : vector<2x512xf32> to vector<2x384xf32>
    %318 = arith.negf %317 : vector<2x384xf32>
    %319 = math.exp %318 : vector<2x384xf32>
    %cst_59 = arith.constant 1.000000e+00 : f32
    %320 = vector.broadcast %cst_59 : f32 to vector<2x384xf32>
    %321 = arith.addf %320, %319 : vector<2x384xf32>
    %322 = arith.divf %320, %321 : vector<2x384xf32>
    %323 = vector.extract_strided_slice %316 {offsets = [0, 384], sizes = [2, 128], strides = [1, 1]} : vector<2x512xf32> to vector<2x128xf32>
    %324 = math.tanh %323 : vector<2x128xf32>
    %325 = vector.extract_strided_slice %322 {offsets = [0, 0], sizes = [2, 128], strides = [1, 1]} : vector<2x384xf32> to vector<2x128xf32>
    %326 = vector.extract_strided_slice %322 {offsets = [0, 128], sizes = [2, 128], strides = [1, 1]} : vector<2x384xf32> to vector<2x128xf32>
    %327 = vector.extract_strided_slice %322 {offsets = [0, 256], sizes = [2, 128], strides = [1, 1]} : vector<2x384xf32> to vector<2x128xf32>
    %328 = arith.mulf %326, %287 : vector<2x128xf32>
    %329 = arith.mulf %325, %324 : vector<2x128xf32>
    %330 = arith.addf %328, %329 : vector<2x128xf32>
    %331 = math.tanh %330 : vector<2x128xf32>
    %332 = arith.mulf %327, %331 : vector<2x128xf32>
    %333 = tpu.concatenate %332, %310 in 1 : vector<2x128xf32>, vector<2x128xf32> -> vector<2x256xf32>
    %334 = arith.truncf %333 : vector<2x256xf32> to vector<2x256xbf16>
    %cst_60 = arith.constant dense<0.000000e+00> : vector<2x512xf32>
    %335 = tpu.matmul %334, %4, %cst_60 {dimension_numbers = #tpu.dot_dimension_numbers<[1], [0], [0], [1], [0, 0, 1, 1], [], []>} : vector<2x256xbf16>, vector<256x512xbf16>, vector<2x512xf32> -> vector<2x512xf32>
    %336 = vector.broadcast %5 : vector<1x512xf32> to vector<2x512xf32>
    %337 = arith.addf %335, %336 : vector<2x512xf32>
    %338 = vector.extract_strided_slice %337 {offsets = [0, 0], sizes = [2, 384], strides = [1, 1]} : vector<2x512xf32> to vector<2x384xf32>
    %339 = arith.negf %338 : vector<2x384xf32>
    %340 = math.exp %339 : vector<2x384xf32>
    %cst_61 = arith.constant 1.000000e+00 : f32
    %341 = vector.broadcast %cst_61 : f32 to vector<2x384xf32>
    %342 = arith.addf %341, %340 : vector<2x384xf32>
    %343 = arith.divf %341, %342 : vector<2x384xf32>
    %344 = vector.extract_strided_slice %337 {offsets = [0, 384], sizes = [2, 128], strides = [1, 1]} : vector<2x512xf32> to vector<2x128xf32>
    %345 = math.tanh %344 : vector<2x128xf32>
    %346 = vector.extract_strided_slice %343 {offsets = [0, 0], sizes = [2, 128], strides = [1, 1]} : vector<2x384xf32> to vector<2x128xf32>
    %347 = vector.extract_strided_slice %343 {offsets = [0, 128], sizes = [2, 128], strides = [1, 1]} : vector<2x384xf32> to vector<2x128xf32>
    %348 = vector.extract_strided_slice %343 {offsets = [0, 256], sizes = [2, 128], strides = [1, 1]} : vector<2x384xf32> to vector<2x128xf32>
    %349 = arith.mulf %347, %308 : vector<2x128xf32>
    %350 = arith.mulf %346, %345 : vector<2x128xf32>
    %351 = arith.addf %349, %350 : vector<2x128xf32>
    %352 = math.tanh %351 : vector<2x128xf32>
    %353 = arith.mulf %348, %352 : vector<2x128xf32>
    %c8_i32 = arith.constant 8 : i32
    %c0_62 = arith.constant 0 : index
    %c0_63 = arith.constant 0 : index
    %354 = vector.load %arg9[%c0_62, %c0_63] : memref<2x128xf32, #tpu.memory_space<vmem>>, vector<2x128xf32>
    tpu.vector_store %arg9[%c0_62, %c0_63], %332 {strides = array<i32>} : memref<2x128xf32, #tpu.memory_space<vmem>>, vector<2x128xf32>,
    %c0_64 = arith.constant 0 : index
    %c0_65 = arith.constant 0 : index
    %355 = vector.load %arg10[%c0_64, %c0_65] : memref<2x128xf32, #tpu.memory_space<vmem>>, vector<2x128xf32>
    tpu.vector_store %arg10[%c0_64, %c0_65], %330 {strides = array<i32>} : memref<2x128xf32, #tpu.memory_space<vmem>>, vector<2x128xf32>,
    %c0_66 = arith.constant 0 : index
    %c0_67 = arith.constant 0 : index
    %356 = vector.load %arg11[%c0_66, %c0_67] : memref<2x128xf32, #tpu.memory_space<vmem>>, vector<2x128xf32>
    tpu.vector_store %arg11[%c0_66, %c0_67], %353 {strides = array<i32>} : memref<2x128xf32, #tpu.memory_space<vmem>>, vector<2x128xf32>,
    %c0_68 = arith.constant 0 : index
    %c0_69 = arith.constant 0 : index
    %357 = vector.load %arg12[%c0_68, %c0_69] : memref<2x128xf32, #tpu.memory_space<vmem>>, vector<2x128xf32>
    tpu.vector_store %arg12[%c0_68, %c0_69], %351 {strides = array<i32>} : memref<2x128xf32, #tpu.memory_space<vmem>>, vector<2x128xf32>,
    %c0_i32_70 = arith.constant 0 : i32
    %358 = arith.cmpi eq, %arg1, %c0_i32_70 : i32
    %359 = arith.extui %358 : i1 to i32
    %c0_i32_71 = arith.constant 0 : i32
    %360 = arith.cmpi ne, %359, %c0_i32_71 : i32
    scf.if %360 {
      %361 = arith.truncf %353 : vector<2x128xf32> to vector<2x128xbf16>
      %c0_72 = arith.constant 0 : index
      %c0_73 = arith.constant 0 : index
      %362 = vector.load %arg6[%c0_72, %c0_73] : memref<128x4xbf16, #tpu.memory_space<vmem>>, vector<128x4xbf16>
      %cst_74 = arith.constant dense<0.000000e+00> : vector<2x4xf32>
      %363 = tpu.matmul %361, %362, %cst_74 {dimension_numbers = #tpu.dot_dimension_numbers<[1], [0], [0], [1], [0, 0, 1, 1], [], []>} : vector<2x128xbf16>, vector<128x4xbf16>, vector<2x4xf32> -> vector<2x4xf32>
      %c0_75 = arith.constant 0 : index
      %c0_76 = arith.constant 0 : index
      %364 = vector.load %arg7[%c0_75, %c0_76] : memref<1x4xf32, #tpu.memory_space<vmem>>, vector<1x4xf32>
      %365 = vector.broadcast %364 : vector<1x4xf32> to vector<2x4xf32>
      %366 = arith.addf %363, %365 : vector<2x4xf32>
      %c0_77 = arith.constant 0 : index
      %c0_78 = arith.constant 0 : index
      %367 = vector.load %arg8[%c0_77, %c0_78] : memref<2x4xf32, #tpu.memory_space<vmem>>, vector<2x4xf32>
      tpu.vector_store %arg8[%c0_77, %c0_78], %366 {strides = array<i32>} : memref<2x4xf32, #tpu.memory_space<vmem>>, vector<2x4xf32>,
    } else {
    }
    return
  }
  func.func @transform_0(%arg0: i32, %arg1: i32) -> (i32, i32, i32) {
    %c0_i32 = arith.constant 0 : i32
    %c0_i32_0 = arith.constant 0 : i32
    return %arg1, %arg0, %c0_i32 : i32, i32, i32
  }
  func.func @transform_1(%arg0: i32, %arg1: i32) -> (i32, i32) {
    %c0_i32 = arith.constant 0 : i32
    %c0_i32_0 = arith.constant 0 : i32
    %c0_i32_1 = arith.constant 0 : i32
    return %c0_i32, %c0_i32_0 : i32, i32
  }
  func.func @transform_2(%arg0: i32, %arg1: i32) -> (i32, i32) {
    %c0_i32 = arith.constant 0 : i32
    %c0_i32_0 = arith.constant 0 : i32
    %c0_i32_1 = arith.constant 0 : i32
    return %c0_i32, %c0_i32_0 : i32, i32
  }
  func.func @transform_3(%arg0: i32, %arg1: i32) -> (i32, i32) {
    %c0_i32 = arith.constant 0 : i32
    %c0_i32_0 = arith.constant 0 : i32
    %c0_i32_1 = arith.constant 0 : i32
    return %c0_i32, %c0_i32_0 : i32, i32
  }
  func.func @transform_4(%arg0: i32, %arg1: i32) -> (i32, i32) {
    %c0_i32 = arith.constant 0 : i32
    %c0_i32_0 = arith.constant 0 : i32
    %c0_i32_1 = arith.constant 0 : i32
    return %c0_i32, %c0_i32_0 : i32, i32
  }
  func.func @transform_5(%arg0: i32, %arg1: i32) -> (i32, i32) {
    %c0_i32 = arith.constant 0 : i32
    %c0_i32_0 = arith.constant 0 : i32
    %c0_i32_1 = arith.constant 0 : i32
    return %c0_i32, %c0_i32_0 : i32, i32
  }
  func.func @transform_6(%arg0: i32, %arg1: i32) -> (i32, i32) {
    %c0_i32 = arith.constant 0 : i32
    %c0_i32_0 = arith.constant 0 : i32
    return %arg0, %c0_i32 : i32, i32
  }
}

</mosaic_0001>

<llo_original>
// kernel: _lambda_.2
$region0: #{_lambda_.2}
  #allocation0 [shape = 'u32[]', space=smem, size = 0x4, offset = 0x4, fixed_abs, tag = 'smem constant byte address 0x4 - core index']
  #allocation1 [shape = 'u32[144,128]{1,0:T(1,128)}', space=vmem, size = 0x12000, scoped, tag = 'internal scratch']
  %s0 = inlined_call_operand.vmem [shape: bf16[16,16], index: 0, kind: input, shape index: {}]
  %s1 = inlined_call_operand.vmem [shape: bf16[16,256], index: 1, kind: input, shape index: {}]
  %s2 = inlined_call_operand.vmem [shape: f32[1,256], index: 2, kind: input, shape index: {}]
  %s3 = inlined_call_operand.vmem [shape: bf16[128,256], index: 3, kind: input, shape index: {}]
  %s4 = inlined_call_operand.vmem [shape: f32[1,256], index: 4, kind: input, shape index: {}]
  %s5 = inlined_call_operand.vmem [shape: bf16[128,512], index: 5, kind: input, shape index: {}]
  %s6 = inlined_call_operand.vmem [shape: f32[1,512], index: 6, kind: input, shape index: {}]
  %s7 = inlined_call_operand.vmem [shape: f32[16,512], index: 7, kind: output, shape index: {}]
  %s8 = sld [smem:[#allocation0]]
  $region38: #{_lambda_.2} parent=0
    _
  %s10 = ssub.s32 1, %s8
  %s11 = scalar_select 0, %s10, %s8
  // Predicated region
  $region2: #{_lambda_.2} parent=0 // pred_check
    _
  $region3: #{_lambda_.2} parent=0 // pred_check_branch
    %13 = sbr.rel (0) target = $region5
  $region4: #{_lambda_.2} parent=0 // pred_region
    _
  $region5: #{_lambda_.2} parent=0 // pred_fallthru
    _
  // Predicated region
  $region6: #{_lambda_.2} parent=0 // pred_check
    _
  $region7: #{_lambda_.2} parent=0 // pred_check_branch
    %15 = sbr.rel (0) target = $region9
  $region8: #{_lambda_.2} parent=0 // pred_region
    _
  $region9: #{_lambda_.2} parent=0 // pred_fallthru
    _
  // Predicated region
  $region10: #{_lambda_.2} parent=0 // pred_check
    _
  $region11: #{_lambda_.2} parent=0 // pred_check_branch
    %17 = sbr.rel (0) target = $region13
  $region12: #{_lambda_.2} parent=0 // pred_region
    _
  $region13: #{_lambda_.2} parent=0 // pred_fallthru
    _
  // Predicated region
  $region14: #{_lambda_.2} parent=0 // pred_check
    _
  $region15: #{_lambda_.2} parent=0 // pred_check_branch
    %19 = sbr.rel (0) target = $region17
  $region16: #{_lambda_.2} parent=0 // pred_region
    _
  $region17: #{_lambda_.2} parent=0 // pred_fallthru
    _
  // Predicated region
  $region18: #{_lambda_.2} parent=0 // pred_check
    _
  $region19: #{_lambda_.2} parent=0 // pred_check_branch
    %21 = sbr.rel (0) target = $region21
  $region20: #{_lambda_.2} parent=0 // pred_region
    _
  $region21: #{_lambda_.2} parent=0 // pred_fallthru
    _
  // Predicated region
  $region22: #{_lambda_.2} parent=0 // pred_check
    _
  $region23: #{_lambda_.2} parent=0 // pred_check_branch
    %23 = sbr.rel (0) target = $region25
  $region24: #{_lambda_.2} parent=0 // pred_region
    _
  $region25: #{_lambda_.2} parent=0 // pred_fallthru
    _
  // Predicated region
  $region26: #{_lambda_.2} parent=0 // pred_check
    _
  $region27: #{_lambda_.2} parent=0 // pred_check_branch
    %25 = sbr.rel (0) target = $region29
  $region28: #{_lambda_.2} parent=0 // pred_region
    _
  $region29: #{_lambda_.2} parent=0 // pred_fallthru
    _
  %v27 = vld [vmem:[%s0] sm:$0xf]
  %v28 = vld [vmem:[%s0 + $0x4] sm:$0xf]
  %v29 = vld [vmem:[%s1] sm:$0xff]
  %v30 = vld [vmem:[%s1 + $0x8] sm:$0xff]
  %v31 = vld [vmem:[%s2] sm:$0x3]
  %v33 = vlaneseq
  %v34 = vshrl.u32 %v33, 7
  %v35 = vsub.s32 0, %v34
  %v36 = vrot.slane %v31, %v35
  %v37 = vlaneseq
  %v38 = vshrl.u32 %v37, 7
  %v39 = vsub.s32 1, %v38
  %v40 = vrot.slane %v31, %v39
  %v45 = vunpack.c.l.b16 %v27
  %v46 = vunpack.c.l.b16 %v28
  %v47 = vpack.c.b16 %v46, %v45
  %v50 = vunpack.c.l.b16 %v29
  %v51 = vunpack.c.h.b16 %v29
  %v52 = vunpack.c.l.b16 %v30
  %v53 = vunpack.c.h.b16 %v30
  %v54 = vpack.c.b16 %v52, %v50
  %v55 = vpack.c.b16 %v53, %v51
  %vm58 = vcmask 130048
  %v60 = vsel %vm58, %v47, 0
  %62 = vmatprep.subr.bf16.mxu0 %v55
  %63 = vmatpush1.bf16.msra.mxu0 %v54
  %64 = vmatprep.subr.bf16.mxu0 0
  %65 = vmatpush1.bf16.msra.mxu0 0
  %66 = vmatprep.subr.bf16.mxu0 0
  %67 = vmatpush1.bf16.msra.mxu0 0
  %68 = vmatprep.subr.bf16.mxu0 0
  %69 = vmatpush1.bf16.msra.mxu0 0
  %70 = vmatprep.subr.bf16.mxu0 0
  %71 = vmatpush1.bf16.msra.mxu0 0
  %72 = vmatprep.subr.bf16.mxu0 0
  %73 = vmatpush1.bf16.msra.mxu0 0
  %74 = vmatprep.subr.bf16.mxu0 0
  %75 = vmatpush1.bf16.msra.mxu0 0
  %76 = vmatprep.subr.bf16.mxu0 0
  %77 = vmatpush1.bf16.msra.mxu0 0
  %78 = vmatprep.subr.bf16.mxu0 0
  %79 = vmatpush1.bf16.msra.mxu0 0
  %80 = vmatprep.subr.bf16.mxu0 0
  %81 = vmatpush1.bf16.msra.mxu0 0
  %82 = vmatprep.subr.bf16.mxu0 0
  %83 = vmatpush1.bf16.msra.mxu0 0
  %84 = vmatprep.subr.bf16.mxu0 0
  %85 = vmatpush1.bf16.msra.mxu0 0
  %86 = vmatprep.subr.bf16.mxu0 0
  %87 = vmatpush1.bf16.msra.mxu0 0
  %88 = vmatprep.subr.bf16.mxu0 0
  %89 = vmatpush1.bf16.msra.mxu0 0
  %90 = vmatprep.subr.bf16.mxu0 0
  %91 = vmatpush1.bf16.msra.mxu0 0
  %92 = vmatprep.subr.bf16.mxu0 0
  %93 = vmatpush1.bf16.msra.mxu0 0
  %94 = vmatprep.mubr.bf16.mxu0 0
  %95 = vmatmul.mubr.bf16.gmra.mrb[0].mxu0 %v60
  %v96 = vpop.f32.mrb[0].mxu0
  %v97 = vadd.f32 %v36, %v96
  %v98 = vpop.f32.mrb[0].mxu0
  %v99 = vadd.f32 %v40, %v98
  %v100 = vpop.f32.mrb[0].mxu0
  %v101 = vadd.f32 %v36, %v100
  %v102 = vpop.f32.mrb[0].mxu0
  %v103 = vadd.f32 %v40, %v102
  %104 = vdwg.mxu0
  %v105 = vmax.f32 %v97, 0.0
  %v106 = vmax.f32 %v99, 0.0
  %v107 = vmax.f32 %v101, 0.0
  %v108 = vmax.f32 %v103, 0.0
  %v109 = vmax.f32 %v105, %v106
  %v110 = vmax.f32 %v107, %v108
  %v111 = vpack.c.bf16 %v110, %v109
  %v112 = vld [vmem:[%s3] sm:$0xff]
  %v113 = vld [vmem:[%s3 + $0x8] sm:$0xff]
  %v114 = vld [vmem:[%s3 + $0x10] sm:$0xff]
  %v115 = vld [vmem:[%s3 + $0x18] sm:$0xff]
  %v116 = vld [vmem:[%s3 + $0x20] sm:$0xff]
  %v117 = vld [vmem:[%s3 + $0x28] sm:$0xff]
  %v118 = vld [vmem:[%s3 + $0x30] sm:$0xff]
  %v119 = vld [vmem:[%s3 + $0x38] sm:$0xff]
  %v120 = vld [vmem:[%s3 + $0x40] sm:$0xff]
  %v121 = vld [vmem:[%s3 + $0x48] sm:$0xff]
  %v122 = vld [vmem:[%s3 + $0x50] sm:$0xff]
  %v123 = vld [vmem:[%s3 + $0x58] sm:$0xff]
  %v124 = vld [vmem:[%s3 + $0x60] sm:$0xff]
  %v125 = vld [vmem:[%s3 + $0x68] sm:$0xff]
  %v126 = vld [vmem:[%s3 + $0x70] sm:$0xff]
  %v127 = vld [vmem:[%s3 + $0x78] sm:$0xff]
  %v128 = vld [vmem:[%s4] sm:$0x3]
  %v130 = vlaneseq
  %v131 = vshrl.u32 %v130, 7
  %v132 = vsub.s32 0, %v131
  %v133 = vrot.slane %v128, %v132
  %v134 = vlaneseq
  %v135 = vshrl.u32 %v134, 7
  %v136 = vsub.s32 1, %v135
  %v137 = vrot.slane %v128, %v136
  %v156 = vunpack.c.l.b16 %v112
  %v157 = vunpack.c.h.b16 %v112
  %v158 = vunpack.c.l.b16 %v113
  %v159 = vunpack.c.h.b16 %v113
  %v160 = vunpack.c.l.b16 %v114
  %v161 = vunpack.c.h.b16 %v114
  %v162 = vunpack.c.l.b16 %v115
  %v163 = vunpack.c.h.b16 %v115
  %v164 = vunpack.c.l.b16 %v116
  %v165 = vunpack.c.h.b16 %v116
  %v166 = vunpack.c.l.b16 %v117
  %v167 = vunpack.c.h.b16 %v117
  %v168 = vunpack.c.l.b16 %v118
  %v169 = vunpack.c.h.b16 %v118
  %v170 = vunpack.c.l.b16 %v119
  %v171 = vunpack.c.h.b16 %v119
  %v172 = vunpack.c.l.b16 %v120
  %v173 = vunpack.c.h.b16 %v120
  %v174 = vunpack.c.l.b16 %v121
  %v175 = vunpack.c.h.b16 %v121
  %v176 = vunpack.c.l.b16 %v122
  %v177 = vunpack.c.h.b16 %v122
  %v178 = vunpack.c.l.b16 %v123
  %v179 = vunpack.c.h.b16 %v123
  %v180 = vunpack.c.l.b16 %v124
  %v181 = vunpack.c.h.b16 %v124
  %v182 = vunpack.c.l.b16 %v125
  %v183 = vunpack.c.h.b16 %v125
  %v184 = vunpack.c.l.b16 %v126
  %v185 = vunpack.c.h.b16 %v126
  %v186 = vunpack.c.l.b16 %v127
  %v187 = vunpack.c.h.b16 %v127
  %v188 = vpack.c.b16 %v158, %v156
  %v189 = vpack.c.b16 %v159, %v157
  %v190 = vpack.c.b16 %v162, %v160
  %v191 = vpack.c.b16 %v163, %v161
  %v192 = vpack.c.b16 %v166, %v164
  %v193 = vpack.c.b16 %v167, %v165
  %v194 = vpack.c.b16 %v170, %v168
  %v195 = vpack.c.b16 %v171, %v169
  %v196 = vpack.c.b16 %v174, %v172
  %v197 = vpack.c.b16 %v175, %v173
  %v198 = vpack.c.b16 %v178, %v176
  %v199 = vpack.c.b16 %v179, %v177
  %v200 = vpack.c.b16 %v182, %v180
  %v201 = vpack.c.b16 %v183, %v181
  %v202 = vpack.c.b16 %v186, %v184
  %v203 = vpack.c.b16 %v187, %v185
  %220 = vmatprep.subr.bf16.mxu0 %v189
  %221 = vmatpush1.bf16.msra.mxu0 %v188
  %222 = vmatprep.subr.bf16.mxu0 %v191
  %223 = vmatpush1.bf16.msra.mxu0 %v190
  %224 = vmatprep.subr.bf16.mxu0 %v193
  %225 = vmatpush1.bf16.msra.mxu0 %v192
  %226 = vmatprep.subr.bf16.mxu0 %v195
  %227 = vmatpush1.bf16.msra.mxu0 %v194
  %228 = vmatprep.subr.bf16.mxu0 %v197
  %229 = vmatpush1.bf16.msra.mxu0 %v196
  %230 = vmatprep.subr.bf16.mxu0 %v199
  %231 = vmatpush1.bf16.msra.mxu0 %v198
  %232 = vmatprep.subr.bf16.mxu0 %v201
  %233 = vmatpush1.bf16.msra.mxu0 %v200
  %234 = vmatprep.subr.bf16.mxu0 %v203
  %235 = vmatpush1.bf16.msra.mxu0 %v202
  %236 = vmatprep.subr.bf16.mxu0 0
  %237 = vmatpush1.bf16.msra.mxu0 0
  %238 = vmatprep.subr.bf16.mxu0 0
  %239 = vmatpush1.bf16.msra.mxu0 0
  %240 = vmatprep.subr.bf16.mxu0 0
  %241 = vmatpush1.bf16.msra.mxu0 0
  %242 = vmatprep.subr.bf16.mxu0 0
  %243 = vmatpush1.bf16.msra.mxu0 0
  %244 = vmatprep.subr.bf16.mxu0 0
  %245 = vmatpush1.bf16.msra.mxu0 0
  %246 = vmatprep.subr.bf16.mxu0 0
  %247 = vmatpush1.bf16.msra.mxu0 0
  %248 = vmatprep.subr.bf16.mxu0 0
  %249 = vmatpush1.bf16.msra.mxu0 0
  %250 = vmatprep.subr.bf16.mxu0 0
  %251 = vmatpush1.bf16.msra.mxu0 0
  %252 = vmatprep.mubr.bf16.mxu0 0
  %253 = vmatmul.mubr.bf16.gmra.mrb[0].mxu0 %v111
  %v254 = vpop.f32.mrb[0].mxu0
  %v255 = vadd.f32 %v133, %v254
  %v256 = vpop.f32.mrb[0].mxu0
  %v257 = vadd.f32 %v137, %v256
  %v258 = vpop.f32.mrb[0].mxu0
  %v259 = vadd.f32 %v133, %v258
  %v260 = vpop.f32.mrb[0].mxu0
  %v261 = vadd.f32 %v137, %v260
  %262 = vdwg.mxu0
  %v263 = vmax.f32 %v255, 0.0
  %v264 = vmax.f32 %v257, 0.0
  %v265 = vmax.f32 %v259, 0.0
  %v266 = vmax.f32 %v261, 0.0
  %v267 = vmax.f32 %v263, %v264
  %v268 = vmax.f32 %v265, %v266
  %v269 = vpack.c.bf16 %v268, %v267
  %v270 = vld [vmem:[%s5] sm:$0xff]
  %v271 = vld [vmem:[%s5 + $0x8] sm:$0xff]
  %v272 = vld [vmem:[%s5 + $0x10] sm:$0xff]
  %v273 = vld [vmem:[%s5 + $0x18] sm:$0xff]
  %v274 = vld [vmem:[%s5 + $0x20] sm:$0xff]
  %v275 = vld [vmem:[%s5 + $0x28] sm:$0xff]
  %v276 = vld [vmem:[%s5 + $0x30] sm:$0xff]
  %v277 = vld [vmem:[%s5 + $0x38] sm:$0xff]
  %v278 = vld [vmem:[%s5 + $0x40] sm:$0xff]
  %v279 = vld [vmem:[%s5 + $0x48] sm:$0xff]
  %v280 = vld [vmem:[%s5 + $0x50] sm:$0xff]
  %v281 = vld [vmem:[%s5 + $0x58] sm:$0xff]
  %v282 = vld [vmem:[%s5 + $0x60] sm:$0xff]
  %v283 = vld [vmem:[%s5 + $0x68] sm:$0xff]
  %v284 = vld [vmem:[%s5 + $0x70] sm:$0xff]
  %v285 = vld [vmem:[%s5 + $0x78] sm:$0xff]
  %v286 = vld [vmem:[%s5 + $0x80] sm:$0xff]
  %v287 = vld [vmem:[%s5 + $0x88] sm:$0xff]
  %v288 = vld [vmem:[%s5 + $0x90] sm:$0xff]
  %v289 = vld [vmem:[%s5 + $0x98] sm:$0xff]
  %v290 = vld [vmem:[%s5 + $0xa0] sm:$0xff]
  %v291 = vld [vmem:[%s5 + $0xa8] sm:$0xff]
  %v292 = vld [vmem:[%s5 + $0xb0] sm:$0xff]
  %v293 = vld [vmem:[%s5 + $0xb8] sm:$0xff]
  %v294 = vld [vmem:[%s5 + $0xc0] sm:$0xff]
  %v295 = vld [vmem:[%s5 + $0xc8] sm:$0xff]
  %v296 = vld [vmem:[%s5 + $0xd0] sm:$0xff]
  %v297 = vld [vmem:[%s5 + $0xd8] sm:$0xff]
  %v298 = vld [vmem:[%s5 + $0xe0] sm:$0xff]
  %v299 = vld [vmem:[%s5 + $0xe8] sm:$0xff]
  %v300 = vld [vmem:[%s5 + $0xf0] sm:$0xff]
  %v301 = vld [vmem:[%s5 + $0xf8] sm:$0xff]
  %v302 = vld [vmem:[%s6] sm:$0xf]
  %v304 = vlaneseq
  %v305 = vshrl.u32 %v304, 7
  %v306 = vsub.s32 0, %v305
  %v307 = vrot.slane %v302, %v306
  %v308 = vlaneseq
  %v309 = vshrl.u32 %v308, 7
  %v310 = vsub.s32 1, %v309
  %v311 = vrot.slane %v302, %v310
  %v312 = vlaneseq
  %v313 = vshrl.u32 %v312, 7
  %v314 = vsub.s32 2, %v313
  %v315 = vrot.slane %v302, %v314
  %v316 = vlaneseq
  %v317 = vshrl.u32 %v316, 7
  %v318 = vsub.s32 3, %v317
  %v319 = vrot.slane %v302, %v318
  %v356 = vunpack.c.l.b16 %v270
  %v357 = vunpack.c.h.b16 %v270
  %v358 = vunpack.c.l.b16 %v271
  %v359 = vunpack.c.h.b16 %v271
  %v360 = vunpack.c.l.b16 %v272
  %v361 = vunpack.c.h.b16 %v272
  %v362 = vunpack.c.l.b16 %v273
  %v363 = vunpack.c.h.b16 %v273
  %v364 = vunpack.c.l.b16 %v274
  %v365 = vunpack.c.h.b16 %v274
  %v366 = vunpack.c.l.b16 %v275
  %v367 = vunpack.c.h.b16 %v275
  %v368 = vunpack.c.l.b16 %v276
  %v369 = vunpack.c.h.b16 %v276
  %v370 = vunpack.c.l.b16 %v277
  %v371 = vunpack.c.h.b16 %v277
  %v372 = vunpack.c.l.b16 %v278
  %v373 = vunpack.c.h.b16 %v278
  %v374 = vunpack.c.l.b16 %v279
  %v375 = vunpack.c.h.b16 %v279
  %v376 = vunpack.c.l.b16 %v280
  %v377 = vunpack.c.h.b16 %v280
  %v378 = vunpack.c.l.b16 %v281
  %v379 = vunpack.c.h.b16 %v281
  %v380 = vunpack.c.l.b16 %v282
  %v381 = vunpack.c.h.b16 %v282
  %v382 = vunpack.c.l.b16 %v283
  %v383 = vunpack.c.h.b16 %v283
  %v384 = vunpack.c.l.b16 %v284
  %v385 = vunpack.c.h.b16 %v284
  %v386 = vunpack.c.l.b16 %v285
  %v387 = vunpack.c.h.b16 %v285
  %v388 = vunpack.c.l.b16 %v286
  %v389 = vunpack.c.h.b16 %v286
  %v390 = vunpack.c.l.b16 %v287
  %v391 = vunpack.c.h.b16 %v287
  %v392 = vunpack.c.l.b16 %v288
  %v393 = vunpack.c.h.b16 %v288
  %v394 = vunpack.c.l.b16 %v289
  %v395 = vunpack.c.h.b16 %v289
  %v396 = vunpack.c.l.b16 %v290
  %v397 = vunpack.c.h.b16 %v290
  %v398 = vunpack.c.l.b16 %v291
  %v399 = vunpack.c.h.b16 %v291
  %v400 = vunpack.c.l.b16 %v292
  %v401 = vunpack.c.h.b16 %v292
  %v402 = vunpack.c.l.b16 %v293
  %v403 = vunpack.c.h.b16 %v293
  %v404 = vunpack.c.l.b16 %v294
  %v405 = vunpack.c.h.b16 %v294
  %v406 = vunpack.c.l.b16 %v295
  %v407 = vunpack.c.h.b16 %v295
  %v408 = vunpack.c.l.b16 %v296
  %v409 = vunpack.c.h.b16 %v296
  %v410 = vunpack.c.l.b16 %v297
  %v411 = vunpack.c.h.b16 %v297
  %v412 = vunpack.c.l.b16 %v298
  %v413 = vunpack.c.h.b16 %v298
  %v414 = vunpack.c.l.b16 %v299
  %v415 = vunpack.c.h.b16 %v299
  %v416 = vunpack.c.l.b16 %v300
  %v417 = vunpack.c.h.b16 %v300
  %v418 = vunpack.c.l.b16 %v301
  %v419 = vunpack.c.h.b16 %v301
  %v420 = vpack.c.b16 %v360, %v356
  %v421 = vpack.c.b16 %v361, %v357
  %v422 = vpack.c.b16 %v362, %v358
  %v423 = vpack.c.b16 %v363, %v359
  %v424 = vpack.c.b16 %v368, %v364
  %v425 = vpack.c.b16 %v369, %v365
  %v426 = vpack.c.b16 %v370, %v366
  %v427 = vpack.c.b16 %v371, %v367
  %v428 = vpack.c.b16 %v376, %v372
  %v429 = vpack.c.b16 %v377, %v373
  %v430 = vpack.c.b16 %v378, %v374
  %v431 = vpack.c.b16 %v379, %v375
  %v432 = vpack.c.b16 %v384, %v380
  %v433 = vpack.c.b16 %v385, %v381
  %v434 = vpack.c.b16 %v386, %v382
  %v435 = vpack.c.b16 %v387, %v383
  %v436 = vpack.c.b16 %v392, %v388
  %v437 = vpack.c.b16 %v393, %v389
  %v438 = vpack.c.b16 %v394, %v390
  %v439 = vpack.c.b16 %v395, %v391
  %v440 = vpack.c.b16 %v400, %v396
  %v441 = vpack.c.b16 %v401, %v397
  %v442 = vpack.c.b16 %v402, %v398
  %v443 = vpack.c.b16 %v403, %v399
  %v444 = vpack.c.b16 %v408, %v404
  %v445 = vpack.c.b16 %v409, %v405
  %v446 = vpack.c.b16 %v410, %v406
  %v447 = vpack.c.b16 %v411, %v407
  %v448 = vpack.c.b16 %v416, %v412
  %v449 = vpack.c.b16 %v417, %v413
  %v450 = vpack.c.b16 %v418, %v414
  %v451 = vpack.c.b16 %v419, %v415
  %484 = vmatprep.subr.bf16.mxu0 %v421
  %485 = vmatpush1.bf16.msra.mxu0 %v420
  %486 = vmatprep.subr.bf16.mxu0 %v425
  %487 = vmatpush1.bf16.msra.mxu0 %v424
  %488 = vmatprep.subr.bf16.mxu0 %v429
  %489 = vmatpush1.bf16.msra.mxu0 %v428
  %490 = vmatprep.subr.bf16.mxu0 %v433
  %491 = vmatpush1.bf16.msra.mxu0 %v432
  %492 = vmatprep.subr.bf16.mxu0 %v437
  %493 = vmatpush1.bf16.msra.mxu0 %v436
  %494 = vmatprep.subr.bf16.mxu0 %v441
  %495 = vmatpush1.bf16.msra.mxu0 %v440
  %496 = vmatprep.subr.bf16.mxu0 %v445
  %497 = vmatpush1.bf16.msra.mxu0 %v444
  %498 = vmatprep.subr.bf16.mxu0 %v449
  %499 = vmatpush1.bf16.msra.mxu0 %v448
  %500 = vmatprep.subr.bf16.mxu0 0
  %501 = vmatpush1.bf16.msra.mxu0 0
  %502 = vmatprep.subr.bf16.mxu0 0
  %503 = vmatpush1.bf16.msra.mxu0 0
  %504 = vmatprep.subr.bf16.mxu0 0
  %505 = vmatpush1.bf16.msra.mxu0 0
  %506 = vmatprep.subr.bf16.mxu0 0
  %507 = vmatpush1.bf16.msra.mxu0 0
  %508 = vmatprep.subr.bf16.mxu0 0
  %509 = vmatpush1.bf16.msra.mxu0 0
  %510 = vmatprep.subr.bf16.mxu0 0
  %511 = vmatpush1.bf16.msra.mxu0 0
  %512 = vmatprep.subr.bf16.mxu0 0
  %513 = vmatpush1.bf16.msra.mxu0 0
  %514 = vmatprep.subr.bf16.mxu0 0
  %515 = vmatpush1.bf16.msra.mxu0 0
  %516 = vmatprep.mubr.bf16.mxu0 0
  %517 = vmatmul.mubr.bf16.gmra.mrb[0].mxu0 %v269
  %v518 = vpop.f32.mrb[0].mxu0
  %v519 = vadd.f32 %v307, %v518
  %v520 = vpop.f32.mrb[0].mxu0
  %v521 = vadd.f32 %v311, %v520
  %v522 = vpop.f32.mrb[0].mxu0
  %v523 = vadd.f32 %v307, %v522
  %v524 = vpop.f32.mrb[0].mxu0
  %v525 = vadd.f32 %v311, %v524
  %526 = vdwg.mxu0
  %527 = vmatprep.subr.bf16.mxu0 %v423
  %528 = vmatpush1.bf16.msra.mxu0 %v422
  %529 = vmatprep.subr.bf16.mxu0 %v427
  %530 = vmatpush1.bf16.msra.mxu0 %v426
  %531 = vmatprep.subr.bf16.mxu0 %v431
  %532 = vmatpush1.bf16.msra.mxu0 %v430
  %533 = vmatprep.subr.bf16.mxu0 %v435
  %534 = vmatpush1.bf16.msra.mxu0 %v434
  %535 = vmatprep.subr.bf16.mxu0 %v439
  %536 = vmatpush1.bf16.msra.mxu0 %v438
  %537 = vmatprep.subr.bf16.mxu0 %v443
  %538 = vmatpush1.bf16.msra.mxu0 %v442
  %539 = vmatprep.subr.bf16.mxu0 %v447
  %540 = vmatpush1.bf16.msra.mxu0 %v446
  %541 = vmatprep.subr.bf16.mxu0 %v451
  %542 = vmatpush1.bf16.msra.mxu0 %v450
  %543 = vmatprep.subr.bf16.mxu0 0
  %544 = vmatpush1.bf16.msra.mxu0 0
  %545 = vmatprep.subr.bf16.mxu0 0
  %546 = vmatpush1.bf16.msra.mxu0 0
  %547 = vmatprep.subr.bf16.mxu0 0
  %548 = vmatpush1.bf16.msra.mxu0 0
  %549 = vmatprep.subr.bf16.mxu0 0
  %550 = vmatpush1.bf16.msra.mxu0 0
  %551 = vmatprep.subr.bf16.mxu0 0
  %552 = vmatpush1.bf16.msra.mxu0 0
  %553 = vmatprep.subr.bf16.mxu0 0
  %554 = vmatpush1.bf16.msra.mxu0 0
  %555 = vmatprep.subr.bf16.mxu0 0
  %556 = vmatpush1.bf16.msra.mxu0 0
  %557 = vmatprep.subr.bf16.mxu0 0
  %558 = vmatpush1.bf16.msra.mxu0 0
  %559 = vmatprep.mubr.bf16.mxu0 0
  %560 = vmatmul.mubr.bf16.gmra.mrb[0].mxu0 %v269
  %v561 = vpop.f32.mrb[0].mxu0
  %v562 = vadd.f32 %v315, %v561
  %v563 = vpop.f32.mrb[0].mxu0
  %v564 = vadd.f32 %v319, %v563
  %v565 = vpop.f32.mrb[0].mxu0
  %v566 = vadd.f32 %v315, %v565
  %v567 = vpop.f32.mrb[0].mxu0
  %v568 = vadd.f32 %v319, %v567
  %569 = vdwg.mxu0
  %570 = vst [vmem:[%s7] sm:$0xff] %v519
  %571 = vst [vmem:[%s7 + $0x8] sm:$0xff] %v521
  %572 = vst [vmem:[%s7 + $0x10] sm:$0xff] %v562
  %573 = vst [vmem:[%s7 + $0x18] sm:$0xff] %v564
  %574 = vst [vmem:[%s7 + $0x20] sm:$0xff] %v523
  %575 = vst [vmem:[%s7 + $0x28] sm:$0xff] %v525
  %576 = vst [vmem:[%s7 + $0x30] sm:$0xff] %v566
  %577 = vst [vmem:[%s7 + $0x38] sm:$0xff] %v568
  // Predicated region
  $region30: #{_lambda_.2} parent=0 // pred_check
    _
  $region31: #{_lambda_.2} parent=0 // pred_check_branch
    %579 = sbr.rel (0) target = $region33
  $region32: #{_lambda_.2} parent=0 // pred_region
    _
  $region33: #{_lambda_.2} parent=0 // pred_fallthru
    _
  // Predicated region
  $region34: #{_lambda_.2} parent=0 // pred_check
    _
  $region35: #{_lambda_.2} parent=0 // pred_check_branch
    %581 = sbr.rel (0) target = $region37
  $region36: #{_lambda_.2} parent=0 // pred_region
    _
  $region37: #{_lambda_.2} parent=0 // pred_fallthru
    _

// kernel: _lambda_.3
$region0: #{_lambda_.3}
  #allocation0 [shape = 'u32[]', space=smem, size = 0x4, offset = 0x4, fixed_abs, tag = 'smem constant byte address 0x4 - core index']
  #allocation1 [shape = 'u32[144,128]{1,0:T(1,128)}', space=vmem, size = 0x12000, scoped, tag = 'internal scratch']
  #allocation2 [shape = 'f32[2,128]{1,0:T(2,128)}', space=vmem, size = 0x400, scoped, tag = 'scratch operand']
  #allocation3 [shape = 'f32[2,128]{1,0:T(2,128)}', space=vmem, size = 0x400, scoped, tag = 'scratch operand']
  #allocation4 [shape = 'f32[2,128]{1,0:T(2,128)}', space=vmem, size = 0x400, scoped, tag = 'scratch operand']
  #allocation5 [shape = 'f32[2,128]{1,0:T(2,128)}', space=vmem, size = 0x400, scoped, tag = 'scratch operand']
  %s0 = inlined_call_operand.vmem [shape: f32[8,2,512], index: 0, kind: input, shape index: {}]
  %s1 = inlined_call_operand.vmem [shape: bf16[128,512], index: 1, kind: input, shape index: {}]
  %s2 = inlined_call_operand.vmem [shape: bf16[256,512], index: 2, kind: input, shape index: {}]
  %s3 = inlined_call_operand.vmem [shape: f32[1,512], index: 3, kind: input, shape index: {}]
  %s4 = inlined_call_operand.vmem [shape: bf16[128,4], index: 4, kind: input, shape index: {}]
  %s5 = inlined_call_operand.vmem [shape: f32[1,4], index: 5, kind: input, shape index: {}]
  %s6 = inlined_call_operand.hbm [shape: f32[2,4], index: 6, kind: output, shape index: {}]
  %s7 = sld [smem:[#allocation0]]
  $region42: #{_lambda_.3} parent=0
    _
  %s9 = ssub.s32 1, %s7
  %s10 = scalar_select 0, %s9, %s7
  $region1: #{_lambda_.3} parent=0
    #allocation6 [shape = 'u8[1024]{0}', space=vmem, size = 0x400, scoped, tag = 'output window, operand 0, single buffered']
    #allocation7 [shape = 's32[1]{0}', space=sflag, size = 0x4, scoped, tag = 'scoped memory for _lambda_.3']
    %11 = vsyncpa [#allocation7], 0
    // Predicated region
    $region2: #{_lambda_.3} parent=1 // pred_check
      _
    $region3: #{_lambda_.3} parent=1 // pred_check_branch
      %13 = sbr.rel (0) target = $region5
    $region4: #{_lambda_.3} parent=1 // pred_region
      _
    $region5: #{_lambda_.3} parent=1 // pred_fallthru
      _
    // Predicated region
    $region6: #{_lambda_.3} parent=1 // pred_check
      _
    $region7: #{_lambda_.3} parent=1 // pred_check_branch
      %15 = sbr.rel (0) target = $region9
    $region8: #{_lambda_.3} parent=1 // pred_region
      _
    $region9: #{_lambda_.3} parent=1 // pred_fallthru
      _
    // Predicated region
    $region10: #{_lambda_.3} parent=1 // pred_check
      _
    $region11: #{_lambda_.3} parent=1 // pred_check_branch
      %17 = sbr.rel (0) target = $region13
    $region12: #{_lambda_.3} parent=1 // pred_region
      _
    $region13: #{_lambda_.3} parent=1 // pred_fallthru
      _
    // Predicated region
    $region14: #{_lambda_.3} parent=1 // pred_check
      _
    $region15: #{_lambda_.3} parent=1 // pred_check_branch
      %19 = sbr.rel (0) target = $region17
    $region16: #{_lambda_.3} parent=1 // pred_region
      _
    $region17: #{_lambda_.3} parent=1 // pred_fallthru
      _
    // Predicated region
    $region18: #{_lambda_.3} parent=1 // pred_check
      _
    $region19: #{_lambda_.3} parent=1 // pred_check_branch
      %21 = sbr.rel (0) target = $region21
    $region20: #{_lambda_.3} parent=1 // pred_region
      _
    $region21: #{_lambda_.3} parent=1 // pred_fallthru
      _
    // Predicated region
    $region22: #{_lambda_.3} parent=1 // pred_check
      _
    $region23: #{_lambda_.3} parent=1 // pred_check_branch
      %23 = sbr.rel (0) target = $region25
    $region24: #{_lambda_.3} parent=1 // pred_region
      _
    $region25: #{_lambda_.3} parent=1 // pred_fallthru
      _
    %p25 = scmp.eq.s32.totalorder 0, 0
    // Predicated region
    $region26: #{_lambda_.3} parent=1 // pred_check
      %p26 = pneg %p25
    $region27: #{_lambda_.3} parent=1 // pred_check_branch
      %28 = sbr.rel (%p26) target = $region29
    $region28: #{_lambda_.3} parent=1 // pred_region
      %29 = vst [vmem:[#allocation2] sm:$0x3] 0.0
      %30 = vst [vmem:[#allocation3] sm:$0x3] 0.0
      %31 = vst [vmem:[#allocation4] sm:$0x3] 0.0
      %32 = vst [vmem:[#allocation5] sm:$0x3] 0.0
    $region29: #{_lambda_.3} parent=1 // pred_fallthru
      _
    %v33 = vld [vmem:[%s1] sm:$0xff]
    %v34 = vld [vmem:[%s1 + $0x8] sm:$0xff]
    %v35 = vld [vmem:[%s1 + $0x10] sm:$0xff]
    %v36 = vld [vmem:[%s1 + $0x18] sm:$0xff]
    %v37 = vld [vmem:[%s1 + $0x20] sm:$0xff]
    %v38 = vld [vmem:[%s1 + $0x28] sm:$0xff]
    %v39 = vld [vmem:[%s1 + $0x30] sm:$0xff]
    %v40 = vld [vmem:[%s1 + $0x38] sm:$0xff]
    %v41 = vld [vmem:[%s1 + $0x40] sm:$0xff]
    %v42 = vld [vmem:[%s1 + $0x48] sm:$0xff]
    %v43 = vld [vmem:[%s1 + $0x50] sm:$0xff]
    %v44 = vld [vmem:[%s1 + $0x58] sm:$0xff]
    %v45 = vld [vmem:[%s1 + $0x60] sm:$0xff]
    %v46 = vld [vmem:[%s1 + $0x68] sm:$0xff]
    %v47 = vld [vmem:[%s1 + $0x70] sm:$0xff]
    %v48 = vld [vmem:[%s1 + $0x78] sm:$0xff]
    %v49 = vld [vmem:[%s1 + $0x80] sm:$0xff]
    %v50 = vld [vmem:[%s1 + $0x88] sm:$0xff]
    %v51 = vld [vmem:[%s1 + $0x90] sm:$0xff]
    %v52 = vld [vmem:[%s1 + $0x98] sm:$0xff]
    %v53 = vld [vmem:[%s1 + $0xa0] sm:$0xff]
    %v54 = vld [vmem:[%s1 + $0xa8] sm:$0xff]
    %v55 = vld [vmem:[%s1 + $0xb0] sm:$0xff]
    %v56 = vld [vmem:[%s1 + $0xb8] sm:$0xff]
    %v57 = vld [vmem:[%s1 + $0xc0] sm:$0xff]
    %v58 = vld [vmem:[%s1 + $0xc8] sm:$0xff]
    %v59 = vld [vmem:[%s1 + $0xd0] sm:$0xff]
    %v60 = vld [vmem:[%s1 + $0xd8] sm:$0xff]
    %v61 = vld [vmem:[%s1 + $0xe0] sm:$0xff]
    %v62 = vld [vmem:[%s1 + $0xe8] sm:$0xff]
    %v63 = vld [vmem:[%s1 + $0xf0] sm:$0xff]
    %v64 = vld [vmem:[%s1 + $0xf8] sm:$0xff]
    %v65 = vld [vmem:[%s2] sm:$0xff]
    %v66 = vld [vmem:[%s2 + $0x8] sm:$0xff]
    %v67 = vld [vmem:[%s2 + $0x10] sm:$0xff]
    %v68 = vld [vmem:[%s2 + $0x18] sm:$0xff]
    %v69 = vld [vmem:[%s2 + $0x20] sm:$0xff]
    %v70 = vld [vmem:[%s2 + $0x28] sm:$0xff]
    %v71 = vld [vmem:[%s2 + $0x30] sm:$0xff]
    %v72 = vld [vmem:[%s2 + $0x38] sm:$0xff]
    %v73 = vld [vmem:[%s2 + $0x40] sm:$0xff]
    %v74 = vld [vmem:[%s2 + $0x48] sm:$0xff]
    %v75 = vld [vmem:[%s2 + $0x50] sm:$0xff]
    %v76 = vld [vmem:[%s2 + $0x58] sm:$0xff]
    %v77 = vld [vmem:[%s2 + $0x60] sm:$0xff]
    %v78 = vld [vmem:[%s2 + $0x68] sm:$0xff]
    %v79 = vld [vmem:[%s2 + $0x70] sm:$0xff]
    %v80 = vld [vmem:[%s2 + $0x78] sm:$0xff]
    %v81 = vld [vmem:[%s2 + $0x80] sm:$0xff]
    %v82 = vld [vmem:[%s2 + $0x88] sm:$0xff]
    %v83 = vld [vmem:[%s2 + $0x90] sm:$0xff]
    %v84 = vld [vmem:[%s2 + $0x98] sm:$0xff]
    %v85 = vld [vmem:[%s2 + $0xa0] sm:$0xff]
    %v86 = vld [vmem:[%s2 + $0xa8] sm:$0xff]
    %v87 = vld [vmem:[%s2 + $0xb0] sm:$0xff]
    %v88 = vld [vmem:[%s2 + $0xb8] sm:$0xff]
    %v89 = vld [vmem:[%s2 + $0xc0] sm:$0xff]
    %v90 = vld [vmem:[%s2 + $0xc8] sm:$0xff]
    %v91 = vld [vmem:[%s2 + $0xd0] sm:$0xff]
    %v92 = vld [vmem:[%s2 + $0xd8] sm:$0xff]
    %v93 = vld [vmem:[%s2 + $0xe0] sm:$0xff]
    %v94 = vld [vmem:[%s2 + $0xe8] sm:$0xff]
    %v95 = vld [vmem:[%s2 + $0xf0] sm:$0xff]
    %v96 = vld [vmem:[%s2 + $0xf8] sm:$0xff]
    %v97 = vld [vmem:[%s2 + $0x100] sm:$0xff]
    %v98 = vld [vmem:[%s2 + $0x108] sm:$0xff]
    %v99 = vld [vmem:[%s2 + $0x110] sm:$0xff]
    %v100 = vld [vmem:[%s2 + $0x118] sm:$0xff]
    %v101 = vld [vmem:[%s2 + $0x120] sm:$0xff]
    %v102 = vld [vmem:[%s2 + $0x128] sm:$0xff]
    %v103 = vld [vmem:[%s2 + $0x130] sm:$0xff]
    %v104 = vld [vmem:[%s2 + $0x138] sm:$0xff]
    %v105 = vld [vmem:[%s2 + $0x140] sm:$0xff]
    %v106 = vld [vmem:[%s2 + $0x148] sm:$0xff]
    %v107 = vld [vmem:[%s2 + $0x150] sm:$0xff]
    %v108 = vld [vmem:[%s2 + $0x158] sm:$0xff]
    %v109 = vld [vmem:[%s2 + $0x160] sm:$0xff]
    %v110 = vld [vmem:[%s2 + $0x168] sm:$0xff]
    %v111 = vld [vmem:[%s2 + $0x170] sm:$0xff]
    %v112 = vld [vmem:[%s2 + $0x178] sm:$0xff]
    %v113 = vld [vmem:[%s2 + $0x180] sm:$0xff]
    %v114 = vld [vmem:[%s2 + $0x188] sm:$0xff]
    %v115 = vld [vmem:[%s2 + $0x190] sm:$0xff]
    %v116 = vld [vmem:[%s2 + $0x198] sm:$0xff]
    %v117 = vld [vmem:[%s2 + $0x1a0] sm:$0xff]
    %v118 = vld [vmem:[%s2 + $0x1a8] sm:$0xff]
    %v119 = vld [vmem:[%s2 + $0x1b0] sm:$0xff]
    %v120 = vld [vmem:[%s2 + $0x1b8] sm:$0xff]
    %v121 = vld [vmem:[%s2 + $0x1c0] sm:$0xff]
    %v122 = vld [vmem:[%s2 + $0x1c8] sm:$0xff]
    %v123 = vld [vmem:[%s2 + $0x1d0] sm:$0xff]
    %v124 = vld [vmem:[%s2 + $0x1d8] sm:$0xff]
    %v125 = vld [vmem:[%s2 + $0x1e0] sm:$0xff]
    %v126 = vld [vmem:[%s2 + $0x1e8] sm:$0xff]
    %v127 = vld [vmem:[%s2 + $0x1f0] sm:$0xff]
    %v128 = vld [vmem:[%s2 + $0x1f8] sm:$0xff]
    %v129 = vld [vmem:[%s3] sm:$0xf]
    %v130 = vld [vmem:[#allocation2] sm:$0x3]
    %v131 = vld [vmem:[#allocation3] sm:$0x3]
    %v132 = vld [vmem:[#allocation4] sm:$0x3]
    %v133 = vld [vmem:[#allocation5] sm:$0x3]
    %v134 = vld [vmem:[%s0] sm:$0xff]
    %v135 = vpack.c.bf16 %v130, %v130
    %v168 = vunpack.c.l.b16 %v33
    %v169 = vunpack.c.h.b16 %v33
    %v170 = vunpack.c.l.b16 %v34
    %v171 = vunpack.c.h.b16 %v34
    %v172 = vunpack.c.l.b16 %v35
    %v173 = vunpack.c.h.b16 %v35
    %v174 = vunpack.c.l.b16 %v36
    %v175 = vunpack.c.h.b16 %v36
    %v176 = vunpack.c.l.b16 %v37
    %v177 = vunpack.c.h.b16 %v37
    %v178 = vunpack.c.l.b16 %v38
    %v179 = vunpack.c.h.b16 %v38
    %v180 = vunpack.c.l.b16 %v39
    %v181 = vunpack.c.h.b16 %v39
    %v182 = vunpack.c.l.b16 %v40
    %v183 = vunpack.c.h.b16 %v40
    %v184 = vunpack.c.l.b16 %v41
    %v185 = vunpack.c.h.b16 %v41
    %v186 = vunpack.c.l.b16 %v42
    %v187 = vunpack.c.h.b16 %v42
    %v188 = vunpack.c.l.b16 %v43
    %v189 = vunpack.c.h.b16 %v43
    %v190 = vunpack.c.l.b16 %v44
    %v191 = vunpack.c.h.b16 %v44
    %v192 = vunpack.c.l.b16 %v45
    %v193 = vunpack.c.h.b16 %v45
    %v194 = vunpack.c.l.b16 %v46
    %v195 = vunpack.c.h.b16 %v46
    %v196 = vunpack.c.l.b16 %v47
    %v197 = vunpack.c.h.b16 %v47
    %v198 = vunpack.c.l.b16 %v48
    %v199 = vunpack.c.h.b16 %v48
    %v200 = vunpack.c.l.b16 %v49
    %v201 = vunpack.c.h.b16 %v49
    %v202 = vunpack.c.l.b16 %v50
    %v203 = vunpack.c.h.b16 %v50
    %v204 = vunpack.c.l.b16 %v51
    %v205 = vunpack.c.h.b16 %v51
    %v206 = vunpack.c.l.b16 %v52
    %v207 = vunpack.c.h.b16 %v52
    %v208 = vunpack.c.l.b16 %v53
    %v209 = vunpack.c.h.b16 %v53
    %v210 = vunpack.c.l.b16 %v54
    %v211 = vunpack.c.h.b16 %v54
    %v212 = vunpack.c.l.b16 %v55
    %v213 = vunpack.c.h.b16 %v55
    %v214 = vunpack.c.l.b16 %v56
    %v215 = vunpack.c.h.b16 %v56
    %v216 = vunpack.c.l.b16 %v57
    %v217 = vunpack.c.h.b16 %v57
    %v218 = vunpack.c.l.b16 %v58
    %v219 = vunpack.c.h.b16 %v58
    %v220 = vunpack.c.l.b16 %v59
    %v221 = vunpack.c.h.b16 %v59
    %v222 = vunpack.c.l.b16 %v60
    %v223 = vunpack.c.h.b16 %v60
    %v224 = vunpack.c.l.b16 %v61
    %v225 = vunpack.c.h.b16 %v61
    %v226 = vunpack.c.l.b16 %v62
    %v227 = vunpack.c.h.b16 %v62
    %v228 = vunpack.c.l.b16 %v63
    %v229 = vunpack.c.h.b16 %v63
    %v230 = vunpack.c.l.b16 %v64
    %v231 = vunpack.c.h.b16 %v64
    %v232 = vpack.c.b16 %v172, %v168
    %v233 = vpack.c.b16 %v173, %v169
    %v234 = vpack.c.b16 %v174, %v170
    %v235 = vpack.c.b16 %v175, %v171
    %v236 = vpack.c.b16 %v180, %v176
    %v237 = vpack.c.b16 %v181, %v177
    %v238 = vpack.c.b16 %v182, %v178
    %v239 = vpack.c.b16 %v183, %v179
    %v240 = vpack.c.b16 %v188, %v184
    %v241 = vpack.c.b16 %v189, %v185
    %v242 = vpack.c.b16 %v190, %v186
    %v243 = vpack.c.b16 %v191, %v187
    %v244 = vpack.c.b16 %v196, %v192
    %v245 = vpack.c.b16 %v197, %v193
    %v246 = vpack.c.b16 %v198, %v194
    %v247 = vpack.c.b16 %v199, %v195
    %v248 = vpack.c.b16 %v204, %v200
    %v249 = vpack.c.b16 %v205, %v201
    %v250 = vpack.c.b16 %v206, %v202
    %v251 = vpack.c.b16 %v207, %v203
    %v252 = vpack.c.b16 %v212, %v208
    %v253 = vpack.c.b16 %v213, %v209
    %v254 = vpack.c.b16 %v214, %v210
    %v255 = vpack.c.b16 %v215, %v211
    %v256 = vpack.c.b16 %v220, %v216
    %v257 = vpack.c.b16 %v221, %v217
    %v258 = vpack.c.b16 %v222, %v218
    %v259 = vpack.c.b16 %v223, %v219
    %v260 = vpack.c.b16 %v228, %v224
    %v261 = vpack.c.b16 %v229, %v225
    %v262 = vpack.c.b16 %v230, %v226
    %v263 = vpack.c.b16 %v231, %v227
    %296 = vmatprep.subr.bf16.mxu0 %v233
    %297 = vmatpush1.bf16.msra.mxu0 %v232
    %298 = vmatprep.subr.bf16.mxu0 %v237
    %299 = vmatpush1.bf16.msra.mxu0 %v236
    %300 = vmatprep.subr.bf16.mxu0 %v241
    %301 = vmatpush1.bf16.msra.mxu0 %v240
    %302 = vmatprep.subr.bf16.mxu0 %v245
    %303 = vmatpush1.bf16.msra.mxu0 %v244
    %304 = vmatprep.subr.bf16.mxu0 %v249
    %305 = vmatpush1.bf16.msra.mxu0 %v248
    %306 = vmatprep.subr.bf16.mxu0 %v253
    %307 = vmatpush1.bf16.msra.mxu0 %v252
    %308 = vmatprep.subr.bf16.mxu0 %v257
    %309 = vmatpush1.bf16.msra.mxu0 %v256
    %310 = vmatprep.subr.bf16.mxu0 %v261
    %311 = vmatpush1.bf16.msra.mxu0 %v260
    %312 = vmatprep.subr.bf16.mxu0 0
    %313 = vmatpush1.bf16.msra.mxu0 0
    %314 = vmatprep.subr.bf16.mxu0 0
    %315 = vmatpush1.bf16.msra.mxu0 0
    %316 = vmatprep.subr.bf16.mxu0 0
    %317 = vmatpush1.bf16.msra.mxu0 0
    %318 = vmatprep.subr.bf16.mxu0 0
    %319 = vmatpush1.bf16.msra.mxu0 0
    %320 = vmatprep.subr.bf16.mxu0 0
    %321 = vmatpush1.bf16.msra.mxu0 0
    %322 = vmatprep.subr.bf16.mxu0 0
    %323 = vmatpush1.bf16.msra.mxu0 0
    %324 = vmatprep.subr.bf16.mxu0 0
    %325 = vmatpush1.bf16.msra.mxu0 0
    %326 = vmatprep.subr.bf16.mxu0 0
    %327 = vmatpush1.bf16.msra.mxu0 0
    %328 = vmatprep.mubr.bf16.mxu0 0
    %329 = vmatmul.mubr.bf16.gmra.mrb[0].mxu0 %v135
    %v330 = vpop.f32.mrb[0].mxu0
    %v331 = vadd.f32 0.0, %v330
    %v332 = vpop.f32.mrb[0].mxu0
    %v333 = vadd.f32 0.0, %v332
    %v334 = vpop.f32.mrb[0].mxu0
    %v335 = vpop.f32.mrb[0].mxu0
    %336 = vdwg.mxu0
    %337 = vmatprep.subr.bf16.mxu0 %v235
    %338 = vmatpush1.bf16.msra.mxu0 %v234
    %339 = vmatprep.subr.bf16.mxu0 %v239
    %340 = vmatpush1.bf16.msra.mxu0 %v238
    %341 = vmatprep.subr.bf16.mxu0 %v243
    %342 = vmatpush1.bf16.msra.mxu0 %v242
    %343 = vmatprep.subr.bf16.mxu0 %v247
    %344 = vmatpush1.bf16.msra.mxu0 %v246
    %345 = vmatprep.subr.bf16.mxu0 %v251
    %346 = vmatpush1.bf16.msra.mxu0 %v250
    %347 = vmatprep.subr.bf16.mxu0 %v255
    %348 = vmatpush1.bf16.msra.mxu0 %v254
    %349 = vmatprep.subr.bf16.mxu0 %v259
    %350 = vmatpush1.bf16.msra.mxu0 %v258
    %351 = vmatprep.subr.bf16.mxu0 %v263
    %352 = vmatpush1.bf16.msra.mxu0 %v262
    %353 = vmatprep.subr.bf16.mxu0 0
    %354 = vmatpush1.bf16.msra.mxu0 0
    %355 = vmatprep.subr.bf16.mxu0 0
    %356 = vmatpush1.bf16.msra.mxu0 0
    %357 = vmatprep.subr.bf16.mxu0 0
    %358 = vmatpush1.bf16.msra.mxu0 0
    %359 = vmatprep.subr.bf16.mxu0 0
    %360 = vmatpush1.bf16.msra.mxu0 0
    %361 = vmatprep.subr.bf16.mxu0 0
    %362 = vmatpush1.bf16.msra.mxu0 0
    %363 = vmatprep.subr.bf16.mxu0 0
    %364 = vmatpush1.bf16.msra.mxu0 0
    %365 = vmatprep.subr.bf16.mxu0 0
    %366 = vmatpush1.bf16.msra.mxu0 0
    %367 = vmatprep.subr.bf16.mxu0 0
    %368 = vmatpush1.bf16.msra.mxu0 0
    %369 = vmatprep.mubr.bf16.mxu0 0
    %370 = vmatmul.mubr.bf16.gmra.mrb[0].mxu0 %v135
    %v371 = vpop.f32.mrb[0].mxu0
    %v372 = vadd.f32 0.0, %v371
    %v373 = vpop.f32.mrb[0].mxu0
    %v374 = vadd.f32 0.0, %v373
    %v375 = vpop.f32.mrb[0].mxu0
    %v376 = vpop.f32.mrb[0].mxu0
    %377 = vdwg.mxu0
    %v382 = vcombine.low %v331, %v333
    %v383 = vcombine.low %v372, %v374
    %v385 = vunpack.c.l.s4 1983009808
    %v386 = vunpack.c.0.s8 %v385
    %v387 = vlaneseq
    %v388 = vshrl.u32 %v387, 7
    %v389 = vsub.s32 %v386, %v388
    %v390 = vrot.slane %v382, %v389
    %v392 = vunpack.c.l.s4 1983009808
    %v393 = vunpack.c.0.s8 %v392
    %v394 = vlaneseq
    %v395 = vshrl.u32 %v394, 7
    %v396 = vsub.s32 %v393, %v395
    %v397 = vrot.slane %v383, %v396
    %v398 = vcombine.low %v390, %v397
    %v400 = vadd.f32 %v134, %v398
    %v401 = vxor.u32 %v400, 2147483648
    %v402 = vmul.f32 %v401, 1.442695
    %v403 = vpow.pop %v402
    %v404 = vadd.f32 %v403, 1.0
    %v405 = vrcp.pop %v404
    %v406 = vmul.f32 1.0, %v405
    %v408 = vrot.slane %v400, 6
    %v410 = vtanh.pop %v408
    %v412 = vrot.slane %v406, 2
    %v414 = vmul.f32 %v412, %v131
    %v415 = vmul.f32 %v406, %v410
    %v416 = vadd.f32 %v414, %v415
    %v417 = vtanh.pop %v416
    %v418 = vrot.slane %v406, 4
    %v420 = vmul.f32 %v418, %v417
    %v421 = vpack.c.bf16 %v420, %v420
    %v422 = vpack.c.bf16 %v132, %v132
    %v424 = vlaneseq
    %v425 = vshrl.u32 %v424, 7
    %v426 = vsub.s32 0, %v425
    %v427 = vrot.slane %v129, %v426
    %v428 = vlaneseq
    %v429 = vshrl.u32 %v428, 7
    %v430 = vsub.s32 1, %v429
    %v431 = vrot.slane %v129, %v430
    %v432 = vlaneseq
    %v433 = vshrl.u32 %v432, 7
    %v434 = vsub.s32 2, %v433
    %v435 = vrot.slane %v129, %v434
    %v436 = vlaneseq
    %v437 = vshrl.u32 %v436, 7
    %v438 = vsub.s32 3, %v437
    %v439 = vrot.slane %v129, %v438
    %v508 = vunpack.c.l.b16 %v65
    %v509 = vunpack.c.h.b16 %v65
    %v510 = vunpack.c.l.b16 %v66
    %v511 = vunpack.c.h.b16 %v66
    %v512 = vunpack.c.l.b16 %v67
    %v513 = vunpack.c.h.b16 %v67
    %v514 = vunpack.c.l.b16 %v68
    %v515 = vunpack.c.h.b16 %v68
    %v516 = vunpack.c.l.b16 %v69
    %v517 = vunpack.c.h.b16 %v69
    %v518 = vunpack.c.l.b16 %v70
    %v519 = vunpack.c.h.b16 %v70
    %v520 = vunpack.c.l.b16 %v71
    %v521 = vunpack.c.h.b16 %v71
    %v522 = vunpack.c.l.b16 %v72
    %v523 = vunpack.c.h.b16 %v72
    %v524 = vunpack.c.l.b16 %v73
    %v525 = vunpack.c.h.b16 %v73
    %v526 = vunpack.c.l.b16 %v74
    %v527 = vunpack.c.h.b16 %v74
    %v528 = vunpack.c.l.b16 %v75
    %v529 = vunpack.c.h.b16 %v75
    %v530 = vunpack.c.l.b16 %v76
    %v531 = vunpack.c.h.b16 %v76
    %v532 = vunpack.c.l.b16 %v77
    %v533 = vunpack.c.h.b16 %v77
    %v534 = vunpack.c.l.b16 %v78
    %v535 = vunpack.c.h.b16 %v78
    %v536 = vunpack.c.l.b16 %v79
    %v537 = vunpack.c.h.b16 %v79
    %v538 = vunpack.c.l.b16 %v80
    %v539 = vunpack.c.h.b16 %v80
    %v540 = vunpack.c.l.b16 %v81
    %v541 = vunpack.c.h.b16 %v81
    %v542 = vunpack.c.l.b16 %v82
    %v543 = vunpack.c.h.b16 %v82
    %v544 = vunpack.c.l.b16 %v83
    %v545 = vunpack.c.h.b16 %v83
    %v546 = vunpack.c.l.b16 %v84
    %v547 = vunpack.c.h.b16 %v84
    %v548 = vunpack.c.l.b16 %v85
    %v549 = vunpack.c.h.b16 %v85
    %v550 = vunpack.c.l.b16 %v86
    %v551 = vunpack.c.h.b16 %v86
    %v552 = vunpack.c.l.b16 %v87
    %v553 = vunpack.c.h.b16 %v87
    %v554 = vunpack.c.l.b16 %v88
    %v555 = vunpack.c.h.b16 %v88
    %v556 = vunpack.c.l.b16 %v89
    %v557 = vunpack.c.h.b16 %v89
    %v558 = vunpack.c.l.b16 %v90
    %v559 = vunpack.c.h.b16 %v90
    %v560 = vunpack.c.l.b16 %v91
    %v561 = vunpack.c.h.b16 %v91
    %v562 = vunpack.c.l.b16 %v92
    %v563 = vunpack.c.h.b16 %v92
    %v564 = vunpack.c.l.b16 %v93
    %v565 = vunpack.c.h.b16 %v93
    %v566 = vunpack.c.l.b16 %v94
    %v567 = vunpack.c.h.b16 %v94
    %v568 = vunpack.c.l.b16 %v95
    %v569 = vunpack.c.h.b16 %v95
    %v570 = vunpack.c.l.b16 %v96
    %v571 = vunpack.c.h.b16 %v96
    %v572 = vunpack.c.l.b16 %v97
    %v573 = vunpack.c.h.b16 %v97
    %v574 = vunpack.c.l.b16 %v98
    %v575 = vunpack.c.h.b16 %v98
    %v576 = vunpack.c.l.b16 %v99
    %v577 = vunpack.c.h.b16 %v99
    %v578 = vunpack.c.l.b16 %v100
    %v579 = vunpack.c.h.b16 %v100
    %v580 = vunpack.c.l.b16 %v101
    %v581 = vunpack.c.h.b16 %v101
    %v582 = vunpack.c.l.b16 %v102
    %v583 = vunpack.c.h.b16 %v102
    %v584 = vunpack.c.l.b16 %v103
    %v585 = vunpack.c.h.b16 %v103
    %v586 = vunpack.c.l.b16 %v104
    %v587 = vunpack.c.h.b16 %v104
    %v588 = vunpack.c.l.b16 %v105
    %v589 = vunpack.c.h.b16 %v105
    %v590 = vunpack.c.l.b16 %v106
    %v591 = vunpack.c.h.b16 %v106
    %v592 = vunpack.c.l.b16 %v107
    %v593 = vunpack.c.h.b16 %v107
    %v594 = vunpack.c.l.b16 %v108
    %v595 = vunpack.c.h.b16 %v108
    %v596 = vunpack.c.l.b16 %v109
    %v597 = vunpack.c.h.b16 %v109
    %v598 = vunpack.c.l.b16 %v110
    %v599 = vunpack.c.h.b16 %v110
    %v600 = vunpack.c.l.b16 %v111
    %v601 = vunpack.c.h.b16 %v111
    %v602 = vunpack.c.l.b16 %v112
    %v603 = vunpack.c.h.b16 %v112
    %v604 = vunpack.c.l.b16 %v113
    %v605 = vunpack.c.h.b16 %v113
    %v606 = vunpack.c.l.b16 %v114
    %v607 = vunpack.c.h.b16 %v114
    %v608 = vunpack.c.l.b16 %v115
    %v609 = vunpack.c.h.b16 %v115
    %v610 = vunpack.c.l.b16 %v116
    %v611 = vunpack.c.h.b16 %v116
    %v612 = vunpack.c.l.b16 %v117
    %v613 = vunpack.c.h.b16 %v117
    %v614 = vunpack.c.l.b16 %v118
    %v615 = vunpack.c.h.b16 %v118
    %v616 = vunpack.c.l.b16 %v119
    %v617 = vunpack.c.h.b16 %v119
    %v618 = vunpack.c.l.b16 %v120
    %v619 = vunpack.c.h.b16 %v120
    %v620 = vunpack.c.l.b16 %v121
    %v621 = vunpack.c.h.b16 %v121
    %v622 = vunpack.c.l.b16 %v122
    %v623 = vunpack.c.h.b16 %v122
    %v624 = vunpack.c.l.b16 %v123
    %v625 = vunpack.c.h.b16 %v123
    %v626 = vunpack.c.l.b16 %v124
    %v627 = vunpack.c.h.b16 %v124
    %v628 = vunpack.c.l.b16 %v125
    %v629 = vunpack.c.h.b16 %v125
    %v630 = vunpack.c.l.b16 %v126
    %v631 = vunpack.c.h.b16 %v126
    %v632 = vunpack.c.l.b16 %v127
    %v633 = vunpack.c.h.b16 %v127
    %v634 = vunpack.c.l.b16 %v128
    %v635 = vunpack.c.h.b16 %v128
    %v636 = vpack.c.b16 %v512, %v508
    %v637 = vpack.c.b16 %v513, %v509
    %v638 = vpack.c.b16 %v514, %v510
    %v639 = vpack.c.b16 %v515, %v511
    %v640 = vpack.c.b16 %v520, %v516
    %v641 = vpack.c.b16 %v521, %v517
    %v642 = vpack.c.b16 %v522, %v518
    %v643 = vpack.c.b16 %v523, %v519
    %v644 = vpack.c.b16 %v528, %v524
    %v645 = vpack.c.b16 %v529, %v525
    %v646 = vpack.c.b16 %v530, %v526
    %v647 = vpack.c.b16 %v531, %v527
    %v648 = vpack.c.b16 %v536, %v532
    %v649 = vpack.c.b16 %v537, %v533
    %v650 = vpack.c.b16 %v538, %v534
    %v651 = vpack.c.b16 %v539, %v535
    %v652 = vpack.c.b16 %v544, %v540
    %v653 = vpack.c.b16 %v545, %v541
    %v654 = vpack.c.b16 %v546, %v542
    %v655 = vpack.c.b16 %v547, %v543
    %v656 = vpack.c.b16 %v552, %v548
    %v657 = vpack.c.b16 %v553, %v549
    %v658 = vpack.c.b16 %v554, %v550
    %v659 = vpack.c.b16 %v555, %v551
    %v660 = vpack.c.b16 %v560, %v556
    %v661 = vpack.c.b16 %v561, %v557
    %v662 = vpack.c.b16 %v562, %v558
    %v663 = vpack.c.b16 %v563, %v559
    %v664 = vpack.c.b16 %v568, %v564
    %v665 = vpack.c.b16 %v569, %v565
    %v666 = vpack.c.b16 %v570, %v566
    %v667 = vpack.c.b16 %v571, %v567
    %v668 = vpack.c.b16 %v576, %v572
    %v669 = vpack.c.b16 %v577, %v573
    %v670 = vpack.c.b16 %v578, %v574
    %v671 = vpack.c.b16 %v579, %v575
    %v672 = vpack.c.b16 %v584, %v580
    %v673 = vpack.c.b16 %v585, %v581
    %v674 = vpack.c.b16 %v586, %v582
    %v675 = vpack.c.b16 %v587, %v583
    %v676 = vpack.c.b16 %v592, %v588
    %v677 = vpack.c.b16 %v593, %v589
    %v678 = vpack.c.b16 %v594, %v590
    %v679 = vpack.c.b16 %v595, %v591
    %v680 = vpack.c.b16 %v600, %v596
    %v681 = vpack.c.b16 %v601, %v597
    %v682 = vpack.c.b16 %v602, %v598
    %v683 = vpack.c.b16 %v603, %v599
    %v684 = vpack.c.b16 %v608, %v604
    %v685 = vpack.c.b16 %v609, %v605
    %v686 = vpack.c.b16 %v610, %v606
    %v687 = vpack.c.b16 %v611, %v607
    %v688 = vpack.c.b16 %v616, %v612
    %v689 = vpack.c.b16 %v617, %v613
    %v690 = vpack.c.b16 %v618, %v614
    %v691 = vpack.c.b16 %v619, %v615
    %v692 = vpack.c.b16 %v624, %v620
    %v693 = vpack.c.b16 %v625, %v621
    %v694 = vpack.c.b16 %v626, %v622
    %v695 = vpack.c.b16 %v627, %v623
    %v696 = vpack.c.b16 %v632, %v628
    %v697 = vpack.c.b16 %v633, %v629
    %v698 = vpack.c.b16 %v634, %v630
    %v699 = vpack.c.b16 %v635, %v631
    %764 = vmatprep.subr.bf16.mxu0 %v637
    %765 = vmatpush1.bf16.msra.mxu0 %v636
    %766 = vmatprep.subr.bf16.mxu0 %v641
    %767 = vmatpush1.bf16.msra.mxu0 %v640
    %768 = vmatprep.subr.bf16.mxu0 %v645
    %769 = vmatpush1.bf16.msra.mxu0 %v644
    %770 = vmatprep.subr.bf16.mxu0 %v649
    %771 = vmatpush1.bf16.msra.mxu0 %v648
    %772 = vmatprep.subr.bf16.mxu0 %v653
    %773 = vmatpush1.bf16.msra.mxu0 %v652
    %774 = vmatprep.subr.bf16.mxu0 %v657
    %775 = vmatpush1.bf16.msra.mxu0 %v656
    %776 = vmatprep.subr.bf16.mxu0 %v661
    %777 = vmatpush1.bf16.msra.mxu0 %v660
    %778 = vmatprep.subr.bf16.mxu0 %v665
    %779 = vmatpush1.bf16.msra.mxu0 %v664
    %780 = vmatprep.subr.bf16.mxu0 %v669
    %781 = vmatpush1.bf16.msra.mxu0 %v668
    %782 = vmatprep.subr.bf16.mxu0 %v673
    %783 = vmatpush1.bf16.msra.mxu0 %v672
    %784 = vmatprep.subr.bf16.mxu0 %v677
    %785 = vmatpush1.bf16.msra.mxu0 %v676
    %786 = vmatprep.subr.bf16.mxu0 %v681
    %787 = vmatpush1.bf16.msra.mxu0 %v680
    %788 = vmatprep.subr.bf16.mxu0 %v685
    %789 = vmatpush1.bf16.msra.mxu0 %v684
    %790 = vmatprep.subr.bf16.mxu0 %v689
    %791 = vmatpush1.bf16.msra.mxu0 %v688
    %792 = vmatprep.subr.bf16.mxu0 %v693
    %793 = vmatpush1.bf16.msra.mxu0 %v692
    %794 = vmatprep.subr.bf16.mxu0 %v697
    %795 = vmatpush1.bf16.msra.mxu0 %v696
    %796 = vmatprep.mubr.bf16.mxu0 %v422
    %797 = vmatmul.mubr.bf16.gmra.mrb[0].mxu0 %v421
    %v798 = vpop.f32.mrb[0].mxu0
    %v799 = vadd.f32 %v427, %v798
    %v800 = vpop.f32.mrb[0].mxu0
    %v801 = vadd.f32 %v431, %v800
    %v802 = vpop.f32.mrb[0].mxu0
    %v803 = vpop.f32.mrb[0].mxu0
    %804 = vdwg.mxu0
    %805 = vmatprep.subr.bf16.mxu0 %v639
    %806 = vmatpush1.bf16.msra.mxu0 %v638
    %807 = vmatprep.subr.bf16.mxu0 %v643
    %808 = vmatpush1.bf16.msra.mxu0 %v642
    %809 = vmatprep.subr.bf16.mxu0 %v647
    %810 = vmatpush1.bf16.msra.mxu0 %v646
    %811 = vmatprep.subr.bf16.mxu0 %v651
    %812 = vmatpush1.bf16.msra.mxu0 %v650
    %813 = vmatprep.subr.bf16.mxu0 %v655
    %814 = vmatpush1.bf16.msra.mxu0 %v654
    %815 = vmatprep.subr.bf16.mxu0 %v659
    %816 = vmatpush1.bf16.msra.mxu0 %v658
    %817 = vmatprep.subr.bf16.mxu0 %v663
    %818 = vmatpush1.bf16.msra.mxu0 %v662
    %819 = vmatprep.subr.bf16.mxu0 %v667
    %820 = vmatpush1.bf16.msra.mxu0 %v666
    %821 = vmatprep.subr.bf16.mxu0 %v671
    %822 = vmatpush1.bf16.msra.mxu0 %v670
    %823 = vmatprep.subr.bf16.mxu0 %v675
    %824 = vmatpush1.bf16.msra.mxu0 %v674
    %825 = vmatprep.subr.bf16.mxu0 %v679
    %826 = vmatpush1.bf16.msra.mxu0 %v678
    %827 = vmatprep.subr.bf16.mxu0 %v683
    %828 = vmatpush1.bf16.msra.mxu0 %v682
    %829 = vmatprep.subr.bf16.mxu0 %v687
    %830 = vmatpush1.bf16.msra.mxu0 %v686
    %831 = vmatprep.subr.bf16.mxu0 %v691
    %832 = vmatpush1.bf16.msra.mxu0 %v690
    %833 = vmatprep.subr.bf16.mxu0 %v695
    %834 = vmatpush1.bf16.msra.mxu0 %v694
    %835 = vmatprep.subr.bf16.mxu0 %v699
    %836 = vmatpush1.bf16.msra.mxu0 %v698
    %837 = vmatprep.mubr.bf16.mxu0 %v422
    %838 = vmatmul.mubr.bf16.gmra.mrb[0].mxu0 %v421
    %v839 = vpop.f32.mrb[0].mxu0
    %v840 = vadd.f32 %v435, %v839
    %v841 = vpop.f32.mrb[0].mxu0
    %v842 = vadd.f32 %v439, %v841
    %v843 = vpop.f32.mrb[0].mxu0
    %v844 = vpop.f32.mrb[0].mxu0
    %845 = vdwg.mxu0
    %v846 = vxor.u32 %v799, 2147483648
    %v847 = vxor.u32 %v801, 2147483648
    %v848 = vxor.u32 %v840, 2147483648
    %v849 = vmul.f32 %v846, 1.442695
    %v850 = vpow.pop %v849
    %v851 = vmul.f32 %v847, 1.442695
    %v852 = vpow.pop %v851
    %v853 = vmul.f32 %v848, 1.442695
    %v854 = vpow.pop %v853
    %v855 = vadd.f32 %v850, 1.0
    %v856 = vadd.f32 %v852, 1.0
    %v857 = vadd.f32 %v854, 1.0
    %v858 = vrcp.pop %v855
    %v859 = vmul.f32 1.0, %v858
    %v860 = vrcp.pop %v856
    %v861 = vmul.f32 1.0, %v860
    %v862 = vrcp.pop %v857
    %v863 = vmul.f32 1.0, %v862
    %v864 = vtanh.pop %v842
    %v865 = vmul.f32 %v861, %v133
    %v866 = vmul.f32 %v859, %v864
    %v867 = vadd.f32 %v865, %v866
    %v868 = vtanh.pop %v867
    %v869 = vmul.f32 %v863, %v868
    %s870 = scalar_lea.vmem %s0, 8
    %v871 = vld [vmem:[%s870] sm:$0xff]
    %872 = vmatprep.subr.bf16.mxu0 %v233
    %873 = vmatpush1.bf16.msra.mxu0 %v232
    %874 = vmatprep.subr.bf16.mxu0 %v237
    %875 = vmatpush1.bf16.msra.mxu0 %v236
    %876 = vmatprep.subr.bf16.mxu0 %v241
    %877 = vmatpush1.bf16.msra.mxu0 %v240
    %878 = vmatprep.subr.bf16.mxu0 %v245
    %879 = vmatpush1.bf16.msra.mxu0 %v244
    %880 = vmatprep.subr.bf16.mxu0 %v249
    %881 = vmatpush1.bf16.msra.mxu0 %v248
    %882 = vmatprep.subr.bf16.mxu0 %v253
    %883 = vmatpush1.bf16.msra.mxu0 %v252
    %884 = vmatprep.subr.bf16.mxu0 %v257
    %885 = vmatpush1.bf16.msra.mxu0 %v256
    %886 = vmatprep.subr.bf16.mxu0 %v261
    %887 = vmatpush1.bf16.msra.mxu0 %v260
    %888 = vmatprep.subr.bf16.mxu0 0
    %889 = vmatpush1.bf16.msra.mxu0 0
    %890 = vmatprep.subr.bf16.mxu0 0
    %891 = vmatpush1.bf16.msra.mxu0 0
    %892 = vmatprep.subr.bf16.mxu0 0
    %893 = vmatpush1.bf16.msra.mxu0 0
    %894 = vmatprep.subr.bf16.mxu0 0
    %895 = vmatpush1.bf16.msra.mxu0 0
    %896 = vmatprep.subr.bf16.mxu0 0
    %897 = vmatpush1.bf16.msra.mxu0 0
    %898 = vmatprep.subr.bf16.mxu0 0
    %899 = vmatpush1.bf16.msra.mxu0 0
    %900 = vmatprep.subr.bf16.mxu0 0
    %901 = vmatpush1.bf16.msra.mxu0 0
    %902 = vmatprep.subr.bf16.mxu0 0
    %903 = vmatpush1.bf16.msra.mxu0 0
    %904 = vmatprep.mubr.bf16.mxu0 0
    %905 = vmatmul.mubr.bf16.gmra.mrb[0].mxu0 %v421
    %v906 = vpop.f32.mrb[0].mxu0
    %v907 = vadd.f32 0.0, %v906
    %v908 = vpop.f32.mrb[0].mxu0
    %v909 = vadd.f32 0.0, %v908
    %v910 = vpop.f32.mrb[0].mxu0
    %v911 = vpop.f32.mrb[0].mxu0
    %912 = vdwg.mxu0
    %913 = vmatprep.subr.bf16.mxu0 %v235
    %914 = vmatpush1.bf16.msra.mxu0 %v234
    %915 = vmatprep.subr.bf16.mxu0 %v239
    %916 = vmatpush1.bf16.msra.mxu0 %v238
    %917 = vmatprep.subr.bf16.mxu0 %v243
    %918 = vmatpush1.bf16.msra.mxu0 %v242
    %919 = vmatprep.subr.bf16.mxu0 %v247
    %920 = vmatpush1.bf16.msra.mxu0 %v246
    %921 = vmatprep.subr.bf16.mxu0 %v251
    %922 = vmatpush1.bf16.msra.mxu0 %v250
    %923 = vmatprep.subr.bf16.mxu0 %v255
    %924 = vmatpush1.bf16.msra.mxu0 %v254
    %925 = vmatprep.subr.bf16.mxu0 %v259
    %926 = vmatpush1.bf16.msra.mxu0 %v258
    %927 = vmatprep.subr.bf16.mxu0 %v263
    %928 = vmatpush1.bf16.msra.mxu0 %v262
    %929 = vmatprep.subr.bf16.mxu0 0
    %930 = vmatpush1.bf16.msra.mxu0 0
    %931 = vmatprep.subr.bf16.mxu0 0
    %932 = vmatpush1.bf16.msra.mxu0 0
    %933 = vmatprep.subr.bf16.mxu0 0
    %934 = vmatpush1.bf16.msra.mxu0 0
    %935 = vmatprep.subr.bf16.mxu0 0
    %936 = vmatpush1.bf16.msra.mxu0 0
    %937 = vmatprep.subr.bf16.mxu0 0
    %938 = vmatpush1.bf16.msra.mxu0 0
    %939 = vmatprep.subr.bf16.mxu0 0
    %940 = vmatpush1.bf16.msra.mxu0 0
    %941 = vmatprep.subr.bf16.mxu0 0
    %942 = vmatpush1.bf16.msra.mxu0 0
    %943 = vmatprep.subr.bf16.mxu0 0
    %944 = vmatpush1.bf16.msra.mxu0 0
    %945 = vmatprep.mubr.bf16.mxu0 0
    %946 = vmatmul.mubr.bf16.gmra.mrb[0].mxu0 %v421
    %v947 = vpop.f32.mrb[0].mxu0
    %v948 = vadd.f32 0.0, %v947
    %v949 = vpop.f32.mrb[0].mxu0
    %v950 = vadd.f32 0.0, %v949
    %v951 = vpop.f32.mrb[0].mxu0
    %v952 = vpop.f32.mrb[0].mxu0
    %953 = vdwg.mxu0
    %v958 = vcombine.low %v907, %v909
    %v959 = vcombine.low %v948, %v950
    %v961 = vunpack.c.l.s4 1983009808
    %v962 = vunpack.c.0.s8 %v961
    %v963 = vlaneseq
    %v964 = vshrl.u32 %v963, 7
    %v965 = vsub.s32 %v962, %v964
    %v966 = vrot.slane %v958, %v965
    %v968 = vunpack.c.l.s4 1983009808
    %v969 = vunpack.c.0.s8 %v968
    %v970 = vlaneseq
    %v971 = vshrl.u32 %v970, 7
    %v972 = vsub.s32 %v969, %v971
    %v973 = vrot.slane %v959, %v972
    %v974 = vcombine.low %v966, %v973
    %v976 = vadd.f32 %v871, %v974
    %v977 = vxor.u32 %v976, 2147483648
    %v978 = vmul.f32 %v977, 1.442695
    %v979 = vpow.pop %v978
    %v980 = vadd.f32 %v979, 1.0
    %v981 = vrcp.pop %v980
    %v982 = vmul.f32 1.0, %v981
    %v984 = vrot.slane %v976, 6
    %v986 = vtanh.pop %v984
    %v988 = vrot.slane %v982, 2
    %v990 = vmul.f32 %v988, %v416
    %v991 = vmul.f32 %v982, %v986
    %v992 = vadd.f32 %v990, %v991
    %v993 = vtanh.pop %v992
    %v994 = vrot.slane %v982, 4
    %v996 = vmul.f32 %v994, %v993
    %v997 = vpack.c.bf16 %v996, %v996
    %v998 = vpack.c.bf16 %v869, %v869
    %999 = vmatprep.subr.bf16.mxu0 %v637
    %1000 = vmatpush1.bf16.msra.mxu0 %v636
    %1001 = vmatprep.subr.bf16.mxu0 %v641
    %1002 = vmatpush1.bf16.msra.mxu0 %v640
    %1003 = vmatprep.subr.bf16.mxu0 %v645
    %1004 = vmatpush1.bf16.msra.mxu0 %v644
    %1005 = vmatprep.subr.bf16.mxu0 %v649
    %1006 = vmatpush1.bf16.msra.mxu0 %v648
    %1007 = vmatprep.subr.bf16.mxu0 %v653
    %1008 = vmatpush1.bf16.msra.mxu0 %v652
    %1009 = vmatprep.subr.bf16.mxu0 %v657
    %1010 = vmatpush1.bf16.msra.mxu0 %v656
    %1011 = vmatprep.subr.bf16.mxu0 %v661
    %1012 = vmatpush1.bf16.msra.mxu0 %v660
    %1013 = vmatprep.subr.bf16.mxu0 %v665
    %1014 = vmatpush1.bf16.msra.mxu0 %v664
    %1015 = vmatprep.subr.bf16.mxu0 %v669
    %1016 = vmatpush1.bf16.msra.mxu0 %v668
    %1017 = vmatprep.subr.bf16.mxu0 %v673
    %1018 = vmatpush1.bf16.msra.mxu0 %v672
    %1019 = vmatprep.subr.bf16.mxu0 %v677
    %1020 = vmatpush1.bf16.msra.mxu0 %v676
    %1021 = vmatprep.subr.bf16.mxu0 %v681
    %1022 = vmatpush1.bf16.msra.mxu0 %v680
    %1023 = vmatprep.subr.bf16.mxu0 %v685
    %1024 = vmatpush1.bf16.msra.mxu0 %v684
    %1025 = vmatprep.subr.bf16.mxu0 %v689
    %1026 = vmatpush1.bf16.msra.mxu0 %v688
    %1027 = vmatprep.subr.bf16.mxu0 %v693
    %1028 = vmatpush1.bf16.msra.mxu0 %v692
    %1029 = vmatprep.subr.bf16.mxu0 %v697
    %1030 = vmatpush1.bf16.msra.mxu0 %v696
    %1031 = vmatprep.mubr.bf16.mxu0 %v998
    %1032 = vmatmul.mubr.bf16.gmra.mrb[0].mxu0 %v997
    %v1033 = vpop.f32.mrb[0].mxu0
    %v1034 = vadd.f32 %v427, %v1033
    %v1035 = vpop.f32.mrb[0].mxu0
    %v1036 = vadd.f32 %v431, %v1035
    %v1037 = vpop.f32.mrb[0].mxu0
    %v1038 = vpop.f32.mrb[0].mxu0
    %1039 = vdwg.mxu0
    %1040 = vmatprep.subr.bf16.mxu0 %v639
    %1041 = vmatpush1.bf16.msra.mxu0 %v638
    %1042 = vmatprep.subr.bf16.mxu0 %v643
    %1043 = vmatpush1.bf16.msra.mxu0 %v642
    %1044 = vmatprep.subr.bf16.mxu0 %v647
    %1045 = vmatpush1.bf16.msra.mxu0 %v646
    %1046 = vmatprep.subr.bf16.mxu0 %v651
    %1047 = vmatpush1.bf16.msra.mxu0 %v650
    %1048 = vmatprep.subr.bf16.mxu0 %v655
    %1049 = vmatpush1.bf16.msra.mxu0 %v654
    %1050 = vmatprep.subr.bf16.mxu0 %v659
    %1051 = vmatpush1.bf16.msra.mxu0 %v658
    %1052 = vmatprep.subr.bf16.mxu0 %v663
    %1053 = vmatpush1.bf16.msra.mxu0 %v662
    %1054 = vmatprep.subr.bf16.mxu0 %v667
    %1055 = vmatpush1.bf16.msra.mxu0 %v666
    %1056 = vmatprep.subr.bf16.mxu0 %v671
    %1057 = vmatpush1.bf16.msra.mxu0 %v670
    %1058 = vmatprep.subr.bf16.mxu0 %v675
    %1059 = vmatpush1.bf16.msra.mxu0 %v674
    %1060 = vmatprep.subr.bf16.mxu0 %v679
    %1061 = vmatpush1.bf16.msra.mxu0 %v678
    %1062 = vmatprep.subr.bf16.mxu0 %v683
    %1063 = vmatpush1.bf16.msra.mxu0 %v682
    %1064 = vmatprep.subr.bf16.mxu0 %v687
    %1065 = vmatpush1.bf16.msra.mxu0 %v686
    %1066 = vmatprep.subr.bf16.mxu0 %v691
    %1067 = vmatpush1.bf16.msra.mxu0 %v690
    %1068 = vmatprep.subr.bf16.mxu0 %v695
    %1069 = vmatpush1.bf16.msra.mxu0 %v694
    %1070 = vmatprep.subr.bf16.mxu0 %v699
    %1071 = vmatpush1.bf16.msra.mxu0 %v698
    %1072 = vmatprep.mubr.bf16.mxu0 %v998
    %1073 = vmatmul.mubr.bf16.gmra.mrb[0].mxu0 %v997
    %v1074 = vpop.f32.mrb[0].mxu0
    %v1075 = vadd.f32 %v435, %v1074
    %v1076 = vpop.f32.mrb[0].mxu0
    %v1077 = vadd.f32 %v439, %v1076
    %v1078 = vpop.f32.mrb[0].mxu0
    %v1079 = vpop.f32.mrb[0].mxu0
    %1080 = vdwg.mxu0
    %v1081 = vxor.u32 %v1034, 2147483648
    %v1082 = vxor.u32 %v1036, 2147483648
    %v1083 = vxor.u32 %v1075, 2147483648
    %v1084 = vmul.f32 %v1081, 1.442695
    %v1085 = vpow.pop %v1084
    %v1086 = vmul.f32 %v1082, 1.442695
    %v1087 = vpow.pop %v1086
    %v1088 = vmul.f32 %v1083, 1.442695
    %v1089 = vpow.pop %v1088
    %v1090 = vadd.f32 %v1085, 1.0
    %v1091 = vadd.f32 %v1087, 1.0
    %v1092 = vadd.f32 %v1089, 1.0
    %v1093 = vrcp.pop %v1090
    %v1094 = vmul.f32 1.0, %v1093
    %v1095 = vrcp.pop %v1091
    %v1096 = vmul.f32 1.0, %v1095
    %v1097 = vrcp.pop %v1092
    %v1098 = vmul.f32 1.0, %v1097
    %v1099 = vtanh.pop %v1077
    %v1100 = vmul.f32 %v1096, %v867
    %v1101 = vmul.f32 %v1094, %v1099
    %v1102 = vadd.f32 %v1100, %v1101
    %v1103 = vtanh.pop %v1102
    %v1104 = vmul.f32 %v1098, %v1103
    %s1105 = scalar_lea.vmem %s0, 16
    %v1106 = vld [vmem:[%s1105] sm:$0xff]
    %1107 = vmatprep.subr.bf16.mxu0 %v233
    %1108 = vmatpush1.bf16.msra.mxu0 %v232
    %1109 = vmatprep.subr.bf16.mxu0 %v237
    %1110 = vmatpush1.bf16.msra.mxu0 %v236
    %1111 = vmatprep.subr.bf16.mxu0 %v241
    %1112 = vmatpush1.bf16.msra.mxu0 %v240
    %1113 = vmatprep.subr.bf16.mxu0 %v245
    %1114 = vmatpush1.bf16.msra.mxu0 %v244
    %1115 = vmatprep.subr.bf16.mxu0 %v249
    %1116 = vmatpush1.bf16.msra.mxu0 %v248
    %1117 = vmatprep.subr.bf16.mxu0 %v253
    %1118 = vmatpush1.bf16.msra.mxu0 %v252
    %1119 = vmatprep.subr.bf16.mxu0 %v257
    %1120 = vmatpush1.bf16.msra.mxu0 %v256
    %1121 = vmatprep.subr.bf16.mxu0 %v261
    %1122 = vmatpush1.bf16.msra.mxu0 %v260
    %1123 = vmatprep.subr.bf16.mxu0 0
    %1124 = vmatpush1.bf16.msra.mxu0 0
    %1125 = vmatprep.subr.bf16.mxu0 0
    %1126 = vmatpush1.bf16.msra.mxu0 0
    %1127 = vmatprep.subr.bf16.mxu0 0
    %1128 = vmatpush1.bf16.msra.mxu0 0
    %1129 = vmatprep.subr.bf16.mxu0 0
    %1130 = vmatpush1.bf16.msra.mxu0 0
    %1131 = vmatprep.subr.bf16.mxu0 0
    %1132 = vmatpush1.bf16.msra.mxu0 0
    %1133 = vmatprep.subr.bf16.mxu0 0
    %1134 = vmatpush1.bf16.msra.mxu0 0
    %1135 = vmatprep.subr.bf16.mxu0 0
    %1136 = vmatpush1.bf16.msra.mxu0 0
    %1137 = vmatprep.subr.bf16.mxu0 0
    %1138 = vmatpush1.bf16.msra.mxu0 0
    %1139 = vmatprep.mubr.bf16.mxu0 0
    %1140 = vmatmul.mubr.bf16.gmra.mrb[0].mxu0 %v997
    %v1141 = vpop.f32.mrb[0].mxu0
    %v1142 = vadd.f32 0.0, %v1141
    %v1143 = vpop.f32.mrb[0].mxu0
    %v1144 = vadd.f32 0.0, %v1143
    %v1145 = vpop.f32.mrb[0].mxu0
    %v1146 = vpop.f32.mrb[0].mxu0
    %1147 = vdwg.mxu0
    %1148 = vmatprep.subr.bf16.mxu0 %v235
    %1149 = vmatpush1.bf16.msra.mxu0 %v234
    %1150 = vmatprep.subr.bf16.mxu0 %v239
    %1151 = vmatpush1.bf16.msra.mxu0 %v238
    %1152 = vmatprep.subr.bf16.mxu0 %v243
    %1153 = vmatpush1.bf16.msra.mxu0 %v242
    %1154 = vmatprep.subr.bf16.mxu0 %v247
    %1155 = vmatpush1.bf16.msra.mxu0 %v246
    %1156 = vmatprep.subr.bf16.mxu0 %v251
    %1157 = vmatpush1.bf16.msra.mxu0 %v250
    %1158 = vmatprep.subr.bf16.mxu0 %v255
    %1159 = vmatpush1.bf16.msra.mxu0 %v254
    %1160 = vmatprep.subr.bf16.mxu0 %v259
    %1161 = vmatpush1.bf16.msra.mxu0 %v258
    %1162 = vmatprep.subr.bf16.mxu0 %v263
    %1163 = vmatpush1.bf16.msra.mxu0 %v262
    %1164 = vmatprep.subr.bf16.mxu0 0
    %1165 = vmatpush1.bf16.msra.mxu0 0
    %1166 = vmatprep.subr.bf16.mxu0 0
    %1167 = vmatpush1.bf16.msra.mxu0 0
    %1168 = vmatprep.subr.bf16.mxu0 0
    %1169 = vmatpush1.bf16.msra.mxu0 0
    %1170 = vmatprep.subr.bf16.mxu0 0
    %1171 = vmatpush1.bf16.msra.mxu0 0
    %1172 = vmatprep.subr.bf16.mxu0 0
    %1173 = vmatpush1.bf16.msra.mxu0 0
    %1174 = vmatprep.subr.bf16.mxu0 0
    %1175 = vmatpush1.bf16.msra.mxu0 0
    %1176 = vmatprep.subr.bf16.mxu0 0
    %1177 = vmatpush1.bf16.msra.mxu0 0
    %1178 = vmatprep.subr.bf16.mxu0 0
    %1179 = vmatpush1.bf16.msra.mxu0 0
    %1180 = vmatprep.mubr.bf16.mxu0 0
    %1181 = vmatmul.mubr.bf16.gmra.mrb[0].mxu0 %v997
    %v1182 = vpop.f32.mrb[0].mxu0
    %v1183 = vadd.f32 0.0, %v1182
    %v1184 = vpop.f32.mrb[0].mxu0
    %v1185 = vadd.f32 0.0, %v1184
    %v1186 = vpop.f32.mrb[0].mxu0
    %v1187 = vpop.f32.mrb[0].mxu0
    %1188 = vdwg.mxu0
    %v1193 = vcombine.low %v1142, %v1144
    %v1194 = vcombine.low %v1183, %v1185
    %v1196 = vunpack.c.l.s4 1983009808
    %v1197 = vunpack.c.0.s8 %v1196
    %v1198 = vlaneseq
    %v1199 = vshrl.u32 %v1198, 7
    %v1200 = vsub.s32 %v1197, %v1199
    %v1201 = vrot.slane %v1193, %v1200
    %v1203 = vunpack.c.l.s4 1983009808
    %v1204 = vunpack.c.0.s8 %v1203
    %v1205 = vlaneseq
    %v1206 = vshrl.u32 %v1205, 7
    %v1207 = vsub.s32 %v1204, %v1206
    %v1208 = vrot.slane %v1194, %v1207
    %v1209 = vcombine.low %v1201, %v1208
    %v1211 = vadd.f32 %v1106, %v1209
    %v1212 = vxor.u32 %v1211, 2147483648
    %v1213 = vmul.f32 %v1212, 1.442695
    %v1214 = vpow.pop %v1213
    %v1215 = vadd.f32 %v1214, 1.0
    %v1216 = vrcp.pop %v1215
    %v1217 = vmul.f32 1.0, %v1216
    %v1219 = vrot.slane %v1211, 6
    %v1221 = vtanh.pop %v1219
    %v1223 = vrot.slane %v1217, 2
    %v1225 = vmul.f32 %v1223, %v992
    %v1226 = vmul.f32 %v1217, %v1221
    %v1227 = vadd.f32 %v1225, %v1226
    %v1228 = vtanh.pop %v1227
    %v1229 = vrot.slane %v1217, 4
    %v1231 = vmul.f32 %v1229, %v1228
    %v1232 = vpack.c.bf16 %v1231, %v1231
    %v1233 = vpack.c.bf16 %v1104, %v1104
    %1234 = vmatprep.subr.bf16.mxu0 %v637
    %1235 = vmatpush1.bf16.msra.mxu0 %v636
    %1236 = vmatprep.subr.bf16.mxu0 %v641
    %1237 = vmatpush1.bf16.msra.mxu0 %v640
    %1238 = vmatprep.subr.bf16.mxu0 %v645
    %1239 = vmatpush1.bf16.msra.mxu0 %v644
    %1240 = vmatprep.subr.bf16.mxu0 %v649
    %1241 = vmatpush1.bf16.msra.mxu0 %v648
    %1242 = vmatprep.subr.bf16.mxu0 %v653
    %1243 = vmatpush1.bf16.msra.mxu0 %v652
    %1244 = vmatprep.subr.bf16.mxu0 %v657
    %1245 = vmatpush1.bf16.msra.mxu0 %v656
    %1246 = vmatprep.subr.bf16.mxu0 %v661
    %1247 = vmatpush1.bf16.msra.mxu0 %v660
    %1248 = vmatprep.subr.bf16.mxu0 %v665
    %1249 = vmatpush1.bf16.msra.mxu0 %v664
    %1250 = vmatprep.subr.bf16.mxu0 %v669
    %1251 = vmatpush1.bf16.msra.mxu0 %v668
    %1252 = vmatprep.subr.bf16.mxu0 %v673
    %1253 = vmatpush1.bf16.msra.mxu0 %v672
    %1254 = vmatprep.subr.bf16.mxu0 %v677
    %1255 = vmatpush1.bf16.msra.mxu0 %v676
    %1256 = vmatprep.subr.bf16.mxu0 %v681
    %1257 = vmatpush1.bf16.msra.mxu0 %v680
    %1258 = vmatprep.subr.bf16.mxu0 %v685
    %1259 = vmatpush1.bf16.msra.mxu0 %v684
    %1260 = vmatprep.subr.bf16.mxu0 %v689
    %1261 = vmatpush1.bf16.msra.mxu0 %v688
    %1262 = vmatprep.subr.bf16.mxu0 %v693
    %1263 = vmatpush1.bf16.msra.mxu0 %v692
    %1264 = vmatprep.subr.bf16.mxu0 %v697
    %1265 = vmatpush1.bf16.msra.mxu0 %v696
    %1266 = vmatprep.mubr.bf16.mxu0 %v1233
    %1267 = vmatmul.mubr.bf16.gmra.mrb[0].mxu0 %v1232
    %v1268 = vpop.f32.mrb[0].mxu0
    %v1269 = vadd.f32 %v427, %v1268
    %v1270 = vpop.f32.mrb[0].mxu0
    %v1271 = vadd.f32 %v431, %v1270
    %v1272 = vpop.f32.mrb[0].mxu0
    %v1273 = vpop.f32.mrb[0].mxu0
    %1274 = vdwg.mxu0
    %1275 = vmatprep.subr.bf16.mxu0 %v639
    %1276 = vmatpush1.bf16.msra.mxu0 %v638
    %1277 = vmatprep.subr.bf16.mxu0 %v643
    %1278 = vmatpush1.bf16.msra.mxu0 %v642
    %1279 = vmatprep.subr.bf16.mxu0 %v647
    %1280 = vmatpush1.bf16.msra.mxu0 %v646
    %1281 = vmatprep.subr.bf16.mxu0 %v651
    %1282 = vmatpush1.bf16.msra.mxu0 %v650
    %1283 = vmatprep.subr.bf16.mxu0 %v655
    %1284 = vmatpush1.bf16.msra.mxu0 %v654
    %1285 = vmatprep.subr.bf16.mxu0 %v659
    %1286 = vmatpush1.bf16.msra.mxu0 %v658
    %1287 = vmatprep.subr.bf16.mxu0 %v663
    %1288 = vmatpush1.bf16.msra.mxu0 %v662
    %1289 = vmatprep.subr.bf16.mxu0 %v667
    %1290 = vmatpush1.bf16.msra.mxu0 %v666
    %1291 = vmatprep.subr.bf16.mxu0 %v671
    %1292 = vmatpush1.bf16.msra.mxu0 %v670
    %1293 = vmatprep.subr.bf16.mxu0 %v675
    %1294 = vmatpush1.bf16.msra.mxu0 %v674
    %1295 = vmatprep.subr.bf16.mxu0 %v679
    %1296 = vmatpush1.bf16.msra.mxu0 %v678
    %1297 = vmatprep.subr.bf16.mxu0 %v683
    %1298 = vmatpush1.bf16.msra.mxu0 %v682
    %1299 = vmatprep.subr.bf16.mxu0 %v687
    %1300 = vmatpush1.bf16.msra.mxu0 %v686
    %1301 = vmatprep.subr.bf16.mxu0 %v691
    %1302 = vmatpush1.bf16.msra.mxu0 %v690
    %1303 = vmatprep.subr.bf16.mxu0 %v695
    %1304 = vmatpush1.bf16.msra.mxu0 %v694
    %1305 = vmatprep.subr.bf16.mxu0 %v699
    %1306 = vmatpush1.bf16.msra.mxu0 %v698
    %1307 = vmatprep.mubr.bf16.mxu0 %v1233
    %1308 = vmatmul.mubr.bf16.gmra.mrb[0].mxu0 %v1232
    %v1309 = vpop.f32.mrb[0].mxu0
    %v1310 = vadd.f32 %v435, %v1309
    %v1311 = vpop.f32.mrb[0].mxu0
    %v1312 = vadd.f32 %v439, %v1311
    %v1313 = vpop.f32.mrb[0].mxu0
    %v1314 = vpop.f32.mrb[0].mxu0
    %1315 = vdwg.mxu0
    %v1316 = vxor.u32 %v1269, 2147483648
    %v1317 = vxor.u32 %v1271, 2147483648
    %v1318 = vxor.u32 %v1310, 2147483648
    %v1319 = vmul.f32 %v1316, 1.442695
    %v1320 = vpow.pop %v1319
    %v1321 = vmul.f32 %v1317, 1.442695
    %v1322 = vpow.pop %v1321
    %v1323 = vmul.f32 %v1318, 1.442695
    %v1324 = vpow.pop %v1323
    %v1325 = vadd.f32 %v1320, 1.0
    %v1326 = vadd.f32 %v1322, 1.0
    %v1327 = vadd.f32 %v1324, 1.0
    %v1328 = vrcp.pop %v1325
    %v1329 = vmul.f32 1.0, %v1328
    %v1330 = vrcp.pop %v1326
    %v1331 = vmul.f32 1.0, %v1330
    %v1332 = vrcp.pop %v1327
    %v1333 = vmul.f32 1.0, %v1332
    %v1334 = vtanh.pop %v1312
    %v1335 = vmul.f32 %v1331, %v1102
    %v1336 = vmul.f32 %v1329, %v1334
    %v1337 = vadd.f32 %v1335, %v1336
    %v1338 = vtanh.pop %v1337
    %v1339 = vmul.f32 %v1333, %v1338
    %s1340 = scalar_lea.vmem %s0, 24
    %v1341 = vld [vmem:[%s1340] sm:$0xff]
    %1342 = vmatprep.subr.bf16.mxu0 %v233
    %1343 = vmatpush1.bf16.msra.mxu0 %v232
    %1344 = vmatprep.subr.bf16.mxu0 %v237
    %1345 = vmatpush1.bf16.msra.mxu0 %v236
    %1346 = vmatprep.subr.bf16.mxu0 %v241
    %1347 = vmatpush1.bf16.msra.mxu0 %v240
    %1348 = vmatprep.subr.bf16.mxu0 %v245
    %1349 = vmatpush1.bf16.msra.mxu0 %v244
    %1350 = vmatprep.subr.bf16.mxu0 %v249
    %1351 = vmatpush1.bf16.msra.mxu0 %v248
    %1352 = vmatprep.subr.bf16.mxu0 %v253
    %1353 = vmatpush1.bf16.msra.mxu0 %v252
    %1354 = vmatprep.subr.bf16.mxu0 %v257
    %1355 = vmatpush1.bf16.msra.mxu0 %v256
    %1356 = vmatprep.subr.bf16.mxu0 %v261
    %1357 = vmatpush1.bf16.msra.mxu0 %v260
    %1358 = vmatprep.subr.bf16.mxu0 0
    %1359 = vmatpush1.bf16.msra.mxu0 0
    %1360 = vmatprep.subr.bf16.mxu0 0
    %1361 = vmatpush1.bf16.msra.mxu0 0
    %1362 = vmatprep.subr.bf16.mxu0 0
    %1363 = vmatpush1.bf16.msra.mxu0 0
    %1364 = vmatprep.subr.bf16.mxu0 0
    %1365 = vmatpush1.bf16.msra.mxu0 0
    %1366 = vmatprep.subr.bf16.mxu0 0
    %1367 = vmatpush1.bf16.msra.mxu0 0
    %1368 = vmatprep.subr.bf16.mxu0 0
    %1369 = vmatpush1.bf16.msra.mxu0 0
    %1370 = vmatprep.subr.bf16.mxu0 0
    %1371 = vmatpush1.bf16.msra.mxu0 0
    %1372 = vmatprep.subr.bf16.mxu0 0
    %1373 = vmatpush1.bf16.msra.mxu0 0
    %1374 = vmatprep.mubr.bf16.mxu0 0
    %1375 = vmatmul.mubr.bf16.gmra.mrb[0].mxu0 %v1232
    %v1376 = vpop.f32.mrb[0].mxu0
    %v1377 = vadd.f32 0.0, %v1376
    %v1378 = vpop.f32.mrb[0].mxu0
    %v1379 = vadd.f32 0.0, %v1378
    %v1380 = vpop.f32.mrb[0].mxu0
    %v1381 = vpop.f32.mrb[0].mxu0
    %1382 = vdwg.mxu0
    %1383 = vmatprep.subr.bf16.mxu0 %v235
    %1384 = vmatpush1.bf16.msra.mxu0 %v234
    %1385 = vmatprep.subr.bf16.mxu0 %v239
    %1386 = vmatpush1.bf16.msra.mxu0 %v238
    %1387 = vmatprep.subr.bf16.mxu0 %v243
    %1388 = vmatpush1.bf16.msra.mxu0 %v242
    %1389 = vmatprep.subr.bf16.mxu0 %v247
    %1390 = vmatpush1.bf16.msra.mxu0 %v246
    %1391 = vmatprep.subr.bf16.mxu0 %v251
    %1392 = vmatpush1.bf16.msra.mxu0 %v250
    %1393 = vmatprep.subr.bf16.mxu0 %v255
    %1394 = vmatpush1.bf16.msra.mxu0 %v254
    %1395 = vmatprep.subr.bf16.mxu0 %v259
    %1396 = vmatpush1.bf16.msra.mxu0 %v258
    %1397 = vmatprep.subr.bf16.mxu0 %v263
    %1398 = vmatpush1.bf16.msra.mxu0 %v262
    %1399 = vmatprep.subr.bf16.mxu0 0
    %1400 = vmatpush1.bf16.msra.mxu0 0
    %1401 = vmatprep.subr.bf16.mxu0 0
    %1402 = vmatpush1.bf16.msra.mxu0 0
    %1403 = vmatprep.subr.bf16.mxu0 0
    %1404 = vmatpush1.bf16.msra.mxu0 0
    %1405 = vmatprep.subr.bf16.mxu0 0
    %1406 = vmatpush1.bf16.msra.mxu0 0
    %1407 = vmatprep.subr.bf16.mxu0 0
    %1408 = vmatpush1.bf16.msra.mxu0 0
    %1409 = vmatprep.subr.bf16.mxu0 0
    %1410 = vmatpush1.bf16.msra.mxu0 0
    %1411 = vmatprep.subr.bf16.mxu0 0
    %1412 = vmatpush1.bf16.msra.mxu0 0
    %1413 = vmatprep.subr.bf16.mxu0 0
    %1414 = vmatpush1.bf16.msra.mxu0 0
    %1415 = vmatprep.mubr.bf16.mxu0 0
    %1416 = vmatmul.mubr.bf16.gmra.mrb[0].mxu0 %v1232
    %v1417 = vpop.f32.mrb[0].mxu0
    %v1418 = vadd.f32 0.0, %v1417
    %v1419 = vpop.f32.mrb[0].mxu0
    %v1420 = vadd.f32 0.0, %v1419
    %v1421 = vpop.f32.mrb[0].mxu0
    %v1422 = vpop.f32.mrb[0].mxu0
    %1423 = vdwg.mxu0
    %v1428 = vcombine.low %v1377, %v1379
    %v1429 = vcombine.low %v1418, %v1420
    %v1431 = vunpack.c.l.s4 1983009808
    %v1432 = vunpack.c.0.s8 %v1431
    %v1433 = vlaneseq
    %v1434 = vshrl.u32 %v1433, 7
    %v1435 = vsub.s32 %v1432, %v1434
    %v1436 = vrot.slane %v1428, %v1435
    %v1438 = vunpack.c.l.s4 1983009808
    %v1439 = vunpack.c.0.s8 %v1438
    %v1440 = vlaneseq
    %v1441 = vshrl.u32 %v1440, 7
    %v1442 = vsub.s32 %v1439, %v1441
    %v1443 = vrot.slane %v1429, %v1442
    %v1444 = vcombine.low %v1436, %v1443
    %v1446 = vadd.f32 %v1341, %v1444
    %v1447 = vxor.u32 %v1446, 2147483648
    %v1448 = vmul.f32 %v1447, 1.442695
    %v1449 = vpow.pop %v1448
    %v1450 = vadd.f32 %v1449, 1.0
    %v1451 = vrcp.pop %v1450
    %v1452 = vmul.f32 1.0, %v1451
    %v1454 = vrot.slane %v1446, 6
    %v1456 = vtanh.pop %v1454
    %v1458 = vrot.slane %v1452, 2
    %v1460 = vmul.f32 %v1458, %v1227
    %v1461 = vmul.f32 %v1452, %v1456
    %v1462 = vadd.f32 %v1460, %v1461
    %v1463 = vtanh.pop %v1462
    %v1464 = vrot.slane %v1452, 4
    %v1466 = vmul.f32 %v1464, %v1463
    %v1467 = vpack.c.bf16 %v1466, %v1466
    %v1468 = vpack.c.bf16 %v1339, %v1339
    %1469 = vmatprep.subr.bf16.mxu0 %v637
    %1470 = vmatpush1.bf16.msra.mxu0 %v636
    %1471 = vmatprep.subr.bf16.mxu0 %v641
    %1472 = vmatpush1.bf16.msra.mxu0 %v640
    %1473 = vmatprep.subr.bf16.mxu0 %v645
    %1474 = vmatpush1.bf16.msra.mxu0 %v644
    %1475 = vmatprep.subr.bf16.mxu0 %v649
    %1476 = vmatpush1.bf16.msra.mxu0 %v648
    %1477 = vmatprep.subr.bf16.mxu0 %v653
    %1478 = vmatpush1.bf16.msra.mxu0 %v652
    %1479 = vmatprep.subr.bf16.mxu0 %v657
    %1480 = vmatpush1.bf16.msra.mxu0 %v656
    %1481 = vmatprep.subr.bf16.mxu0 %v661
    %1482 = vmatpush1.bf16.msra.mxu0 %v660
    %1483 = vmatprep.subr.bf16.mxu0 %v665
    %1484 = vmatpush1.bf16.msra.mxu0 %v664
    %1485 = vmatprep.subr.bf16.mxu0 %v669
    %1486 = vmatpush1.bf16.msra.mxu0 %v668
    %1487 = vmatprep.subr.bf16.mxu0 %v673
    %1488 = vmatpush1.bf16.msra.mxu0 %v672
    %1489 = vmatprep.subr.bf16.mxu0 %v677
    %1490 = vmatpush1.bf16.msra.mxu0 %v676
    %1491 = vmatprep.subr.bf16.mxu0 %v681
    %1492 = vmatpush1.bf16.msra.mxu0 %v680
    %1493 = vmatprep.subr.bf16.mxu0 %v685
    %1494 = vmatpush1.bf16.msra.mxu0 %v684
    %1495 = vmatprep.subr.bf16.mxu0 %v689
    %1496 = vmatpush1.bf16.msra.mxu0 %v688
    %1497 = vmatprep.subr.bf16.mxu0 %v693
    %1498 = vmatpush1.bf16.msra.mxu0 %v692
    %1499 = vmatprep.subr.bf16.mxu0 %v697
    %1500 = vmatpush1.bf16.msra.mxu0 %v696
    %1501 = vmatprep.mubr.bf16.mxu0 %v1468
    %1502 = vmatmul.mubr.bf16.gmra.mrb[0].mxu0 %v1467
    %v1503 = vpop.f32.mrb[0].mxu0
    %v1504 = vadd.f32 %v427, %v1503
    %v1505 = vpop.f32.mrb[0].mxu0
    %v1506 = vadd.f32 %v431, %v1505
    %v1507 = vpop.f32.mrb[0].mxu0
    %v1508 = vpop.f32.mrb[0].mxu0
    %1509 = vdwg.mxu0
    %1510 = vmatprep.subr.bf16.mxu0 %v639
    %1511 = vmatpush1.bf16.msra.mxu0 %v638
    %1512 = vmatprep.subr.bf16.mxu0 %v643
    %1513 = vmatpush1.bf16.msra.mxu0 %v642
    %1514 = vmatprep.subr.bf16.mxu0 %v647
    %1515 = vmatpush1.bf16.msra.mxu0 %v646
    %1516 = vmatprep.subr.bf16.mxu0 %v651
    %1517 = vmatpush1.bf16.msra.mxu0 %v650
    %1518 = vmatprep.subr.bf16.mxu0 %v655
    %1519 = vmatpush1.bf16.msra.mxu0 %v654
    %1520 = vmatprep.subr.bf16.mxu0 %v659
    %1521 = vmatpush1.bf16.msra.mxu0 %v658
    %1522 = vmatprep.subr.bf16.mxu0 %v663
    %1523 = vmatpush1.bf16.msra.mxu0 %v662
    %1524 = vmatprep.subr.bf16.mxu0 %v667
    %1525 = vmatpush1.bf16.msra.mxu0 %v666
    %1526 = vmatprep.subr.bf16.mxu0 %v671
    %1527 = vmatpush1.bf16.msra.mxu0 %v670
    %1528 = vmatprep.subr.bf16.mxu0 %v675
    %1529 = vmatpush1.bf16.msra.mxu0 %v674
    %1530 = vmatprep.subr.bf16.mxu0 %v679
    %1531 = vmatpush1.bf16.msra.mxu0 %v678
    %1532 = vmatprep.subr.bf16.mxu0 %v683
    %1533 = vmatpush1.bf16.msra.mxu0 %v682
    %1534 = vmatprep.subr.bf16.mxu0 %v687
    %1535 = vmatpush1.bf16.msra.mxu0 %v686
    %1536 = vmatprep.subr.bf16.mxu0 %v691
    %1537 = vmatpush1.bf16.msra.mxu0 %v690
    %1538 = vmatprep.subr.bf16.mxu0 %v695
    %1539 = vmatpush1.bf16.msra.mxu0 %v694
    %1540 = vmatprep.subr.bf16.mxu0 %v699
    %1541 = vmatpush1.bf16.msra.mxu0 %v698
    %1542 = vmatprep.mubr.bf16.mxu0 %v1468
    %1543 = vmatmul.mubr.bf16.gmra.mrb[0].mxu0 %v1467
    %v1544 = vpop.f32.mrb[0].mxu0
    %v1545 = vadd.f32 %v435, %v1544
    %v1546 = vpop.f32.mrb[0].mxu0
    %v1547 = vadd.f32 %v439, %v1546
    %v1548 = vpop.f32.mrb[0].mxu0
    %v1549 = vpop.f32.mrb[0].mxu0
    %1550 = vdwg.mxu0
    %v1551 = vxor.u32 %v1504, 2147483648
    %v1552 = vxor.u32 %v1506, 2147483648
    %v1553 = vxor.u32 %v1545, 2147483648
    %v1554 = vmul.f32 %v1551, 1.442695
    %v1555 = vpow.pop %v1554
    %v1556 = vmul.f32 %v1552, 1.442695
    %v1557 = vpow.pop %v1556
    %v1558 = vmul.f32 %v1553, 1.442695
    %v1559 = vpow.pop %v1558
    %v1560 = vadd.f32 %v1555, 1.0
    %v1561 = vadd.f32 %v1557, 1.0
    %v1562 = vadd.f32 %v1559, 1.0
    %v1563 = vrcp.pop %v1560
    %v1564 = vmul.f32 1.0, %v1563
    %v1565 = vrcp.pop %v1561
    %v1566 = vmul.f32 1.0, %v1565
    %v1567 = vrcp.pop %v1562
    %v1568 = vmul.f32 1.0, %v1567
    %v1569 = vtanh.pop %v1547
    %v1570 = vmul.f32 %v1566, %v1337
    %v1571 = vmul.f32 %v1564, %v1569
    %v1572 = vadd.f32 %v1570, %v1571
    %v1573 = vtanh.pop %v1572
    %v1574 = vmul.f32 %v1568, %v1573
    %s1575 = scalar_lea.vmem %s0, 32
    %v1576 = vld [vmem:[%s1575] sm:$0xff]
    %1577 = vmatprep.subr.bf16.mxu0 %v233
    %1578 = vmatpush1.bf16.msra.mxu0 %v232
    %1579 = vmatprep.subr.bf16.mxu0 %v237
    %1580 = vmatpush1.bf16.msra.mxu0 %v236
    %1581 = vmatprep.subr.bf16.mxu0 %v241
    %1582 = vmatpush1.bf16.msra.mxu0 %v240
    %1583 = vmatprep.subr.bf16.mxu0 %v245
    %1584 = vmatpush1.bf16.msra.mxu0 %v244
    %1585 = vmatprep.subr.bf16.mxu0 %v249
    %1586 = vmatpush1.bf16.msra.mxu0 %v248
    %1587 = vmatprep.subr.bf16.mxu0 %v253
    %1588 = vmatpush1.bf16.msra.mxu0 %v252
    %1589 = vmatprep.subr.bf16.mxu0 %v257
    %1590 = vmatpush1.bf16.msra.mxu0 %v256
    %1591 = vmatprep.subr.bf16.mxu0 %v261
    %1592 = vmatpush1.bf16.msra.mxu0 %v260
    %1593 = vmatprep.subr.bf16.mxu0 0
    %1594 = vmatpush1.bf16.msra.mxu0 0
    %1595 = vmatprep.subr.bf16.mxu0 0
    %1596 = vmatpush1.bf16.msra.mxu0 0
    %1597 = vmatprep.subr.bf16.mxu0 0
    %1598 = vmatpush1.bf16.msra.mxu0 0
    %1599 = vmatprep.subr.bf16.mxu0 0
    %1600 = vmatpush1.bf16.msra.mxu0 0
    %1601 = vmatprep.subr.bf16.mxu0 0
    %1602 = vmatpush1.bf16.msra.mxu0 0
    %1603 = vmatprep.subr.bf16.mxu0 0
    %1604 = vmatpush1.bf16.msra.mxu0 0
    %1605 = vmatprep.subr.bf16.mxu0 0
    %1606 = vmatpush1.bf16.msra.mxu0 0
    %1607 = vmatprep.subr.bf16.mxu0 0
    %1608 = vmatpush1.bf16.msra.mxu0 0
    %1609 = vmatprep.mubr.bf16.mxu0 0
    %1610 = vmatmul.mubr.bf16.gmra.mrb[0].mxu0 %v1467
    %v1611 = vpop.f32.mrb[0].mxu0
    %v1612 = vadd.f32 0.0, %v1611
    %v1613 = vpop.f32.mrb[0].mxu0
    %v1614 = vadd.f32 0.0, %v1613
    %v1615 = vpop.f32.mrb[0].mxu0
    %v1616 = vpop.f32.mrb[0].mxu0
    %1617 = vdwg.mxu0
    %1618 = vmatprep.subr.bf16.mxu0 %v235
    %1619 = vmatpush1.bf16.msra.mxu0 %v234
    %1620 = vmatprep.subr.bf16.mxu0 %v239
    %1621 = vmatpush1.bf16.msra.mxu0 %v238
    %1622 = vmatprep.subr.bf16.mxu0 %v243
    %1623 = vmatpush1.bf16.msra.mxu0 %v242
    %1624 = vmatprep.subr.bf16.mxu0 %v247
    %1625 = vmatpush1.bf16.msra.mxu0 %v246
    %1626 = vmatprep.subr.bf16.mxu0 %v251
    %1627 = vmatpush1.bf16.msra.mxu0 %v250
    %1628 = vmatprep.subr.bf16.mxu0 %v255
    %1629 = vmatpush1.bf16.msra.mxu0 %v254
    %1630 = vmatprep.subr.bf16.mxu0 %v259
    %1631 = vmatpush1.bf16.msra.mxu0 %v258
    %1632 = vmatprep.subr.bf16.mxu0 %v263
    %1633 = vmatpush1.bf16.msra.mxu0 %v262
    %1634 = vmatprep.subr.bf16.mxu0 0
    %1635 = vmatpush1.bf16.msra.mxu0 0
    %1636 = vmatprep.subr.bf16.mxu0 0
    %1637 = vmatpush1.bf16.msra.mxu0 0
    %1638 = vmatprep.subr.bf16.mxu0 0
    %1639 = vmatpush1.bf16.msra.mxu0 0
    %1640 = vmatprep.subr.bf16.mxu0 0
    %1641 = vmatpush1.bf16.msra.mxu0 0
    %1642 = vmatprep.subr.bf16.mxu0 0
    %1643 = vmatpush1.bf16.msra.mxu0 0
    %1644 = vmatprep.subr.bf16.mxu0 0
    %1645 = vmatpush1.bf16.msra.mxu0 0
    %1646 = vmatprep.subr.bf16.mxu0 0
    %1647 = vmatpush1.bf16.msra.mxu0 0
    %1648 = vmatprep.subr.bf16.mxu0 0
    %1649 = vmatpush1.bf16.msra.mxu0 0
    %1650 = vmatprep.mubr.bf16.mxu0 0
    %1651 = vmatmul.mubr.bf16.gmra.mrb[0].mxu0 %v1467
    %v1652 = vpop.f32.mrb[0].mxu0
    %v1653 = vadd.f32 0.0, %v1652
    %v1654 = vpop.f32.mrb[0].mxu0
    %v1655 = vadd.f32 0.0, %v1654
    %v1656 = vpop.f32.mrb[0].mxu0
    %v1657 = vpop.f32.mrb[0].mxu0
    %1658 = vdwg.mxu0
    %v1663 = vcombine.low %v1612, %v1614
    %v1664 = vcombine.low %v1653, %v1655
    %v1666 = vunpack.c.l.s4 1983009808
    %v1667 = vunpack.c.0.s8 %v1666
    %v1668 = vlaneseq
    %v1669 = vshrl.u32 %v1668, 7
    %v1670 = vsub.s32 %v1667, %v1669
    %v1671 = vrot.slane %v1663, %v1670
    %v1673 = vunpack.c.l.s4 1983009808
    %v1674 = vunpack.c.0.s8 %v1673
    %v1675 = vlaneseq
    %v1676 = vshrl.u32 %v1675, 7
    %v1677 = vsub.s32 %v1674, %v1676
    %v1678 = vrot.slane %v1664, %v1677
    %v1679 = vcombine.low %v1671, %v1678
    %v1681 = vadd.f32 %v1576, %v1679
    %v1682 = vxor.u32 %v1681, 2147483648
    %v1683 = vmul.f32 %v1682, 1.442695
    %v1684 = vpow.pop %v1683
    %v1685 = vadd.f32 %v1684, 1.0
    %v1686 = vrcp.pop %v1685
    %v1687 = vmul.f32 1.0, %v1686
    %v1689 = vrot.slane %v1681, 6
    %v1691 = vtanh.pop %v1689
    %v1693 = vrot.slane %v1687, 2
    %v1695 = vmul.f32 %v1693, %v1462
    %v1696 = vmul.f32 %v1687, %v1691
    %v1697 = vadd.f32 %v1695, %v1696
    %v1698 = vtanh.pop %v1697
    %v1699 = vrot.slane %v1687, 4
    %v1701 = vmul.f32 %v1699, %v1698
    %v1702 = vpack.c.bf16 %v1701, %v1701
    %v1703 = vpack.c.bf16 %v1574, %v1574
    %1704 = vmatprep.subr.bf16.mxu0 %v637
    %1705 = vmatpush1.bf16.msra.mxu0 %v636
    %1706 = vmatprep.subr.bf16.mxu0 %v641
    %1707 = vmatpush1.bf16.msra.mxu0 %v640
    %1708 = vmatprep.subr.bf16.mxu0 %v645
    %1709 = vmatpush1.bf16.msra.mxu0 %v644
    %1710 = vmatprep.subr.bf16.mxu0 %v649
    %1711 = vmatpush1.bf16.msra.mxu0 %v648
    %1712 = vmatprep.subr.bf16.mxu0 %v653
    %1713 = vmatpush1.bf16.msra.mxu0 %v652
    %1714 = vmatprep.subr.bf16.mxu0 %v657
    %1715 = vmatpush1.bf16.msra.mxu0 %v656
    %1716 = vmatprep.subr.bf16.mxu0 %v661
    %1717 = vmatpush1.bf16.msra.mxu0 %v660
    %1718 = vmatprep.subr.bf16.mxu0 %v665
    %1719 = vmatpush1.bf16.msra.mxu0 %v664
    %1720 = vmatprep.subr.bf16.mxu0 %v669
    %1721 = vmatpush1.bf16.msra.mxu0 %v668
    %1722 = vmatprep.subr.bf16.mxu0 %v673
    %1723 = vmatpush1.bf16.msra.mxu0 %v672
    %1724 = vmatprep.subr.bf16.mxu0 %v677
    %1725 = vmatpush1.bf16.msra.mxu0 %v676
    %1726 = vmatprep.subr.bf16.mxu0 %v681
    %1727 = vmatpush1.bf16.msra.mxu0 %v680
    %1728 = vmatprep.subr.bf16.mxu0 %v685
    %1729 = vmatpush1.bf16.msra.mxu0 %v684
    %1730 = vmatprep.subr.bf16.mxu0 %v689
    %1731 = vmatpush1.bf16.msra.mxu0 %v688
    %1732 = vmatprep.subr.bf16.mxu0 %v693
    %1733 = vmatpush1.bf16.msra.mxu0 %v692
    %1734 = vmatprep.subr.bf16.mxu0 %v697
    %1735 = vmatpush1.bf16.msra.mxu0 %v696
    %1736 = vmatprep.mubr.bf16.mxu0 %v1703
    %1737 = vmatmul.mubr.bf16.gmra.mrb[0].mxu0 %v1702
    %v1738 = vpop.f32.mrb[0].mxu0
    %v1739 = vadd.f32 %v427, %v1738
    %v1740 = vpop.f32.mrb[0].mxu0
    %v1741 = vadd.f32 %v431, %v1740
    %v1742 = vpop.f32.mrb[0].mxu0
    %v1743 = vpop.f32.mrb[0].mxu0
    %1744 = vdwg.mxu0
    %1745 = vmatprep.subr.bf16.mxu0 %v639
    %1746 = vmatpush1.bf16.msra.mxu0 %v638
    %1747 = vmatprep.subr.bf16.mxu0 %v643
    %1748 = vmatpush1.bf16.msra.mxu0 %v642
    %1749 = vmatprep.subr.bf16.mxu0 %v647
    %1750 = vmatpush1.bf16.msra.mxu0 %v646
    %1751 = vmatprep.subr.bf16.mxu0 %v651
    %1752 = vmatpush1.bf16.msra.mxu0 %v650
    %1753 = vmatprep.subr.bf16.mxu0 %v655
    %1754 = vmatpush1.bf16.msra.mxu0 %v654
    %1755 = vmatprep.subr.bf16.mxu0 %v659
    %1756 = vmatpush1.bf16.msra.mxu0 %v658
    %1757 = vmatprep.subr.bf16.mxu0 %v663
    %1758 = vmatpush1.bf16.msra.mxu0 %v662
    %1759 = vmatprep.subr.bf16.mxu0 %v667
    %1760 = vmatpush1.bf16.msra.mxu0 %v666
    %1761 = vmatprep.subr.bf16.mxu0 %v671
    %1762 = vmatpush1.bf16.msra.mxu0 %v670
    %1763 = vmatprep.subr.bf16.mxu0 %v675
    %1764 = vmatpush1.bf16.msra.mxu0 %v674
    %1765 = vmatprep.subr.bf16.mxu0 %v679
    %1766 = vmatpush1.bf16.msra.mxu0 %v678
    %1767 = vmatprep.subr.bf16.mxu0 %v683
    %1768 = vmatpush1.bf16.msra.mxu0 %v682
    %1769 = vmatprep.subr.bf16.mxu0 %v687
    %1770 = vmatpush1.bf16.msra.mxu0 %v686
    %1771 = vmatprep.subr.bf16.mxu0 %v691
    %1772 = vmatpush1.bf16.msra.mxu0 %v690
    %1773 = vmatprep.subr.bf16.mxu0 %v695
    %1774 = vmatpush1.bf16.msra.mxu0 %v694
    %1775 = vmatprep.subr.bf16.mxu0 %v699
    %1776 = vmatpush1.bf16.msra.mxu0 %v698
    %1777 = vmatprep.mubr.bf16.mxu0 %v1703
    %1778 = vmatmul.mubr.bf16.gmra.mrb[0].mxu0 %v1702
    %v1779 = vpop.f32.mrb[0].mxu0
    %v1780 = vadd.f32 %v435, %v1779
    %v1781 = vpop.f32.mrb[0].mxu0
    %v1782 = vadd.f32 %v439, %v1781
    %v1783 = vpop.f32.mrb[0].mxu0
    %v1784 = vpop.f32.mrb[0].mxu0
    %1785 = vdwg.mxu0
    %v1786 = vxor.u32 %v1739, 2147483648
    %v1787 = vxor.u32 %v1741, 2147483648
    %v1788 = vxor.u32 %v1780, 2147483648
    %v1789 = vmul.f32 %v1786, 1.442695
    %v1790 = vpow.pop %v1789
    %v1791 = vmul.f32 %v1787, 1.442695
    %v1792 = vpow.pop %v1791
    %v1793 = vmul.f32 %v1788, 1.442695
    %v1794 = vpow.pop %v1793
    %v1795 = vadd.f32 %v1790, 1.0
    %v1796 = vadd.f32 %v1792, 1.0
    %v1797 = vadd.f32 %v1794, 1.0
    %v1798 = vrcp.pop %v1795
    %v1799 = vmul.f32 1.0, %v1798
    %v1800 = vrcp.pop %v1796
    %v1801 = vmul.f32 1.0, %v1800
    %v1802 = vrcp.pop %v1797
    %v1803 = vmul.f32 1.0, %v1802
    %v1804 = vtanh.pop %v1782
    %v1805 = vmul.f32 %v1801, %v1572
    %v1806 = vmul.f32 %v1799, %v1804
    %v1807 = vadd.f32 %v1805, %v1806
    %v1808 = vtanh.pop %v1807
    %v1809 = vmul.f32 %v1803, %v1808
    %s1810 = scalar_lea.vmem %s0, 40
    %v1811 = vld [vmem:[%s1810] sm:$0xff]
    %1812 = vmatprep.subr.bf16.mxu0 %v233
    %1813 = vmatpush1.bf16.msra.mxu0 %v232
    %1814 = vmatprep.subr.bf16.mxu0 %v237
    %1815 = vmatpush1.bf16.msra.mxu0 %v236
    %1816 = vmatprep.subr.bf16.mxu0 %v241
    %1817 = vmatpush1.bf16.msra.mxu0 %v240
    %1818 = vmatprep.subr.bf16.mxu0 %v245
    %1819 = vmatpush1.bf16.msra.mxu0 %v244
    %1820 = vmatprep.subr.bf16.mxu0 %v249
    %1821 = vmatpush1.bf16.msra.mxu0 %v248
    %1822 = vmatprep.subr.bf16.mxu0 %v253
    %1823 = vmatpush1.bf16.msra.mxu0 %v252
    %1824 = vmatprep.subr.bf16.mxu0 %v257
    %1825 = vmatpush1.bf16.msra.mxu0 %v256
    %1826 = vmatprep.subr.bf16.mxu0 %v261
    %1827 = vmatpush1.bf16.msra.mxu0 %v260
    %1828 = vmatprep.subr.bf16.mxu0 0
    %1829 = vmatpush1.bf16.msra.mxu0 0
    %1830 = vmatprep.subr.bf16.mxu0 0
    %1831 = vmatpush1.bf16.msra.mxu0 0
    %1832 = vmatprep.subr.bf16.mxu0 0
    %1833 = vmatpush1.bf16.msra.mxu0 0
    %1834 = vmatprep.subr.bf16.mxu0 0
    %1835 = vmatpush1.bf16.msra.mxu0 0
    %1836 = vmatprep.subr.bf16.mxu0 0
    %1837 = vmatpush1.bf16.msra.mxu0 0
    %1838 = vmatprep.subr.bf16.mxu0 0
    %1839 = vmatpush1.bf16.msra.mxu0 0
    %1840 = vmatprep.subr.bf16.mxu0 0
    %1841 = vmatpush1.bf16.msra.mxu0 0
    %1842 = vmatprep.subr.bf16.mxu0 0
    %1843 = vmatpush1.bf16.msra.mxu0 0
    %1844 = vmatprep.mubr.bf16.mxu0 0
    %1845 = vmatmul.mubr.bf16.gmra.mrb[0].mxu0 %v1702
    %v1846 = vpop.f32.mrb[0].mxu0
    %v1847 = vadd.f32 0.0, %v1846
    %v1848 = vpop.f32.mrb[0].mxu0
    %v1849 = vadd.f32 0.0, %v1848
    %v1850 = vpop.f32.mrb[0].mxu0
    %v1851 = vpop.f32.mrb[0].mxu0
    %1852 = vdwg.mxu0
    %1853 = vmatprep.subr.bf16.mxu0 %v235
    %1854 = vmatpush1.bf16.msra.mxu0 %v234
    %1855 = vmatprep.subr.bf16.mxu0 %v239
    %1856 = vmatpush1.bf16.msra.mxu0 %v238
    %1857 = vmatprep.subr.bf16.mxu0 %v243
    %1858 = vmatpush1.bf16.msra.mxu0 %v242
    %1859 = vmatprep.subr.bf16.mxu0 %v247
    %1860 = vmatpush1.bf16.msra.mxu0 %v246
    %1861 = vmatprep.subr.bf16.mxu0 %v251
    %1862 = vmatpush1.bf16.msra.mxu0 %v250
    %1863 = vmatprep.subr.bf16.mxu0 %v255
    %1864 = vmatpush1.bf16.msra.mxu0 %v254
    %1865 = vmatprep.subr.bf16.mxu0 %v259
    %1866 = vmatpush1.bf16.msra.mxu0 %v258
    %1867 = vmatprep.subr.bf16.mxu0 %v263
    %1868 = vmatpush1.bf16.msra.mxu0 %v262
    %1869 = vmatprep.subr.bf16.mxu0 0
    %1870 = vmatpush1.bf16.msra.mxu0 0
    %1871 = vmatprep.subr.bf16.mxu0 0
    %1872 = vmatpush1.bf16.msra.mxu0 0
    %1873 = vmatprep.subr.bf16.mxu0 0
    %1874 = vmatpush1.bf16.msra.mxu0 0
    %1875 = vmatprep.subr.bf16.mxu0 0
    %1876 = vmatpush1.bf16.msra.mxu0 0
    %1877 = vmatprep.subr.bf16.mxu0 0
    %1878 = vmatpush1.bf16.msra.mxu0 0
    %1879 = vmatprep.subr.bf16.mxu0 0
    %1880 = vmatpush1.bf16.msra.mxu0 0
    %1881 = vmatprep.subr.bf16.mxu0 0
    %1882 = vmatpush1.bf16.msra.mxu0 0
    %1883 = vmatprep.subr.bf16.mxu0 0
    %1884 = vmatpush1.bf16.msra.mxu0 0
    %1885 = vmatprep.mubr.bf16.mxu0 0
    %1886 = vmatmul.mubr.bf16.gmra.mrb[0].mxu0 %v1702
    %v1887 = vpop.f32.mrb[0].mxu0
    %v1888 = vadd.f32 0.0, %v1887
    %v1889 = vpop.f32.mrb[0].mxu0
    %v1890 = vadd.f32 0.0, %v1889
    %v1891 = vpop.f32.mrb[0].mxu0
    %v1892 = vpop.f32.mrb[0].mxu0
    %1893 = vdwg.mxu0
    %v1898 = vcombine.low %v1847, %v1849
    %v1899 = vcombine.low %v1888, %v1890
    %v1901 = vunpack.c.l.s4 1983009808
    %v1902 = vunpack.c.0.s8 %v1901
    %v1903 = vlaneseq
    %v1904 = vshrl.u32 %v1903, 7
    %v1905 = vsub.s32 %v1902, %v1904
    %v1906 = vrot.slane %v1898, %v1905
    %v1908 = vunpack.c.l.s4 1983009808
    %v1909 = vunpack.c.0.s8 %v1908
    %v1910 = vlaneseq
    %v1911 = vshrl.u32 %v1910, 7
    %v1912 = vsub.s32 %v1909, %v1911
    %v1913 = vrot.slane %v1899, %v1912
    %v1914 = vcombine.low %v1906, %v1913
    %v1916 = vadd.f32 %v1811, %v1914
    %v1917 = vxor.u32 %v1916, 2147483648
    %v1918 = vmul.f32 %v1917, 1.442695
    %v1919 = vpow.pop %v1918
    %v1920 = vadd.f32 %v1919, 1.0
    %v1921 = vrcp.pop %v1920
    %v1922 = vmul.f32 1.0, %v1921
    %v1924 = vrot.slane %v1916, 6
    %v1926 = vtanh.pop %v1924
    %v1928 = vrot.slane %v1922, 2
    %v1930 = vmul.f32 %v1928, %v1697
    %v1931 = vmul.f32 %v1922, %v1926
    %v1932 = vadd.f32 %v1930, %v1931
    %v1933 = vtanh.pop %v1932
    %v1934 = vrot.slane %v1922, 4
    %v1936 = vmul.f32 %v1934, %v1933
    %v1937 = vpack.c.bf16 %v1936, %v1936
    %v1938 = vpack.c.bf16 %v1809, %v1809
    %1939 = vmatprep.subr.bf16.mxu0 %v637
    %1940 = vmatpush1.bf16.msra.mxu0 %v636
    %1941 = vmatprep.subr.bf16.mxu0 %v641
    %1942 = vmatpush1.bf16.msra.mxu0 %v640
    %1943 = vmatprep.subr.bf16.mxu0 %v645
    %1944 = vmatpush1.bf16.msra.mxu0 %v644
    %1945 = vmatprep.subr.bf16.mxu0 %v649
    %1946 = vmatpush1.bf16.msra.mxu0 %v648
    %1947 = vmatprep.subr.bf16.mxu0 %v653
    %1948 = vmatpush1.bf16.msra.mxu0 %v652
    %1949 = vmatprep.subr.bf16.mxu0 %v657
    %1950 = vmatpush1.bf16.msra.mxu0 %v656
    %1951 = vmatprep.subr.bf16.mxu0 %v661
    %1952 = vmatpush1.bf16.msra.mxu0 %v660
    %1953 = vmatprep.subr.bf16.mxu0 %v665
    %1954 = vmatpush1.bf16.msra.mxu0 %v664
    %1955 = vmatprep.subr.bf16.mxu0 %v669
    %1956 = vmatpush1.bf16.msra.mxu0 %v668
    %1957 = vmatprep.subr.bf16.mxu0 %v673
    %1958 = vmatpush1.bf16.msra.mxu0 %v672
    %1959 = vmatprep.subr.bf16.mxu0 %v677
    %1960 = vmatpush1.bf16.msra.mxu0 %v676
    %1961 = vmatprep.subr.bf16.mxu0 %v681
    %1962 = vmatpush1.bf16.msra.mxu0 %v680
    %1963 = vmatprep.subr.bf16.mxu0 %v685
    %1964 = vmatpush1.bf16.msra.mxu0 %v684
    %1965 = vmatprep.subr.bf16.mxu0 %v689
    %1966 = vmatpush1.bf16.msra.mxu0 %v688
    %1967 = vmatprep.subr.bf16.mxu0 %v693
    %1968 = vmatpush1.bf16.msra.mxu0 %v692
    %1969 = vmatprep.subr.bf16.mxu0 %v697
    %1970 = vmatpush1.bf16.msra.mxu0 %v696
    %1971 = vmatprep.mubr.bf16.mxu0 %v1938
    %1972 = vmatmul.mubr.bf16.gmra.mrb[0].mxu0 %v1937
    %v1973 = vpop.f32.mrb[0].mxu0
    %v1974 = vadd.f32 %v427, %v1973
    %v1975 = vpop.f32.mrb[0].mxu0
    %v1976 = vadd.f32 %v431, %v1975
    %v1977 = vpop.f32.mrb[0].mxu0
    %v1978 = vpop.f32.mrb[0].mxu0
    %1979 = vdwg.mxu0
    %1980 = vmatprep.subr.bf16.mxu0 %v639
    %1981 = vmatpush1.bf16.msra.mxu0 %v638
    %1982 = vmatprep.subr.bf16.mxu0 %v643
    %1983 = vmatpush1.bf16.msra.mxu0 %v642
    %1984 = vmatprep.subr.bf16.mxu0 %v647
    %1985 = vmatpush1.bf16.msra.mxu0 %v646
    %1986 = vmatprep.subr.bf16.mxu0 %v651
    %1987 = vmatpush1.bf16.msra.mxu0 %v650
    %1988 = vmatprep.subr.bf16.mxu0 %v655
    %1989 = vmatpush1.bf16.msra.mxu0 %v654
    %1990 = vmatprep.subr.bf16.mxu0 %v659
    %1991 = vmatpush1.bf16.msra.mxu0 %v658
    %1992 = vmatprep.subr.bf16.mxu0 %v663
    %1993 = vmatpush1.bf16.msra.mxu0 %v662
    %1994 = vmatprep.subr.bf16.mxu0 %v667
    %1995 = vmatpush1.bf16.msra.mxu0 %v666
    %1996 = vmatprep.subr.bf16.mxu0 %v671
    %1997 = vmatpush1.bf16.msra.mxu0 %v670
    %1998 = vmatprep.subr.bf16.mxu0 %v675
    %1999 = vmatpush1.bf16.msra.mxu0 %v674
    %2000 = vmatprep.subr.bf16.mxu0 %v679
    %2001 = vmatpush1.bf16.msra.mxu0 %v678
    %2002 = vmatprep.subr.bf16.mxu0 %v683
    %2003 = vmatpush1.bf16.msra.mxu0 %v682
    %2004 = vmatprep.subr.bf16.mxu0 %v687
    %2005 = vmatpush1.bf16.msra.mxu0 %v686
    %2006 = vmatprep.subr.bf16.mxu0 %v691
    %2007 = vmatpush1.bf16.msra.mxu0 %v690
    %2008 = vmatprep.subr.bf16.mxu0 %v695
    %2009 = vmatpush1.bf16.msra.mxu0 %v694
    %2010 = vmatprep.subr.bf16.mxu0 %v699
    %2011 = vmatpush1.bf16.msra.mxu0 %v698
    %2012 = vmatprep.mubr.bf16.mxu0 %v1938
    %2013 = vmatmul.mubr.bf16.gmra.mrb[0].mxu0 %v1937
    %v2014 = vpop.f32.mrb[0].mxu0
    %v2015 = vadd.f32 %v435, %v2014
    %v2016 = vpop.f32.mrb[0].mxu0
    %v2017 = vadd.f32 %v439, %v2016
    %v2018 = vpop.f32.mrb[0].mxu0
    %v2019 = vpop.f32.mrb[0].mxu0
    %2020 = vdwg.mxu0
    %v2021 = vxor.u32 %v1974, 2147483648
    %v2022 = vxor.u32 %v1976, 2147483648
    %v2023 = vxor.u32 %v2015, 2147483648
    %v2024 = vmul.f32 %v2021, 1.442695
    %v2025 = vpow.pop %v2024
    %v2026 = vmul.f32 %v2022, 1.442695
    %v2027 = vpow.pop %v2026
    %v2028 = vmul.f32 %v2023, 1.442695
    %v2029 = vpow.pop %v2028
    %v2030 = vadd.f32 %v2025, 1.0
    %v2031 = vadd.f32 %v2027, 1.0
    %v2032 = vadd.f32 %v2029, 1.0
    %v2033 = vrcp.pop %v2030
    %v2034 = vmul.f32 1.0, %v2033
    %v2035 = vrcp.pop %v2031
    %v2036 = vmul.f32 1.0, %v2035
    %v2037 = vrcp.pop %v2032
    %v2038 = vmul.f32 1.0, %v2037
    %v2039 = vtanh.pop %v2017
    %v2040 = vmul.f32 %v2036, %v1807
    %v2041 = vmul.f32 %v2034, %v2039
    %v2042 = vadd.f32 %v2040, %v2041
    %v2043 = vtanh.pop %v2042
    %v2044 = vmul.f32 %v2038, %v2043
    %s2045 = scalar_lea.vmem %s0, 48
    %v2046 = vld [vmem:[%s2045] sm:$0xff]
    %2047 = vmatprep.subr.bf16.mxu0 %v233
    %2048 = vmatpush1.bf16.msra.mxu0 %v232
    %2049 = vmatprep.subr.bf16.mxu0 %v237
    %2050 = vmatpush1.bf16.msra.mxu0 %v236
    %2051 = vmatprep.subr.bf16.mxu0 %v241
    %2052 = vmatpush1.bf16.msra.mxu0 %v240
    %2053 = vmatprep.subr.bf16.mxu0 %v245
    %2054 = vmatpush1.bf16.msra.mxu0 %v244
    %2055 = vmatprep.subr.bf16.mxu0 %v249
    %2056 = vmatpush1.bf16.msra.mxu0 %v248
    %2057 = vmatprep.subr.bf16.mxu0 %v253
    %2058 = vmatpush1.bf16.msra.mxu0 %v252
    %2059 = vmatprep.subr.bf16.mxu0 %v257
    %2060 = vmatpush1.bf16.msra.mxu0 %v256
    %2061 = vmatprep.subr.bf16.mxu0 %v261
    %2062 = vmatpush1.bf16.msra.mxu0 %v260
    %2063 = vmatprep.subr.bf16.mxu0 0
    %2064 = vmatpush1.bf16.msra.mxu0 0
    %2065 = vmatprep.subr.bf16.mxu0 0
    %2066 = vmatpush1.bf16.msra.mxu0 0
    %2067 = vmatprep.subr.bf16.mxu0 0
    %2068 = vmatpush1.bf16.msra.mxu0 0
    %2069 = vmatprep.subr.bf16.mxu0 0
    %2070 = vmatpush1.bf16.msra.mxu0 0
    %2071 = vmatprep.subr.bf16.mxu0 0
    %2072 = vmatpush1.bf16.msra.mxu0 0
    %2073 = vmatprep.subr.bf16.mxu0 0
    %2074 = vmatpush1.bf16.msra.mxu0 0
    %2075 = vmatprep.subr.bf16.mxu0 0
    %2076 = vmatpush1.bf16.msra.mxu0 0
    %2077 = vmatprep.subr.bf16.mxu0 0
    %2078 = vmatpush1.bf16.msra.mxu0 0
    %2079 = vmatprep.mubr.bf16.mxu0 0
    %2080 = vmatmul.mubr.bf16.gmra.mrb[0].mxu0 %v1937
    %v2081 = vpop.f32.mrb[0].mxu0
    %v2082 = vadd.f32 0.0, %v2081
    %v2083 = vpop.f32.mrb[0].mxu0
    %v2084 = vadd.f32 0.0, %v2083
    %v2085 = vpop.f32.mrb[0].mxu0
    %v2086 = vpop.f32.mrb[0].mxu0
    %2087 = vdwg.mxu0
    %2088 = vmatprep.subr.bf16.mxu0 %v235
    %2089 = vmatpush1.bf16.msra.mxu0 %v234
    %2090 = vmatprep.subr.bf16.mxu0 %v239
    %2091 = vmatpush1.bf16.msra.mxu0 %v238
    %2092 = vmatprep.subr.bf16.mxu0 %v243
    %2093 = vmatpush1.bf16.msra.mxu0 %v242
    %2094 = vmatprep.subr.bf16.mxu0 %v247
    %2095 = vmatpush1.bf16.msra.mxu0 %v246
    %2096 = vmatprep.subr.bf16.mxu0 %v251
    %2097 = vmatpush1.bf16.msra.mxu0 %v250
    %2098 = vmatprep.subr.bf16.mxu0 %v255
    %2099 = vmatpush1.bf16.msra.mxu0 %v254
    %2100 = vmatprep.subr.bf16.mxu0 %v259
    %2101 = vmatpush1.bf16.msra.mxu0 %v258
    %2102 = vmatprep.subr.bf16.mxu0 %v263
    %2103 = vmatpush1.bf16.msra.mxu0 %v262
    %2104 = vmatprep.subr.bf16.mxu0 0
    %2105 = vmatpush1.bf16.msra.mxu0 0
    %2106 = vmatprep.subr.bf16.mxu0 0
    %2107 = vmatpush1.bf16.msra.mxu0 0
    %2108 = vmatprep.subr.bf16.mxu0 0
    %2109 = vmatpush1.bf16.msra.mxu0 0
    %2110 = vmatprep.subr.bf16.mxu0 0
    %2111 = vmatpush1.bf16.msra.mxu0 0
    %2112 = vmatprep.subr.bf16.mxu0 0
    %2113 = vmatpush1.bf16.msra.mxu0 0
    %2114 = vmatprep.subr.bf16.mxu0 0
    %2115 = vmatpush1.bf16.msra.mxu0 0
    %2116 = vmatprep.subr.bf16.mxu0 0
    %2117 = vmatpush1.bf16.msra.mxu0 0
    %2118 = vmatprep.subr.bf16.mxu0 0
    %2119 = vmatpush1.bf16.msra.mxu0 0
    %2120 = vmatprep.mubr.bf16.mxu0 0
    %2121 = vmatmul.mubr.bf16.gmra.mrb[0].mxu0 %v1937
    %v2122 = vpop.f32.mrb[0].mxu0
    %v2123 = vadd.f32 0.0, %v2122
    %v2124 = vpop.f32.mrb[0].mxu0
    %v2125 = vadd.f32 0.0, %v2124
    %v2126 = vpop.f32.mrb[0].mxu0
    %v2127 = vpop.f32.mrb[0].mxu0
    %2128 = vdwg.mxu0
    %v2133 = vcombine.low %v2082, %v2084
    %v2134 = vcombine.low %v2123, %v2125
    %v2136 = vunpack.c.l.s4 1983009808
    %v2137 = vunpack.c.0.s8 %v2136
    %v2138 = vlaneseq
    %v2139 = vshrl.u32 %v2138, 7
    %v2140 = vsub.s32 %v2137, %v2139
    %v2141 = vrot.slane %v2133, %v2140
    %v2143 = vunpack.c.l.s4 1983009808
    %v2144 = vunpack.c.0.s8 %v2143
    %v2145 = vlaneseq
    %v2146 = vshrl.u32 %v2145, 7
    %v2147 = vsub.s32 %v2144, %v2146
    %v2148 = vrot.slane %v2134, %v2147
    %v2149 = vcombine.low %v2141, %v2148
    %v2151 = vadd.f32 %v2046, %v2149
    %v2152 = vxor.u32 %v2151, 2147483648
    %v2153 = vmul.f32 %v2152, 1.442695
    %v2154 = vpow.pop %v2153
    %v2155 = vadd.f32 %v2154, 1.0
    %v2156 = vrcp.pop %v2155
    %v2157 = vmul.f32 1.0, %v2156
    %v2159 = vrot.slane %v2151, 6
    %v2161 = vtanh.pop %v2159
    %v2163 = vrot.slane %v2157, 2
    %v2165 = vmul.f32 %v2163, %v1932
    %v2166 = vmul.f32 %v2157, %v2161
    %v2167 = vadd.f32 %v2165, %v2166
    %v2168 = vtanh.pop %v2167
    %v2169 = vrot.slane %v2157, 4
    %v2171 = vmul.f32 %v2169, %v2168
    %v2172 = vpack.c.bf16 %v2171, %v2171
    %v2173 = vpack.c.bf16 %v2044, %v2044
    %2174 = vmatprep.subr.bf16.mxu0 %v637
    %2175 = vmatpush1.bf16.msra.mxu0 %v636
    %2176 = vmatprep.subr.bf16.mxu0 %v641
    %2177 = vmatpush1.bf16.msra.mxu0 %v640
    %2178 = vmatprep.subr.bf16.mxu0 %v645
    %2179 = vmatpush1.bf16.msra.mxu0 %v644
    %2180 = vmatprep.subr.bf16.mxu0 %v649
    %2181 = vmatpush1.bf16.msra.mxu0 %v648
    %2182 = vmatprep.subr.bf16.mxu0 %v653
    %2183 = vmatpush1.bf16.msra.mxu0 %v652
    %2184 = vmatprep.subr.bf16.mxu0 %v657
    %2185 = vmatpush1.bf16.msra.mxu0 %v656
    %2186 = vmatprep.subr.bf16.mxu0 %v661
    %2187 = vmatpush1.bf16.msra.mxu0 %v660
    %2188 = vmatprep.subr.bf16.mxu0 %v665
    %2189 = vmatpush1.bf16.msra.mxu0 %v664
    %2190 = vmatprep.subr.bf16.mxu0 %v669
    %2191 = vmatpush1.bf16.msra.mxu0 %v668
    %2192 = vmatprep.subr.bf16.mxu0 %v673
    %2193 = vmatpush1.bf16.msra.mxu0 %v672
    %2194 = vmatprep.subr.bf16.mxu0 %v677
    %2195 = vmatpush1.bf16.msra.mxu0 %v676
    %2196 = vmatprep.subr.bf16.mxu0 %v681
    %2197 = vmatpush1.bf16.msra.mxu0 %v680
    %2198 = vmatprep.subr.bf16.mxu0 %v685
    %2199 = vmatpush1.bf16.msra.mxu0 %v684
    %2200 = vmatprep.subr.bf16.mxu0 %v689
    %2201 = vmatpush1.bf16.msra.mxu0 %v688
    %2202 = vmatprep.subr.bf16.mxu0 %v693
    %2203 = vmatpush1.bf16.msra.mxu0 %v692
    %2204 = vmatprep.subr.bf16.mxu0 %v697
    %2205 = vmatpush1.bf16.msra.mxu0 %v696
    %2206 = vmatprep.mubr.bf16.mxu0 %v2173
    %2207 = vmatmul.mubr.bf16.gmra.mrb[0].mxu0 %v2172
    %v2208 = vpop.f32.mrb[0].mxu0
    %v2209 = vadd.f32 %v427, %v2208
    %v2210 = vpop.f32.mrb[0].mxu0
    %v2211 = vadd.f32 %v431, %v2210
    %v2212 = vpop.f32.mrb[0].mxu0
    %v2213 = vpop.f32.mrb[0].mxu0
    %2214 = vdwg.mxu0
    %2215 = vmatprep.subr.bf16.mxu0 %v639
    %2216 = vmatpush1.bf16.msra.mxu0 %v638
    %2217 = vmatprep.subr.bf16.mxu0 %v643
    %2218 = vmatpush1.bf16.msra.mxu0 %v642
    %2219 = vmatprep.subr.bf16.mxu0 %v647
    %2220 = vmatpush1.bf16.msra.mxu0 %v646
    %2221 = vmatprep.subr.bf16.mxu0 %v651
    %2222 = vmatpush1.bf16.msra.mxu0 %v650
    %2223 = vmatprep.subr.bf16.mxu0 %v655
    %2224 = vmatpush1.bf16.msra.mxu0 %v654
    %2225 = vmatprep.subr.bf16.mxu0 %v659
    %2226 = vmatpush1.bf16.msra.mxu0 %v658
    %2227 = vmatprep.subr.bf16.mxu0 %v663
    %2228 = vmatpush1.bf16.msra.mxu0 %v662
    %2229 = vmatprep.subr.bf16.mxu0 %v667
    %2230 = vmatpush1.bf16.msra.mxu0 %v666
    %2231 = vmatprep.subr.bf16.mxu0 %v671
    %2232 = vmatpush1.bf16.msra.mxu0 %v670
    %2233 = vmatprep.subr.bf16.mxu0 %v675
    %2234 = vmatpush1.bf16.msra.mxu0 %v674
    %2235 = vmatprep.subr.bf16.mxu0 %v679
    %2236 = vmatpush1.bf16.msra.mxu0 %v678
    %2237 = vmatprep.subr.bf16.mxu0 %v683
    %2238 = vmatpush1.bf16.msra.mxu0 %v682
    %2239 = vmatprep.subr.bf16.mxu0 %v687
    %2240 = vmatpush1.bf16.msra.mxu0 %v686
    %2241 = vmatprep.subr.bf16.mxu0 %v691
    %2242 = vmatpush1.bf16.msra.mxu0 %v690
    %2243 = vmatprep.subr.bf16.mxu0 %v695
    %2244 = vmatpush1.bf16.msra.mxu0 %v694
    %2245 = vmatprep.subr.bf16.mxu0 %v699
    %2246 = vmatpush1.bf16.msra.mxu0 %v698
    %2247 = vmatprep.mubr.bf16.mxu0 %v2173
    %2248 = vmatmul.mubr.bf16.gmra.mrb[0].mxu0 %v2172
    %v2249 = vpop.f32.mrb[0].mxu0
    %v2250 = vadd.f32 %v435, %v2249
    %v2251 = vpop.f32.mrb[0].mxu0
    %v2252 = vadd.f32 %v439, %v2251
    %v2253 = vpop.f32.mrb[0].mxu0
    %v2254 = vpop.f32.mrb[0].mxu0
    %2255 = vdwg.mxu0
    %v2256 = vxor.u32 %v2209, 2147483648
    %v2257 = vxor.u32 %v2211, 2147483648
    %v2258 = vxor.u32 %v2250, 2147483648
    %v2259 = vmul.f32 %v2256, 1.442695
    %v2260 = vpow.pop %v2259
    %v2261 = vmul.f32 %v2257, 1.442695
    %v2262 = vpow.pop %v2261
    %v2263 = vmul.f32 %v2258, 1.442695
    %v2264 = vpow.pop %v2263
    %v2265 = vadd.f32 %v2260, 1.0
    %v2266 = vadd.f32 %v2262, 1.0
    %v2267 = vadd.f32 %v2264, 1.0
    %v2268 = vrcp.pop %v2265
    %v2269 = vmul.f32 1.0, %v2268
    %v2270 = vrcp.pop %v2266
    %v2271 = vmul.f32 1.0, %v2270
    %v2272 = vrcp.pop %v2267
    %v2273 = vmul.f32 1.0, %v2272
    %v2274 = vtanh.pop %v2252
    %v2275 = vmul.f32 %v2271, %v2042
    %v2276 = vmul.f32 %v2269, %v2274
    %v2277 = vadd.f32 %v2275, %v2276
    %v2278 = vtanh.pop %v2277
    %v2279 = vmul.f32 %v2273, %v2278
    %s2280 = scalar_lea.vmem %s0, 56
    %v2281 = vld [vmem:[%s2280] sm:$0xff]
    %2282 = vmatprep.subr.bf16.mxu0 %v233
    %2283 = vmatpush1.bf16.msra.mxu0 %v232
    %2284 = vmatprep.subr.bf16.mxu0 %v237
    %2285 = vmatpush1.bf16.msra.mxu0 %v236
    %2286 = vmatprep.subr.bf16.mxu0 %v241
    %2287 = vmatpush1.bf16.msra.mxu0 %v240
    %2288 = vmatprep.subr.bf16.mxu0 %v245
    %2289 = vmatpush1.bf16.msra.mxu0 %v244
    %2290 = vmatprep.subr.bf16.mxu0 %v249
    %2291 = vmatpush1.bf16.msra.mxu0 %v248
    %2292 = vmatprep.subr.bf16.mxu0 %v253
    %2293 = vmatpush1.bf16.msra.mxu0 %v252
    %2294 = vmatprep.subr.bf16.mxu0 %v257
    %2295 = vmatpush1.bf16.msra.mxu0 %v256
    %2296 = vmatprep.subr.bf16.mxu0 %v261
    %2297 = vmatpush1.bf16.msra.mxu0 %v260
    %2298 = vmatprep.subr.bf16.mxu0 0
    %2299 = vmatpush1.bf16.msra.mxu0 0
    %2300 = vmatprep.subr.bf16.mxu0 0
    %2301 = vmatpush1.bf16.msra.mxu0 0
    %2302 = vmatprep.subr.bf16.mxu0 0
    %2303 = vmatpush1.bf16.msra.mxu0 0
    %2304 = vmatprep.subr.bf16.mxu0 0
    %2305 = vmatpush1.bf16.msra.mxu0 0
    %2306 = vmatprep.subr.bf16.mxu0 0
    %2307 = vmatpush1.bf16.msra.mxu0 0
    %2308 = vmatprep.subr.bf16.mxu0 0
    %2309 = vmatpush1.bf16.msra.mxu0 0
    %2310 = vmatprep.subr.bf16.mxu0 0
    %2311 = vmatpush1.bf16.msra.mxu0 0
    %2312 = vmatprep.subr.bf16.mxu0 0
    %2313 = vmatpush1.bf16.msra.mxu0 0
    %2314 = vmatprep.mubr.bf16.mxu0 0
    %2315 = vmatmul.mubr.bf16.gmra.mrb[0].mxu0 %v2172
    %v2316 = vpop.f32.mrb[0].mxu0
    %v2317 = vadd.f32 0.0, %v2316
    %v2318 = vpop.f32.mrb[0].mxu0
    %v2319 = vadd.f32 0.0, %v2318
    %v2320 = vpop.f32.mrb[0].mxu0
    %v2321 = vpop.f32.mrb[0].mxu0
    %2322 = vdwg.mxu0
    %2323 = vmatprep.subr.bf16.mxu0 %v235
    %2324 = vmatpush1.bf16.msra.mxu0 %v234
    %2325 = vmatprep.subr.bf16.mxu0 %v239
    %2326 = vmatpush1.bf16.msra.mxu0 %v238
    %2327 = vmatprep.subr.bf16.mxu0 %v243
    %2328 = vmatpush1.bf16.msra.mxu0 %v242
    %2329 = vmatprep.subr.bf16.mxu0 %v247
    %2330 = vmatpush1.bf16.msra.mxu0 %v246
    %2331 = vmatprep.subr.bf16.mxu0 %v251
    %2332 = vmatpush1.bf16.msra.mxu0 %v250
    %2333 = vmatprep.subr.bf16.mxu0 %v255
    %2334 = vmatpush1.bf16.msra.mxu0 %v254
    %2335 = vmatprep.subr.bf16.mxu0 %v259
    %2336 = vmatpush1.bf16.msra.mxu0 %v258
    %2337 = vmatprep.subr.bf16.mxu0 %v263
    %2338 = vmatpush1.bf16.msra.mxu0 %v262
    %2339 = vmatprep.subr.bf16.mxu0 0
    %2340 = vmatpush1.bf16.msra.mxu0 0
    %2341 = vmatprep.subr.bf16.mxu0 0
    %2342 = vmatpush1.bf16.msra.mxu0 0
    %2343 = vmatprep.subr.bf16.mxu0 0
    %2344 = vmatpush1.bf16.msra.mxu0 0
    %2345 = vmatprep.subr.bf16.mxu0 0
    %2346 = vmatpush1.bf16.msra.mxu0 0
    %2347 = vmatprep.subr.bf16.mxu0 0
    %2348 = vmatpush1.bf16.msra.mxu0 0
    %2349 = vmatprep.subr.bf16.mxu0 0
    %2350 = vmatpush1.bf16.msra.mxu0 0
    %2351 = vmatprep.subr.bf16.mxu0 0
    %2352 = vmatpush1.bf16.msra.mxu0 0
    %2353 = vmatprep.subr.bf16.mxu0 0
    %2354 = vmatpush1.bf16.msra.mxu0 0
    %2355 = vmatprep.mubr.bf16.mxu0 0
    %2356 = vmatmul.mubr.bf16.gmra.mrb[0].mxu0 %v2172
    %v2357 = vpop.f32.mrb[0].mxu0
    %v2358 = vadd.f32 0.0, %v2357
    %v2359 = vpop.f32.mrb[0].mxu0
    %v2360 = vadd.f32 0.0, %v2359
    %v2361 = vpop.f32.mrb[0].mxu0
    %v2362 = vpop.f32.mrb[0].mxu0
    %2363 = vdwg.mxu0
    %v2368 = vcombine.low %v2317, %v2319
    %v2369 = vcombine.low %v2358, %v2360
    %v2371 = vunpack.c.l.s4 1983009808
    %v2372 = vunpack.c.0.s8 %v2371
    %v2373 = vlaneseq
    %v2374 = vshrl.u32 %v2373, 7
    %v2375 = vsub.s32 %v2372, %v2374
    %v2376 = vrot.slane %v2368, %v2375
    %v2378 = vunpack.c.l.s4 1983009808
    %v2379 = vunpack.c.0.s8 %v2378
    %v2380 = vlaneseq
    %v2381 = vshrl.u32 %v2380, 7
    %v2382 = vsub.s32 %v2379, %v2381
    %v2383 = vrot.slane %v2369, %v2382
    %v2384 = vcombine.low %v2376, %v2383
    %v2386 = vadd.f32 %v2281, %v2384
    %v2387 = vxor.u32 %v2386, 2147483648
    %v2388 = vmul.f32 %v2387, 1.442695
    %v2389 = vpow.pop %v2388
    %v2390 = vadd.f32 %v2389, 1.0
    %v2391 = vrcp.pop %v2390
    %v2392 = vmul.f32 1.0, %v2391
    %v2394 = vrot.slane %v2386, 6
    %v2396 = vtanh.pop %v2394
    %v2398 = vrot.slane %v2392, 2
    %v2400 = vmul.f32 %v2398, %v2167
    %v2401 = vmul.f32 %v2392, %v2396
    %v2402 = vadd.f32 %v2400, %v2401
    %v2403 = vtanh.pop %v2402
    %v2404 = vrot.slane %v2392, 4
    %v2406 = vmul.f32 %v2404, %v2403
    %v2407 = vpack.c.bf16 %v2406, %v2406
    %v2408 = vpack.c.bf16 %v2279, %v2279
    %2409 = vmatprep.subr.bf16.mxu0 %v637
    %2410 = vmatpush1.bf16.msra.mxu0 %v636
    %2411 = vmatprep.subr.bf16.mxu0 %v641
    %2412 = vmatpush1.bf16.msra.mxu0 %v640
    %2413 = vmatprep.subr.bf16.mxu0 %v645
    %2414 = vmatpush1.bf16.msra.mxu0 %v644
    %2415 = vmatprep.subr.bf16.mxu0 %v649
    %2416 = vmatpush1.bf16.msra.mxu0 %v648
    %2417 = vmatprep.subr.bf16.mxu0 %v653
    %2418 = vmatpush1.bf16.msra.mxu0 %v652
    %2419 = vmatprep.subr.bf16.mxu0 %v657
    %2420 = vmatpush1.bf16.msra.mxu0 %v656
    %2421 = vmatprep.subr.bf16.mxu0 %v661
    %2422 = vmatpush1.bf16.msra.mxu0 %v660
    %2423 = vmatprep.subr.bf16.mxu0 %v665
    %2424 = vmatpush1.bf16.msra.mxu0 %v664
    %2425 = vmatprep.subr.bf16.mxu0 %v669
    %2426 = vmatpush1.bf16.msra.mxu0 %v668
    %2427 = vmatprep.subr.bf16.mxu0 %v673
    %2428 = vmatpush1.bf16.msra.mxu0 %v672
    %2429 = vmatprep.subr.bf16.mxu0 %v677
    %2430 = vmatpush1.bf16.msra.mxu0 %v676
    %2431 = vmatprep.subr.bf16.mxu0 %v681
    %2432 = vmatpush1.bf16.msra.mxu0 %v680
    %2433 = vmatprep.subr.bf16.mxu0 %v685
    %2434 = vmatpush1.bf16.msra.mxu0 %v684
    %2435 = vmatprep.subr.bf16.mxu0 %v689
    %2436 = vmatpush1.bf16.msra.mxu0 %v688
    %2437 = vmatprep.subr.bf16.mxu0 %v693
    %2438 = vmatpush1.bf16.msra.mxu0 %v692
    %2439 = vmatprep.subr.bf16.mxu0 %v697
    %2440 = vmatpush1.bf16.msra.mxu0 %v696
    %2441 = vmatprep.mubr.bf16.mxu0 %v2408
    %2442 = vmatmul.mubr.bf16.gmra.mrb[0].mxu0 %v2407
    %v2443 = vpop.f32.mrb[0].mxu0
    %v2444 = vadd.f32 %v427, %v2443
    %v2445 = vpop.f32.mrb[0].mxu0
    %v2446 = vadd.f32 %v431, %v2445
    %v2447 = vpop.f32.mrb[0].mxu0
    %v2448 = vpop.f32.mrb[0].mxu0
    %2449 = vdwg.mxu0
    %2450 = vmatprep.subr.bf16.mxu0 %v639
    %2451 = vmatpush1.bf16.msra.mxu0 %v638
    %2452 = vmatprep.subr.bf16.mxu0 %v643
    %2453 = vmatpush1.bf16.msra.mxu0 %v642
    %2454 = vmatprep.subr.bf16.mxu0 %v647
    %2455 = vmatpush1.bf16.msra.mxu0 %v646
    %2456 = vmatprep.subr.bf16.mxu0 %v651
    %2457 = vmatpush1.bf16.msra.mxu0 %v650
    %2458 = vmatprep.subr.bf16.mxu0 %v655
    %2459 = vmatpush1.bf16.msra.mxu0 %v654
    %2460 = vmatprep.subr.bf16.mxu0 %v659
    %2461 = vmatpush1.bf16.msra.mxu0 %v658
    %2462 = vmatprep.subr.bf16.mxu0 %v663
    %2463 = vmatpush1.bf16.msra.mxu0 %v662
    %2464 = vmatprep.subr.bf16.mxu0 %v667
    %2465 = vmatpush1.bf16.msra.mxu0 %v666
    %2466 = vmatprep.subr.bf16.mxu0 %v671
    %2467 = vmatpush1.bf16.msra.mxu0 %v670
    %2468 = vmatprep.subr.bf16.mxu0 %v675
    %2469 = vmatpush1.bf16.msra.mxu0 %v674
    %2470 = vmatprep.subr.bf16.mxu0 %v679
    %2471 = vmatpush1.bf16.msra.mxu0 %v678
    %2472 = vmatprep.subr.bf16.mxu0 %v683
    %2473 = vmatpush1.bf16.msra.mxu0 %v682
    %2474 = vmatprep.subr.bf16.mxu0 %v687
    %2475 = vmatpush1.bf16.msra.mxu0 %v686
    %2476 = vmatprep.subr.bf16.mxu0 %v691
    %2477 = vmatpush1.bf16.msra.mxu0 %v690
    %2478 = vmatprep.subr.bf16.mxu0 %v695
    %2479 = vmatpush1.bf16.msra.mxu0 %v694
    %2480 = vmatprep.subr.bf16.mxu0 %v699
    %2481 = vmatpush1.bf16.msra.mxu0 %v698
    %2482 = vmatprep.mubr.bf16.mxu0 %v2408
    %2483 = vmatmul.mubr.bf16.gmra.mrb[0].mxu0 %v2407
    %v2484 = vpop.f32.mrb[0].mxu0
    %v2485 = vadd.f32 %v435, %v2484
    %v2486 = vpop.f32.mrb[0].mxu0
    %v2487 = vadd.f32 %v439, %v2486
    %v2488 = vpop.f32.mrb[0].mxu0
    %v2489 = vpop.f32.mrb[0].mxu0
    %2490 = vdwg.mxu0
    %v2491 = vxor.u32 %v2444, 2147483648
    %v2492 = vxor.u32 %v2446, 2147483648
    %v2493 = vxor.u32 %v2485, 2147483648
    %v2494 = vmul.f32 %v2491, 1.442695
    %v2495 = vpow.pop %v2494
    %v2496 = vmul.f32 %v2492, 1.442695
    %v2497 = vpow.pop %v2496
    %v2498 = vmul.f32 %v2493, 1.442695
    %v2499 = vpow.pop %v2498
    %v2500 = vadd.f32 %v2495, 1.0
    %v2501 = vadd.f32 %v2497, 1.0
    %v2502 = vadd.f32 %v2499, 1.0
    %v2503 = vrcp.pop %v2500
    %v2504 = vmul.f32 1.0, %v2503
    %v2505 = vrcp.pop %v2501
    %v2506 = vmul.f32 1.0, %v2505
    %v2507 = vrcp.pop %v2502
    %v2508 = vmul.f32 1.0, %v2507
    %v2509 = vtanh.pop %v2487
    %v2510 = vmul.f32 %v2506, %v2277
    %v2511 = vmul.f32 %v2504, %v2509
    %v2512 = vadd.f32 %v2510, %v2511
    %v2513 = vtanh.pop %v2512
    %v2514 = vmul.f32 %v2508, %v2513
    %2515 = vst [vmem:[#allocation2] sm:$0x3] %v2406
    %2516 = vst [vmem:[#allocation3] sm:$0x3] %v2402
    %2517 = vst [vmem:[#allocation4] sm:$0x3] %v2514
    %2518 = vst [vmem:[#allocation5] sm:$0x3] %v2512
    // Predicated region
    $region30: #{_lambda_.3} parent=1 // pred_check
      %p2519 = pneg %p25
    $region31: #{_lambda_.3} parent=1 // pred_check_branch
      %2521 = sbr.rel (%p2519) target = $region33
    $region32: #{_lambda_.3} parent=1 // pred_region
      %v2522 = vpack.c.bf16 %v2514, %v2514
      %v2523 = vld [vmem:[%s4] sm:$0xf]
      %v2524 = vld [vmem:[%s4 + $0x4] sm:$0xf]
      %v2525 = vld [vmem:[%s4 + $0x8] sm:$0xf]
      %v2526 = vld [vmem:[%s4 + $0xc] sm:$0xf]
      %v2527 = vld [vmem:[%s4 + $0x10] sm:$0xf]
      %v2528 = vld [vmem:[%s4 + $0x14] sm:$0xf]
      %v2529 = vld [vmem:[%s4 + $0x18] sm:$0xf]
      %v2530 = vld [vmem:[%s4 + $0x1c] sm:$0xf]
      %v2531 = vld [vmem:[%s4 + $0x20] sm:$0xf]
      %v2532 = vld [vmem:[%s4 + $0x24] sm:$0xf]
      %v2533 = vld [vmem:[%s4 + $0x28] sm:$0xf]
      %v2534 = vld [vmem:[%s4 + $0x2c] sm:$0xf]
      %v2535 = vld [vmem:[%s4 + $0x30] sm:$0xf]
      %v2536 = vld [vmem:[%s4 + $0x34] sm:$0xf]
      %v2537 = vld [vmem:[%s4 + $0x38] sm:$0xf]
      %v2538 = vld [vmem:[%s4 + $0x3c] sm:$0xf]
      %v2539 = vld [vmem:[%s5] sm:$0x1]
      %v2541 = vlaneseq
      %v2542 = vshrl.u32 %v2541, 7
      %v2543 = vsub.s32 0, %v2542
      %v2544 = vrot.slane %v2539, %v2543
      %v2562 = vunpack.c.l.b16 %v2523
      %v2563 = vunpack.c.l.b16 %v2524
      %v2564 = vunpack.c.l.b16 %v2525
      %v2565 = vunpack.c.l.b16 %v2526
      %v2566 = vunpack.c.l.b16 %v2527
      %v2567 = vunpack.c.l.b16 %v2528
      %v2568 = vunpack.c.l.b16 %v2529
      %v2569 = vunpack.c.l.b16 %v2530
      %v2570 = vunpack.c.l.b16 %v2531
      %v2571 = vunpack.c.l.b16 %v2532
      %v2572 = vunpack.c.l.b16 %v2533
      %v2573 = vunpack.c.l.b16 %v2534
      %v2574 = vunpack.c.l.b16 %v2535
      %v2575 = vunpack.c.l.b16 %v2536
      %v2576 = vunpack.c.l.b16 %v2537
      %v2577 = vunpack.c.l.b16 %v2538
      %v2578 = vpack.c.b16 %v2563, %v2562
      %v2579 = vpack.c.b16 %v2565, %v2564
      %v2580 = vpack.c.b16 %v2567, %v2566
      %v2581 = vpack.c.b16 %v2569, %v2568
      %v2582 = vpack.c.b16 %v2571, %v2570
      %v2583 = vpack.c.b16 %v2573, %v2572
      %v2584 = vpack.c.b16 %v2575, %v2574
      %v2585 = vpack.c.b16 %v2577, %v2576
      %2594 = vmatprep.subr.bf16.mxu0 0
      %2595 = vmatpush1.bf16.msra.mxu0 %v2578
      %2596 = vmatprep.subr.bf16.mxu0 0
      %2597 = vmatpush1.bf16.msra.mxu0 %v2579
      %2598 = vmatprep.subr.bf16.mxu0 0
      %2599 = vmatpush1.bf16.msra.mxu0 %v2580
      %2600 = vmatprep.subr.bf16.mxu0 0
      %2601 = vmatpush1.bf16.msra.mxu0 %v2581
      %2602 = vmatprep.subr.bf16.mxu0 0
      %2603 = vmatpush1.bf16.msra.mxu0 %v2582
      %2604 = vmatprep.subr.bf16.mxu0 0
      %2605 = vmatpush1.bf16.msra.mxu0 %v2583
      %2606 = vmatprep.subr.bf16.mxu0 0
      %2607 = vmatpush1.bf16.msra.mxu0 %v2584
      %2608 = vmatprep.subr.bf16.mxu0 0
      %2609 = vmatpush1.bf16.msra.mxu0 %v2585
      %2610 = vmatprep.subr.bf16.mxu0 0
      %2611 = vmatpush1.bf16.msra.mxu0 0
      %2612 = vmatprep.subr.bf16.mxu0 0
      %2613 = vmatpush1.bf16.msra.mxu0 0
      %2614 = vmatprep.subr.bf16.mxu0 0
      %2615 = vmatpush1.bf16.msra.mxu0 0
      %2616 = vmatprep.subr.bf16.mxu0 0
      %2617 = vmatpush1.bf16.msra.mxu0 0
      %2618 = vmatprep.subr.bf16.mxu0 0
      %2619 = vmatpush1.bf16.msra.mxu0 0
      %2620 = vmatprep.subr.bf16.mxu0 0
      %2621 = vmatpush1.bf16.msra.mxu0 0
      %2622 = vmatprep.subr.bf16.mxu0 0
      %2623 = vmatpush1.bf16.msra.mxu0 0
      %2624 = vmatprep.subr.bf16.mxu0 0
      %2625 = vmatpush1.bf16.msra.mxu0 0
      %2626 = vmatprep.mubr.bf16.mxu0 0
      %2627 = vmatmul.mubr.bf16.gmra.mrb[0].mxu0 %v2522
      %v2628 = vpop.f32.mrb[0].mxu0
      %v2629 = vadd.f32 %v2544, %v2628
      %v2630 = vpop.f32.mrb[0].mxu0
      %v2631 = vpop.f32.mrb[0].mxu0
      %v2632 = vpop.f32.mrb[0].mxu0
      %2633 = vdwg.mxu0
      %vm2634 = vcmask 25600
      %2635 = vst.msk [vmem:[#allocation6] sm:$0x3] %vm2634, %v2629
    $region33: #{_lambda_.3} parent=1 // pred_fallthru
      _
    // Predicated region
    $region34: #{_lambda_.3} parent=1 // pred_check
      _
    $region35: #{_lambda_.3} parent=1 // pred_check_branch
      %2637 = sbr.rel (0) target = $region37
    $region36: #{_lambda_.3} parent=1 // pred_region
      %s2639 = ssub.s32 32, 32
      %2640 = vsyncadd [#allocation7], %s2639
      %s2642 = sshll.u32 [#allocation6], 4
      %s2643 = int_to_ptr.vmem [resolvable:$true] %s2642
      %2645 = dma.vmem_to_hbm [thread:$0]  %s2643, 32, %s6, [#allocation7]
    $region37: #{_lambda_.3} parent=1 // pred_fallthru
      _
    // Predicated region
    $region38: #{_lambda_.3} parent=1 // pred_check
      _
    $region39: #{_lambda_.3} parent=1 // pred_check_branch
      %2647 = sbr.rel (0) target = $region41
    $region40: #{_lambda_.3} parent=1 // pred_region
      %2648 = dma.done [#allocation7], 32
    $region41: #{_lambda_.3} parent=1 // pred_fallthru
      _
    %2649 = vsyncpa [#allocation7], 1

</llo_original>
